<compile_context>
chip_gen: v7x
topology: tpu7x:2x2x1
jax: 0.10.0
libtpu: 0.0.40
codegen_flags: <defaults>
</compile_context>

<pallas_src>
import jax
import jax.numpy as jnp
import numpy as np
from jax.experimental import pallas as pl
from jax.experimental.pallas import tpu as pltpu

BATCH_TILE = 32                       # preferred samples per grid step (multiple of 8)
MATMUL_DTYPE = jnp.bfloat16           # bf16 MXU operands on v5e/v6e/v7x, f32 accumulate
VMEM_LIMIT = 32 * 1024 * 1024         # explicit scoped-VMEM limit (v5e default is 16 MiB)


# ----------------------------------------------------------------------------
# Pallas kernels
# ----------------------------------------------------------------------------
def conv1_pool_kernel(p_ref, w_ref, b_ref, o_ref):
    """conv1 (as matmul) + 2x2 maxpool + bias + ReLU, lane-dense output.

    p_ref: (4, 25, L)  4 = pool-window offsets, 25 = 5x5 patch, L = TB*144
                       pooled spatial positions (lane dim, multiple of 128).
    w_ref: (6, 25)     conv1 weights, (kh*5+kw) order.
    b_ref: (6, 1)      conv1 bias (f32, broadcast along lanes).
    o_ref: (6, L)      pooled/biased/ReLU'd activations (channels in sublanes).
    """
    w = w_ref[...]
    # 4 independent MXU pushes, tree-reduced max (bias/ReLU commute with max).
    d0 = jnp.dot(w, p_ref[0], preferred_element_type=jnp.float32)
    d1 = jnp.dot(w, p_ref[1], preferred_element_type=jnp.float32)
    d2 = jnp.dot(w, p_ref[2], preferred_element_type=jnp.float32)
    d3 = jnp.dot(w, p_ref[3], preferred_element_type=jnp.float32)
    acc = jnp.maximum(jnp.maximum(d0, d1), jnp.maximum(d2, d3))
    o_ref[...] = jnp.maximum(acc + b_ref[...], 0.0).astype(o_ref.dtype)


def conv2_classifier_kernel(p_ref, w2_ref, b2_ref, w1r_ref, fb1_ref,
                            fw2_ref, fb2_ref, fw3_ref, fb3_ref, o_ref):
    """Fused conv2 + 2x2 maxpool + flatten + Linear(256,120)/ReLU ->
    Linear(120,84)/ReLU -> Linear(84,10) for one batch tile.

    p_ref  : (4, 16, TB, 150) pool-grouped im2col of pooled conv1 (bf16).
    w2_ref : (150, 16) bf16; b2_ref: (1, 16) f32.
    w1r_ref: (16, 16, 120) f32, fc1 weights regrouped as [pos, chan, :].
    """
    ngroups, npos, tb, klen = p_ref.shape
    cout = w2_ref.shape[1]

    # conv2 as one big matmul: (4*16*TB, 150) @ (150, 16) -- trivial reshapes only.
    patches = p_ref[...].reshape(ngroups * npos * tb, klen)
    y = jnp.dot(patches, w2_ref[...], preferred_element_type=jnp.float32)
    y = y.reshape(ngroups, npos, tb, cout)
    # 2x2 maxpool = tree-max over the 4 pool-offset groups (leading dim).
    y = jnp.maximum(jnp.maximum(y[0], y[1]), jnp.maximum(y[2], y[3]))   # (16, TB, 16)
    y = jnp.maximum(y + b2_ref[...], 0.0)                               # bias + ReLU

    # fc1: contraction over (pos, chan) -- one pos-batched matmul (no serialized
    # 16-step accumulate, no middle-dim slicing) + cheap leading-dim sum.
    hp = jnp.einsum('ptc,pcf->ptf', y, w1r_ref[...],
                    preferred_element_type=jnp.float32)                 # (16, TB, 120)
    h = jnp.sum(hp, axis=0) + fb1_ref[...]
    h = jnp.maximum(h, 0.0)                                             # (TB, 120)
    h = jnp.maximum(jnp.dot(h, fw2_ref[...], preferred_element_type=jnp.float32)
                    + fb2_ref[...], 0.0)                                # (TB, 84)
    out = jnp.dot(h, fw3_ref[...], preferred_element_type=jnp.float32) + fb3_ref[...]
    o_ref[...] = out.astype(o_ref.dtype)


# ----------------------------------------------------------------------------
# pallas_call wrappers
# ----------------------------------------------------------------------------
def conv1_pool(p1t, w1t, b1, *, tb):
    g, k, total = p1t.shape                      # (4, 25, npad*144)
    c = w1t.shape[0]
    lanes = tb * 144                             # multiple of 128 (tb % 8 == 0)
    return pl.pallas_call(
        conv1_pool_kernel,
        out_shape=jax.ShapeDtypeStruct((c, total), MATMUL_DTYPE),
        grid=(total // lanes,),
        in_specs=[
            pl.BlockSpec((g, k, lanes), lambda b: (0, 0, b)),
            pl.BlockSpec((c, k), lambda b: (0, 0)),
            pl.BlockSpec((c, 1), lambda b: (0, 0)),
        ],
        out_specs=pl.BlockSpec((c, lanes), lambda b: (0, b)),
        compiler_params=pltpu.CompilerParams(
            dimension_semantics=("parallel",),
            vmem_limit_bytes=VMEM_LIMIT),
    )(p1t, w1t, b1)


def conv2_classifier(p2, w2, b2, w1r, fb1, fw2, fb2, fw3, fb3, *, tb):
    ngroups, npos, npad, klen = p2.shape         # (4, 16, npad, 150)
    num_classes = fw3.shape[1]
    resident = lambda a: pl.BlockSpec(a.shape, lambda b: (0,) * a.ndim)
    return pl.pallas_call(
        conv2_classifier_kernel,
        out_shape=jax.ShapeDtypeStruct((npad, num_classes), jnp.float32),
        grid=(npad // tb,),
        in_specs=[
            pl.BlockSpec((ngroups, npos, tb, klen), lambda b: (0, 0, b, 0)),
            resident(w2), resident(b2), resident(w1r), resident(fb1),
            resident(fw2), resident(fb2), resident(fw3), resident(fb3),
        ],
        out_specs=pl.BlockSpec((tb, num_classes), lambda b: (b, 0)),
        compiler_params=pltpu.CompilerParams(
            dimension_semantics=("parallel",),
            vmem_limit_bytes=VMEM_LIMIT),
    )(p2, w2, b2, w1r, fb1, fw2, fb2, fw3, fb3)


# ----------------------------------------------------------------------------
# XLA glue: pool-offset-grouped im2col (pure data movement, no compute).
# Both builders emit the final layout directly -- no post-hoc transpose of the
# large patch tensors.
# ----------------------------------------------------------------------------
def _conv1_patches_T(x):
    """x: (N, 1, 28, 28) -> (4, 25, N*144) grouped + transposed im2col.

    out[dy*2+dx, kh*5+kw, n*144 + ph*12 + pw] = x[n, 0, 2*ph+dy+kh, 2*pw+dx+kw]
    """
    n = x.shape[0]
    img = x.reshape(n, 28, 28)
    groups = []
    for dy in range(2):
        for dx in range(2):
            taps = [img[:, dy + kh: dy + kh + 24: 2, dx + kw: dx + kw + 24: 2]
                        .reshape(n * 144)
                    for kh in range(5) for kw in range(5)]
            groups.append(jnp.stack(taps, axis=0))           # (25, N*144)
    return jnp.stack(groups, axis=0)                          # (4, 25, N*144)


def _conv2_patches(a):
    """a: (12, 12, N, 6) pooled conv1 (spatial-major, channels-last)
       -> (4, 16, N, 150) pool-grouped im2col.

    out[dy*2+dx, ph*4+pw, n, (kh*5+kw)*6+ci] = a[2*ph+dy+kh, 2*pw+dx+kw, n, ci]
    """
    n = a.shape[2]
    groups = []
    for dy in range(2):
        for dx in range(2):
            taps = [a[dy + kh: dy + kh + 8: 2, dx + kw: dx + kw + 8: 2]
                    for kh in range(5) for kw in range(5)]    # each (4, 4, N, 6)
            g = jnp.stack(taps, axis=-2)                      # (4, 4, N, 25, 6)
            groups.append(g.reshape(16, n, 150))              # trivial merges
    return jnp.stack(groups, axis=0)                          # (4, 16, N, 150)


# ----------------------------------------------------------------------------
# Tiling policy
# ----------------------------------------------------------------------------
def _pick_tiling(n):
    """Pick (batch_tile, padded_batch).

    tb must be a multiple of 8 so tb*144 is a multiple of 128 (lane-dense
    conv1 output).  Keep >= 2 grid steps so both v7x TensorCores get work even
    for tiny batches (v5e/v6e: harmless).
    """
    npad = -(-max(n, 1) // 8) * 8
    if npad == 8:
        npad = 16
    candidates = sorted({t for t in (BATCH_TILE, BATCH_TILE // 2, 16, 8)
                         if t >= 8 and t % 8 == 0}, reverse=True)
    for tb in candidates:
        if npad % tb == 0 and npad // tb >= 2:
            return tb, npad
    return 8, npad


# ----------------------------------------------------------------------------
# Full LeNet5 forward (Pallas)
# ----------------------------------------------------------------------------
@jax.jit
def lenet5_forward(x, params):
    (cw1, cb1, cw2, cb2, fw1, fb1, fw2, fb2, fw3, fb3) = params
    n = x.shape[0]
    tb, npad = _pick_tiling(n)
    if npad != n:
        x = jnp.pad(x, ((0, npad - n), (0, 0), (0, 0), (0, 0)))

    # conv1 + pool1 : lane-dense kernel, batch folded into the lane dimension.
    p1t = _conv1_patches_T(x).astype(MATMUL_DTYPE)                    # (4, 25, npad*144)
    w1t = cw1.reshape(6, 25).astype(MATMUL_DTYPE)                     # (kh*5+kw) order
    pooled1 = conv1_pool(p1t, w1t, cb1.reshape(6, 1).astype(jnp.float32), tb=tb)
    # pooled1: (6, npad*144) in MATMUL_DTYPE

    # conv2 + pool2 + classifier : single fused kernel, channels-last throughout.
    # TODO(synk): fuse this stage with the conv1 kernel (pooled1 stays in VMEM).
    a1 = pooled1.reshape(6, npad, 12, 12).transpose(2, 3, 1, 0)       # (12, 12, npad, 6)
    p2 = _conv2_patches(a1)                                           # (4, 16, npad, 150) bf16
    w2m = cw2.transpose(2, 3, 1, 0).reshape(150, 16).astype(MATMUL_DTYPE)
    # fc1 weights regrouped so [pos, chan, :] reproduces PyTorch's NCHW flatten:
    # w1r[p, c, :] = fw1[c*16 + p, :]
    w1r = fw1.reshape(16, 16, 120).transpose(1, 0, 2)
    out = conv2_classifier(
        p2, w2m, cb2.reshape(1, 16), w1r,
        fb1.reshape(1, -1), fw2, fb2.reshape(1, -1), fw3, fb3.reshape(1, -1),
        tb=tb)
    return out[:n]


# ----------------------------------------------------------------------------
# Pure-JAX reference for validation
# ----------------------------------------------------------------------------
def lenet5_reference(x, params):
    (cw1, cb1, cw2, cb2, fw1, fb1, fw2, fb2, fw3, fb3) = params

    def conv(x, w, b):
        y = jax.lax.conv_general_dilated(
            x, w, (1, 1), "VALID", dimension_numbers=("NCHW", "OIHW", "NCHW"))
        return y + b.reshape(1, -1, 1, 1)

    def pool(x):
        return jax.lax.reduce_window(
            x, -jnp.inf, jax.lax.max, (1, 1, 2, 2), (1, 1, 2, 2), "VALID")

    y = pool(jnp.maximum(conv(x, cw1, cb1), 0.0))
    y = pool(jnp.maximum(conv(y, cw2, cb2), 0.0))
    y = y.reshape(y.shape[0], -1)
    y = jnp.maximum(y @ fw1 + fb1, 0.0)
    y = jnp.maximum(y @ fw2 + fb2, 0.0)
    return y @ fw3 + fb3


# ----------------------------------------------------------------------------
def init_params(key):
    ks = jax.random.split(key, 10)
    s = 0.1
    cw1 = jax.random.normal(ks[0], (6, 1, 5, 5), jnp.float32) * s
    cb1 = jax.random.normal(ks[1], (6,), jnp.float32) * s
    cw2 = jax.random.normal(ks[2], (16, 6, 5, 5), jnp.float32) * s
    cb2 = jax.random.normal(ks[3], (16,), jnp.float32) * s
    fw1 = jax.random.normal(ks[4], (256, 120), jnp.float32) * s
    fb1 = jax.random.normal(ks[5], (120,), jnp.float32) * s
    fw2 = jax.random.normal(ks[6], (120, 84), jnp.float32) * s
    fb2 = jax.random.normal(ks[7], (84,), jnp.float32) * s
    fw3 = jax.random.normal(ks[8], (84, 10), jnp.float32) * s
    fb3 = jax.random.normal(ks[9], (10,), jnp.float32) * s
    return (cw1, cb1, cw2, cb2, fw1, fb1, fw2, fb2, fw3, fb3)


if __name__ == "__main__":
    key = jax.random.PRNGKey(0)
    k_in, k_par = jax.random.split(key)
    # LeNet5 requires 28x28 single-channel input (classifier hard-codes 16*4*4).
    x = jax.random.normal(k_in, (2, 1, 28, 28), jnp.float32)
    params = init_params(k_par)

    out = jax.block_until_ready(lenet5_forward(x, params))
    assert out.shape == (2, 10)

    # Tolerance sized for bf16 conv operands with f32 accumulation vs f32 reference.
    ref = lenet5_reference(x, params)
    np.testing.assert_allclose(np.asarray(out), np.asarray(ref), rtol=5e-2, atol=5e-2)

    print("KERNEL_OK")
</pallas_src>

<mosaic_0001>
module attributes {stable_mosaic.version = 11 : i64} {
  func.func @conv1_pool_kernel(%arg0: i32, %arg1: memref<4x25x1152xbf16, #tpu.memory_space<vmem>>, %arg2: memref<6x25xbf16, #tpu.memory_space<vmem>>, %arg3: memref<6x1xf32, #tpu.memory_space<vmem>>, %arg4: memref<6x1152xbf16, #tpu.memory_space<vmem>>) attributes {dimension_semantics = [#tpu.dimension_semantics<parallel>], iteration_bounds = array<i64: 2>, scalar_prefetch = 0 : i64, scratch_operands = 0 : i64, tpu.core_type = #tpu.core_type<tc>, window_params = [{transform_indices = @transform_0, window_bounds = array<i64: 4, 25, 1152>}, {pipeline_mode = #tpu.pipeline_mode<synchronous>, transform_indices = @transform_1, window_bounds = array<i64: 6, 25>}, {pipeline_mode = #tpu.pipeline_mode<synchronous>, transform_indices = @transform_2, window_bounds = array<i64: 6, 1>}, {transform_indices = @transform_3, window_bounds = array<i64: 6, 1152>}]} {
    %c0 = arith.constant 0 : index
    %c0_0 = arith.constant 0 : index
    %0 = vector.load %arg2[%c0, %c0_0] : memref<6x25xbf16, #tpu.memory_space<vmem>>, vector<6x25xbf16>
    %c0_1 = arith.constant 0 : index
    %c0_2 = arith.constant 0 : index
    %c0_3 = arith.constant 0 : index
    %1 = vector.load %arg1[%c0_1, %c0_2, %c0_3] : memref<4x25x1152xbf16, #tpu.memory_space<vmem>>, vector<1x25x1152xbf16>
    %2 = vector.shape_cast %1 : vector<1x25x1152xbf16> to vector<25x1152xbf16>
    %cst = arith.constant dense<0.000000e+00> : vector<6x1152xf32>
    %3 = tpu.matmul %0, %2, %cst {dimension_numbers = #tpu.dot_dimension_numbers<[1], [0], [0], [1], [0, 0, 1, 1], [], []>} : vector<6x25xbf16>, vector<25x1152xbf16>, vector<6x1152xf32> -> vector<6x1152xf32>
    %c1 = arith.constant 1 : index
    %c0_4 = arith.constant 0 : index
    %c0_5 = arith.constant 0 : index
    %4 = vector.load %arg1[%c1, %c0_4, %c0_5] : memref<4x25x1152xbf16, #tpu.memory_space<vmem>>, vector<1x25x1152xbf16>
    %5 = vector.shape_cast %4 : vector<1x25x1152xbf16> to vector<25x1152xbf16>
    %cst_6 = arith.constant dense<0.000000e+00> : vector<6x1152xf32>
    %6 = tpu.matmul %0, %5, %cst_6 {dimension_numbers = #tpu.dot_dimension_numbers<[1], [0], [0], [1], [0, 0, 1, 1], [], []>} : vector<6x25xbf16>, vector<25x1152xbf16>, vector<6x1152xf32> -> vector<6x1152xf32>
    %c2 = arith.constant 2 : index
    %c0_7 = arith.constant 0 : index
    %c0_8 = arith.constant 0 : index
    %7 = vector.load %arg1[%c2, %c0_7, %c0_8] : memref<4x25x1152xbf16, #tpu.memory_space<vmem>>, vector<1x25x1152xbf16>
    %8 = vector.shape_cast %7 : vector<1x25x1152xbf16> to vector<25x1152xbf16>
    %cst_9 = arith.constant dense<0.000000e+00> : vector<6x1152xf32>
    %9 = tpu.matmul %0, %8, %cst_9 {dimension_numbers = #tpu.dot_dimension_numbers<[1], [0], [0], [1], [0, 0, 1, 1], [], []>} : vector<6x25xbf16>, vector<25x1152xbf16>, vector<6x1152xf32> -> vector<6x1152xf32>
    %c3 = arith.constant 3 : index
    %c0_10 = arith.constant 0 : index
    %c0_11 = arith.constant 0 : index
    %10 = vector.load %arg1[%c3, %c0_10, %c0_11] : memref<4x25x1152xbf16, #tpu.memory_space<vmem>>, vector<1x25x1152xbf16>
    %11 = vector.shape_cast %10 : vector<1x25x1152xbf16> to vector<25x1152xbf16>
    %cst_12 = arith.constant dense<0.000000e+00> : vector<6x1152xf32>
    %12 = tpu.matmul %0, %11, %cst_12 {dimension_numbers = #tpu.dot_dimension_numbers<[1], [0], [0], [1], [0, 0, 1, 1], [], []>} : vector<6x25xbf16>, vector<25x1152xbf16>, vector<6x1152xf32> -> vector<6x1152xf32>
    %13 = arith.maximumf %3, %6 : vector<6x1152xf32>
    %14 = arith.maximumf %9, %12 : vector<6x1152xf32>
    %15 = arith.maximumf %13, %14 : vector<6x1152xf32>
    %c0_13 = arith.constant 0 : index
    %c0_14 = arith.constant 0 : index
    %16 = vector.load %arg3[%c0_13, %c0_14] : memref<6x1xf32, #tpu.memory_space<vmem>>, vector<6x1xf32>
    %17 = vector.broadcast %16 : vector<6x1xf32> to vector<6x1152xf32>
    %18 = arith.addf %15, %17 : vector<6x1152xf32>
    %cst_15 = arith.constant 0.000000e+00 : f32
    %19 = vector.broadcast %cst_15 : f32 to vector<6x1152xf32>
    %20 = arith.maximumf %18, %19 : vector<6x1152xf32>
    %21 = arith.truncf %20 : vector<6x1152xf32> to vector<6x1152xbf16>
    %c0_16 = arith.constant 0 : index
    %c0_17 = arith.constant 0 : index
    %22 = vector.load %arg4[%c0_16, %c0_17] : memref<6x1152xbf16, #tpu.memory_space<vmem>>, vector<6x1152xbf16>
    tpu.vector_store %arg4[%c0_16, %c0_17], %21 {strides = array<i32>} : memref<6x1152xbf16, #tpu.memory_space<vmem>>, vector<6x1152xbf16>,
    return
  }
  func.func @transform_0(%arg0: i32) -> (i32, i32, i32) {
    %c0_i32 = arith.constant 0 : i32
    %c0_i32_0 = arith.constant 0 : i32
    %c0_i32_1 = arith.constant 0 : i32
    return %c0_i32, %c0_i32_0, %arg0 : i32, i32, i32
  }
  func.func @transform_1(%arg0: i32) -> (i32, i32) {
    %c0_i32 = arith.constant 0 : i32
    %c0_i32_0 = arith.constant 0 : i32
    %c0_i32_1 = arith.constant 0 : i32
    return %c0_i32, %c0_i32_0 : i32, i32
  }
  func.func @transform_2(%arg0: i32) -> (i32, i32) {
    %c0_i32 = arith.constant 0 : i32
    %c0_i32_0 = arith.constant 0 : i32
    %c0_i32_1 = arith.constant 0 : i32
    return %c0_i32, %c0_i32_0 : i32, i32
  }
  func.func @transform_3(%arg0: i32) -> (i32, i32) {
    %c0_i32 = arith.constant 0 : i32
    %c0_i32_0 = arith.constant 0 : i32
    return %c0_i32, %arg0 : i32, i32
  }
}

module attributes {stable_mosaic.version = 11 : i64} {
  func.func @conv2_classifier_kernel(%arg0: i32, %arg1: memref<4x16x8x150xbf16, #tpu.memory_space<vmem>>, %arg2: memref<150x16xbf16, #tpu.memory_space<vmem>>, %arg3: memref<1x16xf32, #tpu.memory_space<vmem>>, %arg4: memref<16x16x120xf32, #tpu.memory_space<vmem>>, %arg5: memref<1x120xf32, #tpu.memory_space<vmem>>, %arg6: memref<120x84xf32, #tpu.memory_space<vmem>>, %arg7: memref<1x84xf32, #tpu.memory_space<vmem>>, %arg8: memref<84x10xf32, #tpu.memory_space<vmem>>, %arg9: memref<1x10xf32, #tpu.memory_space<vmem>>, %arg10: memref<8x10xf32, #tpu.memory_space<vmem>>) attributes {dimension_semantics = [#tpu.dimension_semantics<parallel>], iteration_bounds = array<i64: 2>, scalar_prefetch = 0 : i64, scratch_operands = 0 : i64, tpu.core_type = #tpu.core_type<tc>, window_params = [{transform_indices = @transform_0, window_bounds = array<i64: 4, 16, 8, 150>}, {pipeline_mode = #tpu.pipeline_mode<synchronous>, transform_indices = @transform_1, window_bounds = array<i64: 150, 16>}, {pipeline_mode = #tpu.pipeline_mode<synchronous>, transform_indices = @transform_2, window_bounds = array<i64: 1, 16>}, {pipeline_mode = #tpu.pipeline_mode<synchronous>, transform_indices = @transform_3, window_bounds = array<i64: 16, 16, 120>}, {pipeline_mode = #tpu.pipeline_mode<synchronous>, transform_indices = @transform_4, window_bounds = array<i64: 1, 120>}, {pipeline_mode = #tpu.pipeline_mode<synchronous>, transform_indices = @transform_5, window_bounds = array<i64: 120, 84>}, {pipeline_mode = #tpu.pipeline_mode<synchronous>, transform_indices = @transform_6, window_bounds = array<i64: 1, 84>}, {pipeline_mode = #tpu.pipeline_mode<synchronous>, transform_indices = @transform_7, window_bounds = array<i64: 84, 10>}, {pipeline_mode = #tpu.pipeline_mode<synchronous>, transform_indices = @transform_8, window_bounds = array<i64: 1, 10>}, {transform_indices = @transform_9, window_bounds = array<i64: 8, 10>}]} {
    %c0 = arith.constant 0 : index
    %c0_0 = arith.constant 0 : index
    %c0_1 = arith.constant 0 : index
    %c0_2 = arith.constant 0 : index
    %0 = vector.load %arg1[%c0, %c0_0, %c0_1, %c0_2] : memref<4x16x8x150xbf16, #tpu.memory_space<vmem>>, vector<4x16x8x150xbf16>
    %1 = vector.shape_cast %0 : vector<4x16x8x150xbf16> to vector<512x150xbf16>
    %c0_3 = arith.constant 0 : index
    %c0_4 = arith.constant 0 : index
    %2 = vector.load %arg2[%c0_3, %c0_4] : memref<150x16xbf16, #tpu.memory_space<vmem>>, vector<150x16xbf16>
    %cst = arith.constant dense<0.000000e+00> : vector<512x16xf32>
    %3 = tpu.matmul %1, %2, %cst {dimension_numbers = #tpu.dot_dimension_numbers<[1], [0], [0], [1], [0, 0, 1, 1], [], []>} : vector<512x150xbf16>, vector<150x16xbf16>, vector<512x16xf32> -> vector<512x16xf32>
    %4 = vector.shape_cast %3 : vector<512x16xf32> to vector<4x16x8x16xf32>
    %5 = vector.extract_strided_slice %4 {offsets = [0, 0, 0, 0], sizes = [1, 16, 8, 16], strides = [1, 1, 1, 1]} : vector<4x16x8x16xf32> to vector<1x16x8x16xf32>
    %6 = vector.shape_cast %5 : vector<1x16x8x16xf32> to vector<16x8x16xf32>
    %7 = vector.extract_strided_slice %4 {offsets = [1, 0, 0, 0], sizes = [1, 16, 8, 16], strides = [1, 1, 1, 1]} : vector<4x16x8x16xf32> to vector<1x16x8x16xf32>
    %8 = vector.shape_cast %7 : vector<1x16x8x16xf32> to vector<16x8x16xf32>
    %9 = arith.maximumf %6, %8 : vector<16x8x16xf32>
    %10 = vector.extract_strided_slice %4 {offsets = [2, 0, 0, 0], sizes = [1, 16, 8, 16], strides = [1, 1, 1, 1]} : vector<4x16x8x16xf32> to vector<1x16x8x16xf32>
    %11 = vector.shape_cast %10 : vector<1x16x8x16xf32> to vector<16x8x16xf32>
    %12 = vector.extract_strided_slice %4 {offsets = [3, 0, 0, 0], sizes = [1, 16, 8, 16], strides = [1, 1, 1, 1]} : vector<4x16x8x16xf32> to vector<1x16x8x16xf32>
    %13 = vector.shape_cast %12 : vector<1x16x8x16xf32> to vector<16x8x16xf32>
    %14 = arith.maximumf %11, %13 : vector<16x8x16xf32>
    %15 = arith.maximumf %9, %14 : vector<16x8x16xf32>
    %c0_5 = arith.constant 0 : index
    %c0_6 = arith.constant 0 : index
    %16 = vector.load %arg3[%c0_5, %c0_6] : memref<1x16xf32, #tpu.memory_space<vmem>>, vector<1x16xf32>
    %17 = vector.shape_cast %16 : vector<1x16xf32> to vector<1x1x16xf32>
    %18 = vector.broadcast %17 : vector<1x1x16xf32> to vector<16x8x16xf32>
    %19 = arith.addf %15, %18 : vector<16x8x16xf32>
    %cst_7 = arith.constant 0.000000e+00 : f32
    %20 = vector.broadcast %cst_7 : f32 to vector<16x8x16xf32>
    %21 = arith.maximumf %19, %20 : vector<16x8x16xf32>
    %c0_8 = arith.constant 0 : index
    %c0_9 = arith.constant 0 : index
    %c0_10 = arith.constant 0 : index
    %22 = vector.load %arg4[%c0_8, %c0_9, %c0_10] : memref<16x16x120xf32, #tpu.memory_space<vmem>>, vector<16x16x120xf32>
    "tpu.trace_start"() <{level = 10 : i32, message = "ptc,pcf->ptf"}> : () -> ()
    %cst_11 = arith.constant dense<0.000000e+00> : vector<16x8x120xf32>
    %23 = tpu.matmul %21, %22, %cst_11 {dimension_numbers = #tpu.dot_dimension_numbers<[2], [1], [1], [2], [0, 0, 0, 1, 1, 2], [0], [0]>} : vector<16x8x16xf32>, vector<16x16x120xf32>, vector<16x8x120xf32> -> vector<16x8x120xf32>
    "tpu.trace_stop"() : () -> ()
    %cst_12 = arith.constant dense<0.000000e+00> : vector<8x120xf32>
    %24 = vector.multi_reduction <add>, %23, %cst_12 [0] : vector<16x8x120xf32> to vector<8x120xf32>
    %c0_13 = arith.constant 0 : index
    %c0_14 = arith.constant 0 : index
    %25 = vector.load %arg5[%c0_13, %c0_14] : memref<1x120xf32, #tpu.memory_space<vmem>>, vector<1x120xf32>
    %26 = vector.broadcast %25 : vector<1x120xf32> to vector<8x120xf32>
    %27 = arith.addf %24, %26 : vector<8x120xf32>
    %cst_15 = arith.constant 0.000000e+00 : f32
    %28 = vector.broadcast %cst_15 : f32 to vector<8x120xf32>
    %29 = arith.maximumf %27, %28 : vector<8x120xf32>
    %c0_16 = arith.constant 0 : index
    %c0_17 = arith.constant 0 : index
    %30 = vector.load %arg6[%c0_16, %c0_17] : memref<120x84xf32, #tpu.memory_space<vmem>>, vector<120x84xf32>
    %cst_18 = arith.constant dense<0.000000e+00> : vector<8x84xf32>
    %31 = tpu.matmul %29, %30, %cst_18 {dimension_numbers = #tpu.dot_dimension_numbers<[1], [0], [0], [1], [0, 0, 1, 1], [], []>} : vector<8x120xf32>, vector<120x84xf32>, vector<8x84xf32> -> vector<8x84xf32>
    %c0_19 = arith.constant 0 : index
    %c0_20 = arith.constant 0 : index
    %32 = vector.load %arg7[%c0_19, %c0_20] : memref<1x84xf32, #tpu.memory_space<vmem>>, vector<1x84xf32>
    %33 = vector.broadcast %32 : vector<1x84xf32> to vector<8x84xf32>
    %34 = arith.addf %31, %33 : vector<8x84xf32>
    %cst_21 = arith.constant 0.000000e+00 : f32
    %35 = vector.broadcast %cst_21 : f32 to vector<8x84xf32>
    %36 = arith.maximumf %34, %35 : vector<8x84xf32>
    %c0_22 = arith.constant 0 : index
    %c0_23 = arith.constant 0 : index
    %37 = vector.load %arg8[%c0_22, %c0_23] : memref<84x10xf32, #tpu.memory_space<vmem>>, vector<84x10xf32>
    %cst_24 = arith.constant dense<0.000000e+00> : vector<8x10xf32>
    %38 = tpu.matmul %36, %37, %cst_24 {dimension_numbers = #tpu.dot_dimension_numbers<[1], [0], [0], [1], [0, 0, 1, 1], [], []>} : vector<8x84xf32>, vector<84x10xf32>, vector<8x10xf32> -> vector<8x10xf32>
    %c0_25 = arith.constant 0 : index
    %c0_26 = arith.constant 0 : index
    %39 = vector.load %arg9[%c0_25, %c0_26] : memref<1x10xf32, #tpu.memory_space<vmem>>, vector<1x10xf32>
    %40 = vector.broadcast %39 : vector<1x10xf32> to vector<8x10xf32>
    %41 = arith.addf %38, %40 : vector<8x10xf32>
    %c0_27 = arith.constant 0 : index
    %c0_28 = arith.constant 0 : index
    %42 = vector.load %arg10[%c0_27, %c0_28] : memref<8x10xf32, #tpu.memory_space<vmem>>, vector<8x10xf32>
    tpu.vector_store %arg10[%c0_27, %c0_28], %41 {strides = array<i32>} : memref<8x10xf32, #tpu.memory_space<vmem>>, vector<8x10xf32>,
    return
  }
  func.func @transform_0(%arg0: i32) -> (i32, i32, i32, i32) {
    %c0_i32 = arith.constant 0 : i32
    %c0_i32_0 = arith.constant 0 : i32
    %c0_i32_1 = arith.constant 0 : i32
    %c0_i32_2 = arith.constant 0 : i32
    return %c0_i32, %c0_i32_0, %arg0, %c0_i32_1 : i32, i32, i32, i32
  }
  func.func @transform_1(%arg0: i32) -> (i32, i32) {
    %c0_i32 = arith.constant 0 : i32
    %c0_i32_0 = arith.constant 0 : i32
    %c0_i32_1 = arith.constant 0 : i32
    return %c0_i32, %c0_i32_0 : i32, i32
  }
  func.func @transform_2(%arg0: i32) -> (i32, i32) {
    %c0_i32 = arith.constant 0 : i32
    %c0_i32_0 = arith.constant 0 : i32
    %c0_i32_1 = arith.constant 0 : i32
    return %c0_i32, %c0_i32_0 : i32, i32
  }
  func.func @transform_3(%arg0: i32) -> (i32, i32, i32) {
    %c0_i32 = arith.constant 0 : i32
    %c0_i32_0 = arith.constant 0 : i32
    %c0_i32_1 = arith.constant 0 : i32
    %c0_i32_2 = arith.constant 0 : i32
    return %c0_i32, %c0_i32_0, %c0_i32_1 : i32, i32, i32
  }
  func.func @transform_4(%arg0: i32) -> (i32, i32) {
    %c0_i32 = arith.constant 0 : i32
    %c0_i32_0 = arith.constant 0 : i32
    %c0_i32_1 = arith.constant 0 : i32
    return %c0_i32, %c0_i32_0 : i32, i32
  }
  func.func @transform_5(%arg0: i32) -> (i32, i32) {
    %c0_i32 = arith.constant 0 : i32
    %c0_i32_0 = arith.constant 0 : i32
    %c0_i32_1 = arith.constant 0 : i32
    return %c0_i32, %c0_i32_0 : i32, i32
  }
  func.func @transform_6(%arg0: i32) -> (i32, i32) {
    %c0_i32 = arith.constant 0 : i32
    %c0_i32_0 = arith.constant 0 : i32
    %c0_i32_1 = arith.constant 0 : i32
    return %c0_i32, %c0_i32_0 : i32, i32
  }
  func.func @transform_7(%arg0: i32) -> (i32, i32) {
    %c0_i32 = arith.constant 0 : i32
    %c0_i32_0 = arith.constant 0 : i32
    %c0_i32_1 = arith.constant 0 : i32
    return %c0_i32, %c0_i32_0 : i32, i32
  }
  func.func @transform_8(%arg0: i32) -> (i32, i32) {
    %c0_i32 = arith.constant 0 : i32
    %c0_i32_0 = arith.constant 0 : i32
    %c0_i32_1 = arith.constant 0 : i32
    return %c0_i32, %c0_i32_0 : i32, i32
  }
  func.func @transform_9(%arg0: i32) -> (i32, i32) {
    %c0_i32 = arith.constant 0 : i32
    %c0_i32_0 = arith.constant 0 : i32
    return %arg0, %c0_i32 : i32, i32
  }
}

</mosaic_0001>

<llo_original>
// kernel: lenet5_forward.2
$region0: #{lenet5_forward.2}
  #allocation0 [shape = 'u32[]', space=smem, size = 0x4, offset = 0x4, fixed_abs, tag = 'smem constant byte address 0x4 - core index']
  #allocation1 [shape = 'u32[144,128]{1,0:T(1,128)}', space=vmem, size = 0x12000, scoped, tag = 'internal scratch']
  %s0 = inlined_call_operand.vmem [shape: bf16[4,25,2304], index: 0, kind: input, shape index: {}]
  %s1 = inlined_call_operand.vmem [shape: bf16[6,25], index: 1, kind: input, shape index: {}]
  %s2 = inlined_call_operand.vmem [shape: f32[6,1], index: 2, kind: input, shape index: {}]
  %s3 = inlined_call_operand.vmem [shape: bf16[6,2304], index: 3, kind: output, shape index: {}]
  %s4 = sld [smem:[#allocation0]]
  $region71: #{lenet5_forward.2} parent=0
    _
  %s6 = ssub.s32 1, %s4
  %s7 = scalar_select 0, %s6, %s4
  $region1: #{lenet5_forward.2} parent=0
    #allocation2 [shape = 'u8[589824]{0}', space=vmem, size = 0x90000, scoped, tag = 'input window, operand 0']
    loop: start=0, step=1, limit=4
    $region2: #{lenet5_forward.2} parent=1 // loop_pre_header
      _
    $region3: #{lenet5_forward.2} parent=1 // loop_header
      %s9 = sphi 0, %s13
      %p10 = scmp.ge.s32.totalorder %s9, 4
      %s19 = sphi 0, %s21
      %s22 = sphi 0, %s19
      %s23 = sphi 0, %s22
      %s39 = sphi 0, %s23
      %s43 = sphi 0, %s43
      %s45 = sphi 0, %s43
      %s46 = sphi 0, %s45
      %s60 = sphi 0, %s46
      %s64 = sphi 0, %s64
      %s66 = sphi 0, %s64
      %s67 = sphi 0, %s66
      %s81 = sphi 0, %s67
      %s87 = sphi 0, %s89
      %s90 = sphi 0, %s87
      %s91 = sphi 0, %s90
      %s107 = sphi 0, %s91
    $region4: #{lenet5_forward.2} parent=1 // loop_header_branch
      %12 = sbr.rel (%p10) target = $region8
    $region5: #{lenet5_forward.2} parent=1 // loop_body
      %s14 = ssub.s32 %s9, 1
      %s15 = ssub.s32 %s9, 2
      %s16 = sadd.s32 %s9, 1
      %s17 = ssub.s32 %s9, %s16
      %p18 = scmp.eq.s32.totalorder %s17, 0
      %s20 = sadd.s32 %s19, 1
      %s21 = scalar_select %p18, %s19, %s20
      %p24 = pneg %p18
      %p25 = scmp.eq.s32.totalorder %s9, 1
      %p26 = por %p24, %p25
      %p27 = scmp.ne.s32.totalorder %s19, %s22
      %p28 = scmp.eq.s32.totalorder %s9, 0
      %p29 = por %p27, %p28
      %p30 = scmp.ne.s32.totalorder %s19, %s22
      %p31 = scmp.eq.s32.totalorder %s14, 1
      %p32 = por %p30, %p31
      %p33 = scmp.ne.s32.totalorder %s22, %s23
      %p34 = scmp.eq.s32.totalorder %s14, 0
      %p35 = por %p33, %p34
      %p36 = scmp.ne.s32.totalorder %s22, %s23
      %p37 = scmp.eq.s32.totalorder %s15, 1
      %p38 = por %p36, %p37
      %p40 = scmp.ne.s32.totalorder %s23, %s39
      %p41 = scmp.eq.s32.totalorder %s15, 0
      %p42 = por %p40, %p41
      %s44 = sadd.s32 %s43, 1
      %p47 = scmp.eq.s32.totalorder %s9, 1
      %p48 = scmp.ne.s32.totalorder %s43, %s45
      %p49 = scmp.eq.s32.totalorder %s9, 0
      %p50 = por %p48, %p49
      %p51 = scmp.ne.s32.totalorder %s43, %s45
      %p52 = scmp.eq.s32.totalorder %s14, 1
      %p53 = por %p51, %p52
      %p54 = scmp.ne.s32.totalorder %s45, %s46
      %p55 = scmp.eq.s32.totalorder %s14, 0
      %p56 = por %p54, %p55
      %p57 = scmp.ne.s32.totalorder %s45, %s46
      %p58 = scmp.eq.s32.totalorder %s15, 1
      %p59 = por %p57, %p58
      %p61 = scmp.ne.s32.totalorder %s46, %s60
      %p62 = scmp.eq.s32.totalorder %s15, 0
      %p63 = por %p61, %p62
      %s65 = sadd.s32 %s64, 1
      %p68 = scmp.eq.s32.totalorder %s9, 1
      %p69 = scmp.ne.s32.totalorder %s64, %s66
      %p70 = scmp.eq.s32.totalorder %s9, 0
      %p71 = por %p69, %p70
      %p72 = scmp.ne.s32.totalorder %s64, %s66
      %p73 = scmp.eq.s32.totalorder %s14, 1
      %p74 = por %p72, %p73
      %p75 = scmp.ne.s32.totalorder %s66, %s67
      %p76 = scmp.eq.s32.totalorder %s14, 0
      %p77 = por %p75, %p76
      %p78 = scmp.ne.s32.totalorder %s66, %s67
      %p79 = scmp.eq.s32.totalorder %s15, 1
      %p80 = por %p78, %p79
      %p82 = scmp.ne.s32.totalorder %s67, %s81
      %p83 = scmp.eq.s32.totalorder %s15, 0
      %p84 = por %p82, %p83
      %s85 = ssub.s32 %s9, %s16
      %p86 = scmp.eq.s32.totalorder %s85, 0
      %s88 = sadd.s32 %s87, 1
      %s89 = scalar_select %p86, %s87, %s88
      %p92 = pneg %p86
      %p93 = scmp.eq.s32.totalorder %s9, 1
      %p94 = por %p92, %p93
      %p95 = scmp.ne.s32.totalorder %s87, %s90
      %p96 = scmp.eq.s32.totalorder %s9, 0
      %p97 = por %p95, %p96
      %p98 = scmp.ne.s32.totalorder %s87, %s90
      %p99 = scmp.eq.s32.totalorder %s14, 1
      %p100 = por %p98, %p99
      %p101 = scmp.ne.s32.totalorder %s90, %s91
      %p102 = scmp.eq.s32.totalorder %s14, 0
      %p103 = por %p101, %p102
      %p104 = scmp.ne.s32.totalorder %s90, %s91
      %p105 = scmp.eq.s32.totalorder %s15, 1
      %p106 = por %p104, %p105
      %p108 = scmp.ne.s32.totalorder %s91, %s107
      %p109 = scmp.eq.s32.totalorder %s15, 0
      %p110 = por %p108, %p109
      %p111 = scmp.le.s32.totalorder 1, %s9
      %p112 = scmp.lt.s32.totalorder %s9, 3
      %p113 = pnand %p111, %p112
      %p114 = pneg %p113
      // Predicated region
      $region9: #{lenet5_forward.2} parent=5 // pred_check
        _
      $region10: #{lenet5_forward.2} parent=5 // pred_check_branch
        %116 = sbr.rel (%p113) target = $region12
      $region11: #{lenet5_forward.2} parent=5 // pred_region
        %s117 = ssub.s32 %s9, 1
        // Predicated region
        $region13: #{lenet5_forward.2} parent=11 // pred_check
          %p118 = pneg %p56
        $region14: #{lenet5_forward.2} parent=11 // pred_check_branch
          %120 = sbr.rel (%p118) target = $region16
        $region15: #{lenet5_forward.2} parent=11 // pred_region
          _
        $region16: #{lenet5_forward.2} parent=11 // pred_fallthru
          _
        // Predicated region
        $region17: #{lenet5_forward.2} parent=11 // pred_check
          %p121 = pneg %p77
        $region18: #{lenet5_forward.2} parent=11 // pred_check_branch
          %123 = sbr.rel (%p121) target = $region20
        $region19: #{lenet5_forward.2} parent=11 // pred_region
          _
        $region20: #{lenet5_forward.2} parent=11 // pred_fallthru
          _
      $region12: #{lenet5_forward.2} parent=5 // pred_fallthru
        _
      %p124 = scmp.lt.s32.totalorder %s9, 2
      // Predicated region
      $region21: #{lenet5_forward.2} parent=5 // pred_check
        %p125 = pneg %p124
      $region22: #{lenet5_forward.2} parent=5 // pred_check_branch
        %127 = sbr.rel (%p125) target = $region24
      $region23: #{lenet5_forward.2} parent=5 // pred_region
        // Predicated region
        $region25: #{lenet5_forward.2} parent=23 // pred_check
          %p128 = pneg %p29
        $region26: #{lenet5_forward.2} parent=23 // pred_check_branch
          %130 = sbr.rel (%p128) target = $region28
        $region27: #{lenet5_forward.2} parent=23 // pred_region
          %s131 = sand.u32 %s19, 1
          %s132 = sand.u32 %s19, 1
          %s133 = smul.addr %s132, 576
          %s134 = scalar_lea.vmem [#allocation2], %s133
          %s135 = smul.u32 9, %s9
          %s136 = smul.addr %s135, 4
          %s137 = scalar_lea.vmem %s0, %s136
          // Predicated region
          $region29: #{lenet5_forward.2} parent=27 // pred_check
            _
          $region30: #{lenet5_forward.2} parent=27 // pred_check_branch
            %139 = sbr.rel (0) target = $region32
          $region31: #{lenet5_forward.2} parent=27 // pred_region
            // Predicated region
            $region33: #{lenet5_forward.2} parent=31 // pred_check
              _
            $region34: #{lenet5_forward.2} parent=31 // pred_check_branch
              %141 = sbr.rel (0) target = $region36
            $region35: #{lenet5_forward.2} parent=31 // pred_region
              %s142 = scalar_lea.vmem %s137, 32
              %s143 = scalar_lea.vmem %s134, 32 [#allocation2]
              loop: start=0, step=1, limit=1
              $region37: #{lenet5_forward.2} parent=35 // loop_pre_header
                _
              $region38: #{lenet5_forward.2} parent=35 // loop_header
                %s145 = sphi 0, %s149
                %p146 = scmp.ge.s32.totalorder %s145, 1
                %s150 = sphi %s137, %s137
                %s151 = sphi %s134, %s134
              $region39: #{lenet5_forward.2} parent=35 // loop_header_branch
                %148 = sbr.rel (%p146) target = $region43
              $region40: #{lenet5_forward.2} parent=35 // loop_body
                %v152 = vld [vmem:[%s150] sm:$0xff]
                %153 = vst [vmem:[%s151] sm:$0xff] %v152
                %v154 = vld [vmem:[%s150 + $0x8] sm:$0xff]
                %155 = vst [vmem:[%s151 + $0x8] sm:$0xff] %v154
                %v156 = vld [vmem:[%s150 + $0x10] sm:$0xff]
                %157 = vst [vmem:[%s151 + $0x10] sm:$0xff] %v156
                %v158 = vld [vmem:[%s150 + $0x18] sm:$0xff]
                %159 = vst [vmem:[%s151 + $0x18] sm:$0xff] %v158
                %v160 = vld [vmem:[%s150 + $0x48] sm:$0xff]
                %161 = vst [vmem:[%s151 + $0x24] sm:$0xff] %v160
                %v162 = vld [vmem:[%s150 + $0x50] sm:$0xff]
                %163 = vst [vmem:[%s151 + $0x2c] sm:$0xff] %v162
                %v164 = vld [vmem:[%s150 + $0x58] sm:$0xff]
                %165 = vst [vmem:[%s151 + $0x34] sm:$0xff] %v164
                %v166 = vld [vmem:[%s150 + $0x60] sm:$0xff]
                %167 = vst [vmem:[%s151 + $0x3c] sm:$0xff] %v166
                %v168 = vld [vmem:[%s150 + $0x90] sm:$0xff]
                %169 = vst [vmem:[%s151 + $0x48] sm:$0xff] %v168
                %v170 = vld [vmem:[%s150 + $0x98] sm:$0xff]
                %171 = vst [vmem:[%s151 + $0x50] sm:$0xff] %v170
                %v172 = vld [vmem:[%s150 + $0xa0] sm:$0xff]
                %173 = vst [vmem:[%s151 + $0x58] sm:$0xff] %v172
                %v174 = vld [vmem:[%s150 + $0xa8] sm:$0xff]
                %175 = vst [vmem:[%s151 + $0x60] sm:$0xff] %v174
                %v176 = vld [vmem:[%s150 + $0xd8] sm:$0xff]
                %177 = vst [vmem:[%s151 + $0x6c] sm:$0xff] %v176
                %v178 = vld [vmem:[%s150 + $0xe0] sm:$0xff]
                %179 = vst [vmem:[%s151 + $0x74] sm:$0xff] %v178
                %v180 = vld [vmem:[%s150 + $0xe8] sm:$0xff]
                %181 = vst [vmem:[%s151 + $0x7c] sm:$0xff] %v180
                %v182 = vld [vmem:[%s150 + $0xf0] sm:$0xff]
                %183 = vst [vmem:[%s151 + $0x84] sm:$0xff] %v182
                %v184 = vld [vmem:[%s150 + $0x120] sm:$0xff]
                %185 = vst [vmem:[%s151 + $0x90] sm:$0xff] %v184
                %v186 = vld [vmem:[%s150 + $0x128] sm:$0xff]
                %187 = vst [vmem:[%s151 + $0x98] sm:$0xff] %v186
                %v188 = vld [vmem:[%s150 + $0x130] sm:$0xff]
                %189 = vst [vmem:[%s151 + $0xa0] sm:$0xff] %v188
                %v190 = vld [vmem:[%s150 + $0x138] sm:$0xff]
                %191 = vst [vmem:[%s151 + $0xa8] sm:$0xff] %v190
                %v192 = vld [vmem:[%s150 + $0x168] sm:$0xff]
                %193 = vst [vmem:[%s151 + $0xb4] sm:$0xff] %v192
                %v194 = vld [vmem:[%s150 + $0x170] sm:$0xff]
                %195 = vst [vmem:[%s151 + $0xbc] sm:$0xff] %v194
                %v196 = vld [vmem:[%s150 + $0x178] sm:$0xff]
                %197 = vst [vmem:[%s151 + $0xc4] sm:$0xff] %v196
                %v198 = vld [vmem:[%s150 + $0x180] sm:$0xff]
                %199 = vst [vmem:[%s151 + $0xcc] sm:$0xff] %v198
                %v200 = vld [vmem:[%s150 + $0x1b0] sm:$0xff]
                %201 = vst [vmem:[%s151 + $0xd8] sm:$0xff] %v200
                %v202 = vld [vmem:[%s150 + $0x1b8] sm:$0xff]
                %203 = vst [vmem:[%s151 + $0xe0] sm:$0xff] %v202
                %v204 = vld [vmem:[%s150 + $0x1c0] sm:$0xff]
                %205 = vst [vmem:[%s151 + $0xe8] sm:$0xff] %v204
                %v206 = vld [vmem:[%s150 + $0x1c8] sm:$0xff]
                %207 = vst [vmem:[%s151 + $0xf0] sm:$0xff] %v206
                %v208 = vld [vmem:[%s150 + $0x1f8] sm:$0xff]
                %209 = vst [vmem:[%s151 + $0xfc] sm:$0xff] %v208
                %v210 = vld [vmem:[%s150 + $0x200] sm:$0xff]
                %211 = vst [vmem:[%s151 + $0x104] sm:$0xff] %v210
                %v212 = vld [vmem:[%s150 + $0x208] sm:$0xff]
                %213 = vst [vmem:[%s151 + $0x10c] sm:$0xff] %v212
                %v214 = vld [vmem:[%s150 + $0x210] sm:$0xff]
                %215 = vst [vmem:[%s151 + $0x114] sm:$0xff] %v214
                %v216 = vld [vmem:[%s150 + $0x240] sm:$0xff]
                %217 = vst [vmem:[%s151 + $0x120] sm:$0xff] %v216
                %v218 = vld [vmem:[%s150 + $0x248] sm:$0xff]
                %219 = vst [vmem:[%s151 + $0x128] sm:$0xff] %v218
                %v220 = vld [vmem:[%s150 + $0x250] sm:$0xff]
                %221 = vst [vmem:[%s151 + $0x130] sm:$0xff] %v220
                %v222 = vld [vmem:[%s150 + $0x258] sm:$0xff]
                %223 = vst [vmem:[%s151 + $0x138] sm:$0xff] %v222
                %v224 = vld [vmem:[%s150 + $0x288] sm:$0xff]
                %225 = vst [vmem:[%s151 + $0x144] sm:$0xff] %v224
                %v226 = vld [vmem:[%s150 + $0x290] sm:$0xff]
                %227 = vst [vmem:[%s151 + $0x14c] sm:$0xff] %v226
                %v228 = vld [vmem:[%s150 + $0x298] sm:$0xff]
                %229 = vst [vmem:[%s151 + $0x154] sm:$0xff] %v228
                %v230 = vld [vmem:[%s150 + $0x2a0] sm:$0xff]
                %231 = vst [vmem:[%s151 + $0x15c] sm:$0xff] %v230
                %v232 = vld [vmem:[%s150 + $0x2d0] sm:$0xff]
                %233 = vst [vmem:[%s151 + $0x168] sm:$0xff] %v232
                %v234 = vld [vmem:[%s150 + $0x2d8] sm:$0xff]
                %235 = vst [vmem:[%s151 + $0x170] sm:$0xff] %v234
                %v236 = vld [vmem:[%s150 + $0x2e0] sm:$0xff]
                %237 = vst [vmem:[%s151 + $0x178] sm:$0xff] %v236
                %v238 = vld [vmem:[%s150 + $0x2e8] sm:$0xff]
                %239 = vst [vmem:[%s151 + $0x180] sm:$0xff] %v238
                %v240 = vld [vmem:[%s150 + $0x318] sm:$0xff]
                %241 = vst [vmem:[%s151 + $0x18c] sm:$0xff] %v240
                %v242 = vld [vmem:[%s150 + $0x320] sm:$0xff]
                %243 = vst [vmem:[%s151 + $0x194] sm:$0xff] %v242
                %v244 = vld [vmem:[%s150 + $0x328] sm:$0xff]
                %245 = vst [vmem:[%s151 + $0x19c] sm:$0xff] %v244
                %v246 = vld [vmem:[%s150 + $0x330] sm:$0xff]
                %247 = vst [vmem:[%s151 + $0x1a4] sm:$0xff] %v246
                %v248 = vld [vmem:[%s150 + $0x360] sm:$0xff]
                %249 = vst [vmem:[%s151 + $0x1b0] sm:$0xff] %v248
                %v250 = vld [vmem:[%s150 + $0x368] sm:$0xff]
                %251 = vst [vmem:[%s151 + $0x1b8] sm:$0xff] %v250
                %v252 = vld [vmem:[%s150 + $0x370] sm:$0xff]
                %253 = vst [vmem:[%s151 + $0x1c0] sm:$0xff] %v252
                %v254 = vld [vmem:[%s150 + $0x378] sm:$0xff]
                %255 = vst [vmem:[%s151 + $0x1c8] sm:$0xff] %v254
                %v256 = vld [vmem:[%s150 + $0x3a8] sm:$0xff]
                %257 = vst [vmem:[%s151 + $0x1d4] sm:$0xff] %v256
                %v258 = vld [vmem:[%s150 + $0x3b0] sm:$0xff]
                %259 = vst [vmem:[%s151 + $0x1dc] sm:$0xff] %v258
                %v260 = vld [vmem:[%s150 + $0x3b8] sm:$0xff]
                %261 = vst [vmem:[%s151 + $0x1e4] sm:$0xff] %v260
                %v262 = vld [vmem:[%s150 + $0x3c0] sm:$0xff]
                %263 = vst [vmem:[%s151 + $0x1ec] sm:$0xff] %v262
                %v264 = vld [vmem:[%s150 + $0x3f0] sm:$0xff]
                %265 = vst [vmem:[%s151 + $0x1f8] sm:$0xff] %v264
                %v266 = vld [vmem:[%s150 + $0x3f8] sm:$0xff]
                %267 = vst [vmem:[%s151 + $0x200] sm:$0xff] %v266
                %v268 = vld [vmem:[%s150 + $0x400] sm:$0xff]
                %269 = vst [vmem:[%s151 + $0x208] sm:$0xff] %v268
                %v270 = vld [vmem:[%s150 + $0x408] sm:$0xff]
                %271 = vst [vmem:[%s151 + $0x210] sm:$0xff] %v270
                %v272 = vld [vmem:[%s150 + $0x438] sm:$0xff]
                %273 = vst [vmem:[%s151 + $0x21c] sm:$0xff] %v272
                %v274 = vld [vmem:[%s150 + $0x440] sm:$0xff]
                %275 = vst [vmem:[%s151 + $0x224] sm:$0xff] %v274
                %v276 = vld [vmem:[%s150 + $0x448] sm:$0xff]
                %277 = vst [vmem:[%s151 + $0x22c] sm:$0xff] %v276
                %v278 = vld [vmem:[%s150 + $0x450] sm:$0xff]
                %279 = vst [vmem:[%s151 + $0x234] sm:$0xff] %v278
              $region41: #{lenet5_forward.2} parent=35 // loop_footer
                %s149 = sadd.s32 1, %s145
              $region42: #{lenet5_forward.2} parent=35 // loop_footer_branch
                %144 = sbr.rel target = $region38
              $region43: #{lenet5_forward.2} parent=35 // loop_exit
                _
              loop: start=0, step=1, limit=1
              $region44: #{lenet5_forward.2} parent=35 // loop_pre_header
                _
              $region45: #{lenet5_forward.2} parent=35 // loop_header
                %s282 = sphi 0, %s286
                %p283 = scmp.ge.s32.totalorder %s282, 1
                %s287 = sphi %s142, %s142
                %s288 = sphi %s143, %s143
              $region46: #{lenet5_forward.2} parent=35 // loop_header_branch
                %285 = sbr.rel (%p283) target = $region50
              $region47: #{lenet5_forward.2} parent=35 // loop_body
                %v289 = vld [vmem:[%s287] sm:$0xf]
                %290 = vst [vmem:[%s288] sm:$0xf] %v289
                %v291 = vld [vmem:[%s287 + $0x48] sm:$0xf]
                %292 = vst [vmem:[%s288 + $0x24] sm:$0xf] %v291
                %v293 = vld [vmem:[%s287 + $0x90] sm:$0xf]
                %294 = vst [vmem:[%s288 + $0x48] sm:$0xf] %v293
                %v295 = vld [vmem:[%s287 + $0xd8] sm:$0xf]
                %296 = vst [vmem:[%s288 + $0x6c] sm:$0xf] %v295
                %v297 = vld [vmem:[%s287 + $0x120] sm:$0xf]
                %298 = vst [vmem:[%s288 + $0x90] sm:$0xf] %v297
                %v299 = vld [vmem:[%s287 + $0x168] sm:$0xf]
                %300 = vst [vmem:[%s288 + $0xb4] sm:$0xf] %v299
                %v301 = vld [vmem:[%s287 + $0x1b0] sm:$0xf]
                %302 = vst [vmem:[%s288 + $0xd8] sm:$0xf] %v301
                %v303 = vld [vmem:[%s287 + $0x1f8] sm:$0xf]
                %304 = vst [vmem:[%s288 + $0xfc] sm:$0xf] %v303
                %v305 = vld [vmem:[%s287 + $0x240] sm:$0xf]
                %306 = vst [vmem:[%s288 + $0x120] sm:$0xf] %v305
                %v307 = vld [vmem:[%s287 + $0x288] sm:$0xf]
                %308 = vst [vmem:[%s288 + $0x144] sm:$0xf] %v307
                %v309 = vld [vmem:[%s287 + $0x2d0] sm:$0xf]
                %310 = vst [vmem:[%s288 + $0x168] sm:$0xf] %v309
                %v311 = vld [vmem:[%s287 + $0x318] sm:$0xf]
                %312 = vst [vmem:[%s288 + $0x18c] sm:$0xf] %v311
                %v313 = vld [vmem:[%s287 + $0x360] sm:$0xf]
                %314 = vst [vmem:[%s288 + $0x1b0] sm:$0xf] %v313
                %v315 = vld [vmem:[%s287 + $0x3a8] sm:$0xf]
                %316 = vst [vmem:[%s288 + $0x1d4] sm:$0xf] %v315
                %v317 = vld [vmem:[%s287 + $0x3f0] sm:$0xf]
                %318 = vst [vmem:[%s288 + $0x1f8] sm:$0xf] %v317
                %v319 = vld [vmem:[%s287 + $0x438] sm:$0xf]
                %320 = vst [vmem:[%s288 + $0x21c] sm:$0xf] %v319
              $region48: #{lenet5_forward.2} parent=35 // loop_footer
                %s286 = sadd.s32 1, %s282
              $region49: #{lenet5_forward.2} parent=35 // loop_footer_branch
                %281 = sbr.rel target = $region45
              $region50: #{lenet5_forward.2} parent=35 // loop_exit
                _
            $region36: #{lenet5_forward.2} parent=31 // pred_fallthru
              _
          $region32: #{lenet5_forward.2} parent=27 // pred_fallthru
            _
          %321 = vnop
        $region28: #{lenet5_forward.2} parent=23 // pred_fallthru
          _
      $region24: #{lenet5_forward.2} parent=5 // pred_fallthru
        _
      %p322 = scmp.le.s32.totalorder 1, %s9
      %p323 = scmp.lt.s32.totalorder %s9, 3
      %p324 = pnand %p322, %p323
      %p325 = pneg %p324
      // Predicated region
      $region51: #{lenet5_forward.2} parent=5 // pred_check
        _
      $region52: #{lenet5_forward.2} parent=5 // pred_check_branch
        %327 = sbr.rel (%p324) target = $region54
      $region53: #{lenet5_forward.2} parent=5 // pred_region
        %s328 = ssub.s32 %s9, 1
        %s329 = sand.u32 %s22, 1
        %s330 = sand.u32 %s22, 1
        %s331 = smul.addr %s330, 576
        %s332 = scalar_lea.vmem [#allocation2], %s331
        // Predicated region
        $region55: #{lenet5_forward.2} parent=53 // pred_check
          %p333 = pneg %p35
        $region56: #{lenet5_forward.2} parent=53 // pred_check_branch
          %335 = sbr.rel (%p333) target = $region58
        $region57: #{lenet5_forward.2} parent=53 // pred_region
          _
        $region58: #{lenet5_forward.2} parent=53 // pred_fallthru
          _
        %s336 = sand.u32 %s22, 1
        %s337 = sand.u32 %s22, 1
        %s338 = smul.addr %s337, 576
        %s339 = scalar_lea.vmem [#allocation2], %s338
        %p340 = pneg %p35
        %p341 = pneg %p32
        %p342 = pneg %p56
        %p343 = pneg %p53
        %p344 = pneg %p77
        %p345 = pneg %p74
        %p346 = pneg %p103
        %p347 = pneg %p100
        %s348 = smul.u32 9, %s14
        %p349 = scmp.lt.s32.totalorder %s348, 17
        %s350 = scalar_select %p349, %s348, 17
        %s351 = smul.addr %s350, 4
        %s352 = scalar_lea.vmem %s3, %s351
        %s353 = smul.u32 9, %s14
        %s354 = smul.u32 9, %s14
        %p355 = scmp.lt.s32.totalorder %s354, 17
        %s356 = scalar_select %p355, %s354, 17
        %s357 = smul.addr %s356, 4
        %s358 = scalar_lea.vmem %s3, %s357
        %s359 = smul.u32 9, %s14
        %v361 = vld [vmem:[%s1] sm:$0x7]
        %v362 = vld [vmem:[%s332] sm:$0xff]
        %v363 = vld [vmem:[%s332 + $0x8] sm:$0xff]
        %v364 = vld [vmem:[%s332 + $0x10] sm:$0xff]
        %v365 = vld [vmem:[%s332 + $0x18] sm:$0xff]
        %v366 = vld [vmem:[%s332 + $0x20] sm:$0xf]
        %v367 = vld [vmem:[%s332 + $0x24] sm:$0xff]
        %v368 = vld [vmem:[%s332 + $0x2c] sm:$0xff]
        %v369 = vld [vmem:[%s332 + $0x34] sm:$0xff]
        %v370 = vld [vmem:[%s332 + $0x3c] sm:$0xff]
        %v371 = vld [vmem:[%s332 + $0x44] sm:$0xf]
        %v372 = vld [vmem:[%s332 + $0x48] sm:$0xff]
        %v373 = vld [vmem:[%s332 + $0x50] sm:$0xff]
        %v374 = vld [vmem:[%s332 + $0x58] sm:$0xff]
        %v375 = vld [vmem:[%s332 + $0x60] sm:$0xff]
        %v376 = vld [vmem:[%s332 + $0x68] sm:$0xf]
        %v377 = vld [vmem:[%s332 + $0x6c] sm:$0x11]
        %v378 = vld [vmem:[%s332 + $0x74] sm:$0x11]
        %v379 = vld [vmem:[%s332 + $0x7c] sm:$0x11]
        %v380 = vld [vmem:[%s332 + $0x84] sm:$0x11]
        %v381 = vld [vmem:[%s332 + $0x8c] sm:$0x1]
        %v402 = vunpack.c.l.b16 %v362
        %v403 = vunpack.c.h.b16 %v362
        %v404 = vunpack.c.l.b16 %v363
        %v405 = vunpack.c.h.b16 %v363
        %v406 = vunpack.c.l.b16 %v364
        %v407 = vunpack.c.h.b16 %v364
        %v408 = vunpack.c.l.b16 %v365
        %v409 = vunpack.c.h.b16 %v365
        %v410 = vunpack.c.l.b16 %v366
        %v411 = vunpack.c.l.b16 %v367
        %v412 = vunpack.c.h.b16 %v367
        %v413 = vunpack.c.l.b16 %v368
        %v414 = vunpack.c.h.b16 %v368
        %v415 = vunpack.c.l.b16 %v369
        %v416 = vunpack.c.h.b16 %v369
        %v417 = vunpack.c.l.b16 %v370
        %v418 = vunpack.c.h.b16 %v370
        %v419 = vunpack.c.l.b16 %v371
        %v420 = vunpack.c.l.b16 %v372
        %v421 = vunpack.c.h.b16 %v372
        %v422 = vunpack.c.l.b16 %v373
        %v423 = vunpack.c.h.b16 %v373
        %v424 = vunpack.c.l.b16 %v374
        %v425 = vunpack.c.h.b16 %v374
        %v426 = vunpack.c.l.b16 %v375
        %v427 = vunpack.c.h.b16 %v375
        %v428 = vunpack.c.l.b16 %v376
        %v429 = vunpack.c.l.b16 %v377
        %v430 = vunpack.c.h.b16 %v377
        %v431 = vunpack.c.l.b16 %v378
        %v432 = vunpack.c.h.b16 %v378
        %v433 = vunpack.c.l.b16 %v379
        %v434 = vunpack.c.h.b16 %v379
        %v435 = vunpack.c.l.b16 %v380
        %v436 = vunpack.c.h.b16 %v380
        %v437 = vunpack.c.l.b16 %v381
        %v438 = vpack.c.b16 %v411, %v402
        %v439 = vpack.c.b16 %v412, %v403
        %v440 = vpack.c.b16 %v413, %v404
        %v441 = vpack.c.b16 %v414, %v405
        %v442 = vpack.c.b16 %v415, %v406
        %v443 = vpack.c.b16 %v416, %v407
        %v444 = vpack.c.b16 %v417, %v408
        %v445 = vpack.c.b16 %v418, %v409
        %v446 = vpack.c.b16 %v419, %v410
        %v447 = vpack.c.b16 %v429, %v420
        %v448 = vpack.c.b16 %v430, %v421
        %v449 = vpack.c.b16 %v431, %v422
        %v450 = vpack.c.b16 %v432, %v423
        %v451 = vpack.c.b16 %v433, %v424
        %v452 = vpack.c.b16 %v434, %v425
        %v453 = vpack.c.b16 %v435, %v426
        %v454 = vpack.c.b16 %v436, %v427
        %v455 = vpack.c.b16 %v437, %v428
        %vm465 = vcmask 203776
        %v467 = vsel %vm465, %v361, 0
        %vm469 = vcmask 1043456
        %vm470 = vcmask 1044480
        %v471 = vsel %vm469, 4294967295, 65535
        %v472 = vsel %vm470, %v471, 0
        %v474 = vand.u32 %v447, %v472
        %v477 = vand.u32 %v448, %v472
        %v480 = vand.u32 %v449, %v472
        %v483 = vand.u32 %v450, %v472
        %v486 = vand.u32 %v451, %v472
        %v489 = vand.u32 %v452, %v472
        %v492 = vand.u32 %v453, %v472
        %v495 = vand.u32 %v454, %v472
        %v498 = vand.u32 %v455, %v472
        %500 = vmatprep.subr.bf16.mxu0 %v439
        %501 = vmatpush1.bf16.msra.mxu0 %v438
        %502 = vmatprep.subr.bf16.mxu0 %v477
        %503 = vmatpush1.bf16.msra.mxu0 %v474
        %504 = vmatprep.subr.bf16.mxu0 0
        %505 = vmatpush1.bf16.msra.mxu0 0
        %506 = vmatprep.subr.bf16.mxu0 0
        %507 = vmatpush1.bf16.msra.mxu0 0
        %508 = vmatprep.subr.bf16.mxu0 0
        %509 = vmatpush1.bf16.msra.mxu0 0
        %510 = vmatprep.subr.bf16.mxu0 0
        %511 = vmatpush1.bf16.msra.mxu0 0
        %512 = vmatprep.subr.bf16.mxu0 0
        %513 = vmatpush1.bf16.msra.mxu0 0
        %514 = vmatprep.subr.bf16.mxu0 0
        %515 = vmatpush1.bf16.msra.mxu0 0
        %516 = vmatprep.subr.bf16.mxu0 0
        %517 = vmatpush1.bf16.msra.mxu0 0
        %518 = vmatprep.subr.bf16.mxu0 0
        %519 = vmatpush1.bf16.msra.mxu0 0
        %520 = vmatprep.subr.bf16.mxu0 0
        %521 = vmatpush1.bf16.msra.mxu0 0
        %522 = vmatprep.subr.bf16.mxu0 0
        %523 = vmatpush1.bf16.msra.mxu0 0
        %524 = vmatprep.subr.bf16.mxu0 0
        %525 = vmatpush1.bf16.msra.mxu0 0
        %526 = vmatprep.subr.bf16.mxu0 0
        %527 = vmatpush1.bf16.msra.mxu0 0
        %528 = vmatprep.subr.bf16.mxu0 0
        %529 = vmatpush1.bf16.msra.mxu0 0
        %530 = vmatprep.subr.bf16.mxu0 0
        %531 = vmatpush1.bf16.msra.mxu0 0
        %532 = vmatprep.mubr.bf16.mxu0 0
        %533 = vmatmul.mubr.bf16.gmra.mrb[0].mxu0 %v467
        %v534 = vpop.f32.mrb[0].mxu0
        %v535 = vadd.f32 0.0, %v534
        %v536 = vpop.f32.mrb[0].mxu0
        %v537 = vadd.f32 0.0, %v536
        %v538 = vpop.f32.mrb[0].mxu0
        %v539 = vpop.f32.mrb[0].mxu0
        %540 = vdwg.mxu0
        %541 = vmatprep.subr.bf16.mxu0 %v441
        %542 = vmatpush1.bf16.msra.mxu0 %v440
        %543 = vmatprep.subr.bf16.mxu0 %v483
        %544 = vmatpush1.bf16.msra.mxu0 %v480
        %545 = vmatprep.subr.bf16.mxu0 0
        %546 = vmatpush1.bf16.msra.mxu0 0
        %547 = vmatprep.subr.bf16.mxu0 0
        %548 = vmatpush1.bf16.msra.mxu0 0
        %549 = vmatprep.subr.bf16.mxu0 0
        %550 = vmatpush1.bf16.msra.mxu0 0
        %551 = vmatprep.subr.bf16.mxu0 0
        %552 = vmatpush1.bf16.msra.mxu0 0
        %553 = vmatprep.subr.bf16.mxu0 0
        %554 = vmatpush1.bf16.msra.mxu0 0
        %555 = vmatprep.subr.bf16.mxu0 0
        %556 = vmatpush1.bf16.msra.mxu0 0
        %557 = vmatprep.subr.bf16.mxu0 0
        %558 = vmatpush1.bf16.msra.mxu0 0
        %559 = vmatprep.subr.bf16.mxu0 0
        %560 = vmatpush1.bf16.msra.mxu0 0
        %561 = vmatprep.subr.bf16.mxu0 0
        %562 = vmatpush1.bf16.msra.mxu0 0
        %563 = vmatprep.subr.bf16.mxu0 0
        %564 = vmatpush1.bf16.msra.mxu0 0
        %565 = vmatprep.subr.bf16.mxu0 0
        %566 = vmatpush1.bf16.msra.mxu0 0
        %567 = vmatprep.subr.bf16.mxu0 0
        %568 = vmatpush1.bf16.msra.mxu0 0
        %569 = vmatprep.subr.bf16.mxu0 0
        %570 = vmatpush1.bf16.msra.mxu0 0
        %571 = vmatprep.subr.bf16.mxu0 0
        %572 = vmatpush1.bf16.msra.mxu0 0
        %573 = vmatprep.mubr.bf16.mxu0 0
        %574 = vmatmul.mubr.bf16.gmra.mrb[0].mxu0 %v467
        %v575 = vpop.f32.mrb[0].mxu0
        %v576 = vadd.f32 0.0, %v575
        %v577 = vpop.f32.mrb[0].mxu0
        %v578 = vadd.f32 0.0, %v577
        %v579 = vpop.f32.mrb[0].mxu0
        %v580 = vpop.f32.mrb[0].mxu0
        %581 = vdwg.mxu0
        %582 = vmatprep.subr.bf16.mxu0 %v443
        %583 = vmatpush1.bf16.msra.mxu0 %v442
        %584 = vmatprep.subr.bf16.mxu0 %v489
        %585 = vmatpush1.bf16.msra.mxu0 %v486
        %586 = vmatprep.subr.bf16.mxu0 0
        %587 = vmatpush1.bf16.msra.mxu0 0
        %588 = vmatprep.subr.bf16.mxu0 0
        %589 = vmatpush1.bf16.msra.mxu0 0
        %590 = vmatprep.subr.bf16.mxu0 0
        %591 = vmatpush1.bf16.msra.mxu0 0
        %592 = vmatprep.subr.bf16.mxu0 0
        %593 = vmatpush1.bf16.msra.mxu0 0
        %594 = vmatprep.subr.bf16.mxu0 0
        %595 = vmatpush1.bf16.msra.mxu0 0
        %596 = vmatprep.subr.bf16.mxu0 0
        %597 = vmatpush1.bf16.msra.mxu0 0
        %598 = vmatprep.subr.bf16.mxu0 0
        %599 = vmatpush1.bf16.msra.mxu0 0
        %600 = vmatprep.subr.bf16.mxu0 0
        %601 = vmatpush1.bf16.msra.mxu0 0
        %602 = vmatprep.subr.bf16.mxu0 0
        %603 = vmatpush1.bf16.msra.mxu0 0
        %604 = vmatprep.subr.bf16.mxu0 0
        %605 = vmatpush1.bf16.msra.mxu0 0
        %606 = vmatprep.subr.bf16.mxu0 0
        %607 = vmatpush1.bf16.msra.mxu0 0
        %608 = vmatprep.subr.bf16.mxu0 0
        %609 = vmatpush1.bf16.msra.mxu0 0
        %610 = vmatprep.subr.bf16.mxu0 0
        %611 = vmatpush1.bf16.msra.mxu0 0
        %612 = vmatprep.subr.bf16.mxu0 0
        %613 = vmatpush1.bf16.msra.mxu0 0
        %614 = vmatprep.mubr.bf16.mxu0 0
        %615 = vmatmul.mubr.bf16.gmra.mrb[0].mxu0 %v467
        %v616 = vpop.f32.mrb[0].mxu0
        %v617 = vadd.f32 0.0, %v616
        %v618 = vpop.f32.mrb[0].mxu0
        %v619 = vadd.f32 0.0, %v618
        %v620 = vpop.f32.mrb[0].mxu0
        %v621 = vpop.f32.mrb[0].mxu0
        %622 = vdwg.mxu0
        %623 = vmatprep.subr.bf16.mxu0 %v445
        %624 = vmatpush1.bf16.msra.mxu0 %v444
        %625 = vmatprep.subr.bf16.mxu0 %v495
        %626 = vmatpush1.bf16.msra.mxu0 %v492
        %627 = vmatprep.subr.bf16.mxu0 0
        %628 = vmatpush1.bf16.msra.mxu0 0
        %629 = vmatprep.subr.bf16.mxu0 0
        %630 = vmatpush1.bf16.msra.mxu0 0
        %631 = vmatprep.subr.bf16.mxu0 0
        %632 = vmatpush1.bf16.msra.mxu0 0
        %633 = vmatprep.subr.bf16.mxu0 0
        %634 = vmatpush1.bf16.msra.mxu0 0
        %635 = vmatprep.subr.bf16.mxu0 0
        %636 = vmatpush1.bf16.msra.mxu0 0
        %637 = vmatprep.subr.bf16.mxu0 0
        %638 = vmatpush1.bf16.msra.mxu0 0
        %639 = vmatprep.subr.bf16.mxu0 0
        %640 = vmatpush1.bf16.msra.mxu0 0
        %641 = vmatprep.subr.bf16.mxu0 0
        %642 = vmatpush1.bf16.msra.mxu0 0
        %643 = vmatprep.subr.bf16.mxu0 0
        %644 = vmatpush1.bf16.msra.mxu0 0
        %645 = vmatprep.subr.bf16.mxu0 0
        %646 = vmatpush1.bf16.msra.mxu0 0
        %647 = vmatprep.subr.bf16.mxu0 0
        %648 = vmatpush1.bf16.msra.mxu0 0
        %649 = vmatprep.subr.bf16.mxu0 0
        %650 = vmatpush1.bf16.msra.mxu0 0
        %651 = vmatprep.subr.bf16.mxu0 0
        %652 = vmatpush1.bf16.msra.mxu0 0
        %653 = vmatprep.subr.bf16.mxu0 0
        %654 = vmatpush1.bf16.msra.mxu0 0
        %655 = vmatprep.mubr.bf16.mxu0 0
        %656 = vmatmul.mubr.bf16.gmra.mrb[0].mxu0 %v467
        %v657 = vpop.f32.mrb[0].mxu0
        %v658 = vadd.f32 0.0, %v657
        %v659 = vpop.f32.mrb[0].mxu0
        %v660 = vadd.f32 0.0, %v659
        %v661 = vpop.f32.mrb[0].mxu0
        %v662 = vpop.f32.mrb[0].mxu0
        %663 = vdwg.mxu0
        %664 = vmatprep.subr.bf16.mxu0 0
        %665 = vmatpush1.bf16.msra.mxu0 %v446
        %666 = vmatprep.subr.bf16.mxu0 0
        %667 = vmatpush1.bf16.msra.mxu0 %v498
        %668 = vmatprep.subr.bf16.mxu0 0
        %669 = vmatpush1.bf16.msra.mxu0 0
        %670 = vmatprep.subr.bf16.mxu0 0
        %671 = vmatpush1.bf16.msra.mxu0 0
        %672 = vmatprep.subr.bf16.mxu0 0
        %673 = vmatpush1.bf16.msra.mxu0 0
        %674 = vmatprep.subr.bf16.mxu0 0
        %675 = vmatpush1.bf16.msra.mxu0 0
        %676 = vmatprep.subr.bf16.mxu0 0
        %677 = vmatpush1.bf16.msra.mxu0 0
        %678 = vmatprep.subr.bf16.mxu0 0
        %679 = vmatpush1.bf16.msra.mxu0 0
        %680 = vmatprep.subr.bf16.mxu0 0
        %681 = vmatpush1.bf16.msra.mxu0 0
        %682 = vmatprep.subr.bf16.mxu0 0
        %683 = vmatpush1.bf16.msra.mxu0 0
        %684 = vmatprep.subr.bf16.mxu0 0
        %685 = vmatpush1.bf16.msra.mxu0 0
        %686 = vmatprep.subr.bf16.mxu0 0
        %687 = vmatpush1.bf16.msra.mxu0 0
        %688 = vmatprep.subr.bf16.mxu0 0
        %689 = vmatpush1.bf16.msra.mxu0 0
        %690 = vmatprep.subr.bf16.mxu0 0
        %691 = vmatpush1.bf16.msra.mxu0 0
        %692 = vmatprep.subr.bf16.mxu0 0
        %693 = vmatpush1.bf16.msra.mxu0 0
        %694 = vmatprep.subr.bf16.mxu0 0
        %695 = vmatpush1.bf16.msra.mxu0 0
        %696 = vmatprep.mubr.bf16.mxu0 0
        %697 = vmatmul.mubr.bf16.gmra.mrb[0].mxu0 %v467
        %v698 = vpop.f32.mrb[0].mxu0
        %v699 = vadd.f32 0.0, %v698
        %v700 = vpop.f32.mrb[0].mxu0
        %v701 = vpop.f32.mrb[0].mxu0
        %v702 = vpop.f32.mrb[0].mxu0
        %703 = vdwg.mxu0
        %s704 = scalar_lea.vmem %s332, 144 [#allocation2]
        %v705 = vld [vmem:[%s704] sm:$0xff]
        %v706 = vld [vmem:[%s704 + $0x8] sm:$0xff]
        %v707 = vld [vmem:[%s704 + $0x10] sm:$0xff]
        %v708 = vld [vmem:[%s704 + $0x18] sm:$0xff]
        %v709 = vld [vmem:[%s704 + $0x20] sm:$0xf]
        %v710 = vld [vmem:[%s704 + $0x24] sm:$0xff]
        %v711 = vld [vmem:[%s704 + $0x2c] sm:$0xff]
        %v712 = vld [vmem:[%s704 + $0x34] sm:$0xff]
        %v713 = vld [vmem:[%s704 + $0x3c] sm:$0xff]
        %v714 = vld [vmem:[%s704 + $0x44] sm:$0xf]
        %v715 = vld [vmem:[%s704 + $0x48] sm:$0xff]
        %v716 = vld [vmem:[%s704 + $0x50] sm:$0xff]
        %v717 = vld [vmem:[%s704 + $0x58] sm:$0xff]
        %v718 = vld [vmem:[%s704 + $0x60] sm:$0xff]
        %v719 = vld [vmem:[%s704 + $0x68] sm:$0xf]
        %v720 = vld [vmem:[%s704 + $0x6c] sm:$0x11]
        %v721 = vld [vmem:[%s704 + $0x74] sm:$0x11]
        %v722 = vld [vmem:[%s704 + $0x7c] sm:$0x11]
        %v723 = vld [vmem:[%s704 + $0x84] sm:$0x11]
        %v724 = vld [vmem:[%s704 + $0x8c] sm:$0x1]
        %v745 = vunpack.c.l.b16 %v705
        %v746 = vunpack.c.h.b16 %v705
        %v747 = vunpack.c.l.b16 %v706
        %v748 = vunpack.c.h.b16 %v706
        %v749 = vunpack.c.l.b16 %v707
        %v750 = vunpack.c.h.b16 %v707
        %v751 = vunpack.c.l.b16 %v708
        %v752 = vunpack.c.h.b16 %v708
        %v753 = vunpack.c.l.b16 %v709
        %v754 = vunpack.c.l.b16 %v710
        %v755 = vunpack.c.h.b16 %v710
        %v756 = vunpack.c.l.b16 %v711
        %v757 = vunpack.c.h.b16 %v711
        %v758 = vunpack.c.l.b16 %v712
        %v759 = vunpack.c.h.b16 %v712
        %v760 = vunpack.c.l.b16 %v713
        %v761 = vunpack.c.h.b16 %v713
        %v762 = vunpack.c.l.b16 %v714
        %v763 = vunpack.c.l.b16 %v715
        %v764 = vunpack.c.h.b16 %v715
        %v765 = vunpack.c.l.b16 %v716
        %v766 = vunpack.c.h.b16 %v716
        %v767 = vunpack.c.l.b16 %v717
        %v768 = vunpack.c.h.b16 %v717
        %v769 = vunpack.c.l.b16 %v718
        %v770 = vunpack.c.h.b16 %v718
        %v771 = vunpack.c.l.b16 %v719
        %v772 = vunpack.c.l.b16 %v720
        %v773 = vunpack.c.h.b16 %v720
        %v774 = vunpack.c.l.b16 %v721
        %v775 = vunpack.c.h.b16 %v721
        %v776 = vunpack.c.l.b16 %v722
        %v777 = vunpack.c.h.b16 %v722
        %v778 = vunpack.c.l.b16 %v723
        %v779 = vunpack.c.h.b16 %v723
        %v780 = vunpack.c.l.b16 %v724
        %v781 = vpack.c.b16 %v754, %v745
        %v782 = vpack.c.b16 %v755, %v746
        %v783 = vpack.c.b16 %v756, %v747
        %v784 = vpack.c.b16 %v757, %v748
        %v785 = vpack.c.b16 %v758, %v749
        %v786 = vpack.c.b16 %v759, %v750
        %v787 = vpack.c.b16 %v760, %v751
        %v788 = vpack.c.b16 %v761, %v752
        %v789 = vpack.c.b16 %v762, %v753
        %v790 = vpack.c.b16 %v772, %v763
        %v791 = vpack.c.b16 %v773, %v764
        %v792 = vpack.c.b16 %v774, %v765
        %v793 = vpack.c.b16 %v775, %v766
        %v794 = vpack.c.b16 %v776, %v767
        %v795 = vpack.c.b16 %v777, %v768
        %v796 = vpack.c.b16 %v778, %v769
        %v797 = vpack.c.b16 %v779, %v770
        %v798 = vpack.c.b16 %v780, %v771
        %v809 = vand.u32 %v790, %v472
        %v812 = vand.u32 %v791, %v472
        %v815 = vand.u32 %v792, %v472
        %v818 = vand.u32 %v793, %v472
        %v821 = vand.u32 %v794, %v472
        %v824 = vand.u32 %v795, %v472
        %v827 = vand.u32 %v796, %v472
        %v830 = vand.u32 %v797, %v472
        %v833 = vand.u32 %v798, %v472
        %835 = vmatprep.subr.bf16.mxu0 %v782
        %836 = vmatpush1.bf16.msra.mxu0 %v781
        %837 = vmatprep.subr.bf16.mxu0 %v812
        %838 = vmatpush1.bf16.msra.mxu0 %v809
        %839 = vmatprep.subr.bf16.mxu0 0
        %840 = vmatpush1.bf16.msra.mxu0 0
        %841 = vmatprep.subr.bf16.mxu0 0
        %842 = vmatpush1.bf16.msra.mxu0 0
        %843 = vmatprep.subr.bf16.mxu0 0
        %844 = vmatpush1.bf16.msra.mxu0 0
        %845 = vmatprep.subr.bf16.mxu0 0
        %846 = vmatpush1.bf16.msra.mxu0 0
        %847 = vmatprep.subr.bf16.mxu0 0
        %848 = vmatpush1.bf16.msra.mxu0 0
        %849 = vmatprep.subr.bf16.mxu0 0
        %850 = vmatpush1.bf16.msra.mxu0 0
        %851 = vmatprep.subr.bf16.mxu0 0
        %852 = vmatpush1.bf16.msra.mxu0 0
        %853 = vmatprep.subr.bf16.mxu0 0
        %854 = vmatpush1.bf16.msra.mxu0 0
        %855 = vmatprep.subr.bf16.mxu0 0
        %856 = vmatpush1.bf16.msra.mxu0 0
        %857 = vmatprep.subr.bf16.mxu0 0
        %858 = vmatpush1.bf16.msra.mxu0 0
        %859 = vmatprep.subr.bf16.mxu0 0
        %860 = vmatpush1.bf16.msra.mxu0 0
        %861 = vmatprep.subr.bf16.mxu0 0
        %862 = vmatpush1.bf16.msra.mxu0 0
        %863 = vmatprep.subr.bf16.mxu0 0
        %864 = vmatpush1.bf16.msra.mxu0 0
        %865 = vmatprep.subr.bf16.mxu0 0
        %866 = vmatpush1.bf16.msra.mxu0 0
        %867 = vmatprep.mubr.bf16.mxu0 0
        %868 = vmatmul.mubr.bf16.gmra.mrb[0].mxu0 %v467
        %v869 = vpop.f32.mrb[0].mxu0
        %v870 = vadd.f32 0.0, %v869
        %v871 = vpop.f32.mrb[0].mxu0
        %v872 = vadd.f32 0.0, %v871
        %v873 = vpop.f32.mrb[0].mxu0
        %v874 = vpop.f32.mrb[0].mxu0
        %875 = vdwg.mxu0
        %876 = vmatprep.subr.bf16.mxu0 %v784
        %877 = vmatpush1.bf16.msra.mxu0 %v783
        %878 = vmatprep.subr.bf16.mxu0 %v818
        %879 = vmatpush1.bf16.msra.mxu0 %v815
        %880 = vmatprep.subr.bf16.mxu0 0
        %881 = vmatpush1.bf16.msra.mxu0 0
        %882 = vmatprep.subr.bf16.mxu0 0
        %883 = vmatpush1.bf16.msra.mxu0 0
        %884 = vmatprep.subr.bf16.mxu0 0
        %885 = vmatpush1.bf16.msra.mxu0 0
        %886 = vmatprep.subr.bf16.mxu0 0
        %887 = vmatpush1.bf16.msra.mxu0 0
        %888 = vmatprep.subr.bf16.mxu0 0
        %889 = vmatpush1.bf16.msra.mxu0 0
        %890 = vmatprep.subr.bf16.mxu0 0
        %891 = vmatpush1.bf16.msra.mxu0 0
        %892 = vmatprep.subr.bf16.mxu0 0
        %893 = vmatpush1.bf16.msra.mxu0 0
        %894 = vmatprep.subr.bf16.mxu0 0
        %895 = vmatpush1.bf16.msra.mxu0 0
        %896 = vmatprep.subr.bf16.mxu0 0
        %897 = vmatpush1.bf16.msra.mxu0 0
        %898 = vmatprep.subr.bf16.mxu0 0
        %899 = vmatpush1.bf16.msra.mxu0 0
        %900 = vmatprep.subr.bf16.mxu0 0
        %901 = vmatpush1.bf16.msra.mxu0 0
        %902 = vmatprep.subr.bf16.mxu0 0
        %903 = vmatpush1.bf16.msra.mxu0 0
        %904 = vmatprep.subr.bf16.mxu0 0
        %905 = vmatpush1.bf16.msra.mxu0 0
        %906 = vmatprep.subr.bf16.mxu0 0
        %907 = vmatpush1.bf16.msra.mxu0 0
        %908 = vmatprep.mubr.bf16.mxu0 0
        %909 = vmatmul.mubr.bf16.gmra.mrb[0].mxu0 %v467
        %v910 = vpop.f32.mrb[0].mxu0
        %v911 = vadd.f32 0.0, %v910
        %v912 = vpop.f32.mrb[0].mxu0
        %v913 = vadd.f32 0.0, %v912
        %v914 = vpop.f32.mrb[0].mxu0
        %v915 = vpop.f32.mrb[0].mxu0
        %916 = vdwg.mxu0
        %917 = vmatprep.subr.bf16.mxu0 %v786
        %918 = vmatpush1.bf16.msra.mxu0 %v785
        %919 = vmatprep.subr.bf16.mxu0 %v824
        %920 = vmatpush1.bf16.msra.mxu0 %v821
        %921 = vmatprep.subr.bf16.mxu0 0
        %922 = vmatpush1.bf16.msra.mxu0 0
        %923 = vmatprep.subr.bf16.mxu0 0
        %924 = vmatpush1.bf16.msra.mxu0 0
        %925 = vmatprep.subr.bf16.mxu0 0
        %926 = vmatpush1.bf16.msra.mxu0 0
        %927 = vmatprep.subr.bf16.mxu0 0
        %928 = vmatpush1.bf16.msra.mxu0 0
        %929 = vmatprep.subr.bf16.mxu0 0
        %930 = vmatpush1.bf16.msra.mxu0 0
        %931 = vmatprep.subr.bf16.mxu0 0
        %932 = vmatpush1.bf16.msra.mxu0 0
        %933 = vmatprep.subr.bf16.mxu0 0
        %934 = vmatpush1.bf16.msra.mxu0 0
        %935 = vmatprep.subr.bf16.mxu0 0
        %936 = vmatpush1.bf16.msra.mxu0 0
        %937 = vmatprep.subr.bf16.mxu0 0
        %938 = vmatpush1.bf16.msra.mxu0 0
        %939 = vmatprep.subr.bf16.mxu0 0
        %940 = vmatpush1.bf16.msra.mxu0 0
        %941 = vmatprep.subr.bf16.mxu0 0
        %942 = vmatpush1.bf16.msra.mxu0 0
        %943 = vmatprep.subr.bf16.mxu0 0
        %944 = vmatpush1.bf16.msra.mxu0 0
        %945 = vmatprep.subr.bf16.mxu0 0
        %946 = vmatpush1.bf16.msra.mxu0 0
        %947 = vmatprep.subr.bf16.mxu0 0
        %948 = vmatpush1.bf16.msra.mxu0 0
        %949 = vmatprep.mubr.bf16.mxu0 0
        %950 = vmatmul.mubr.bf16.gmra.mrb[0].mxu0 %v467
        %v951 = vpop.f32.mrb[0].mxu0
        %v952 = vadd.f32 0.0, %v951
        %v953 = vpop.f32.mrb[0].mxu0
        %v954 = vadd.f32 0.0, %v953
        %v955 = vpop.f32.mrb[0].mxu0
        %v956 = vpop.f32.mrb[0].mxu0
        %957 = vdwg.mxu0
        %958 = vmatprep.subr.bf16.mxu0 %v788
        %959 = vmatpush1.bf16.msra.mxu0 %v787
        %960 = vmatprep.subr.bf16.mxu0 %v830
        %961 = vmatpush1.bf16.msra.mxu0 %v827
        %962 = vmatprep.subr.bf16.mxu0 0
        %963 = vmatpush1.bf16.msra.mxu0 0
        %964 = vmatprep.subr.bf16.mxu0 0
        %965 = vmatpush1.bf16.msra.mxu0 0
        %966 = vmatprep.subr.bf16.mxu0 0
        %967 = vmatpush1.bf16.msra.mxu0 0
        %968 = vmatprep.subr.bf16.mxu0 0
        %969 = vmatpush1.bf16.msra.mxu0 0
        %970 = vmatprep.subr.bf16.mxu0 0
        %971 = vmatpush1.bf16.msra.mxu0 0
        %972 = vmatprep.subr.bf16.mxu0 0
        %973 = vmatpush1.bf16.msra.mxu0 0
        %974 = vmatprep.subr.bf16.mxu0 0
        %975 = vmatpush1.bf16.msra.mxu0 0
        %976 = vmatprep.subr.bf16.mxu0 0
        %977 = vmatpush1.bf16.msra.mxu0 0
        %978 = vmatprep.subr.bf16.mxu0 0
        %979 = vmatpush1.bf16.msra.mxu0 0
        %980 = vmatprep.subr.bf16.mxu0 0
        %981 = vmatpush1.bf16.msra.mxu0 0
        %982 = vmatprep.subr.bf16.mxu0 0
        %983 = vmatpush1.bf16.msra.mxu0 0
        %984 = vmatprep.subr.bf16.mxu0 0
        %985 = vmatpush1.bf16.msra.mxu0 0
        %986 = vmatprep.subr.bf16.mxu0 0
        %987 = vmatpush1.bf16.msra.mxu0 0
        %988 = vmatprep.subr.bf16.mxu0 0
        %989 = vmatpush1.bf16.msra.mxu0 0
        %990 = vmatprep.mubr.bf16.mxu0 0
        %991 = vmatmul.mubr.bf16.gmra.mrb[0].mxu0 %v467
        %v992 = vpop.f32.mrb[0].mxu0
        %v993 = vadd.f32 0.0, %v992
        %v994 = vpop.f32.mrb[0].mxu0
        %v995 = vadd.f32 0.0, %v994
        %v996 = vpop.f32.mrb[0].mxu0
        %v997 = vpop.f32.mrb[0].mxu0
        %998 = vdwg.mxu0
        %999 = vmatprep.subr.bf16.mxu0 0
        %1000 = vmatpush1.bf16.msra.mxu0 %v789
        %1001 = vmatprep.subr.bf16.mxu0 0
        %1002 = vmatpush1.bf16.msra.mxu0 %v833
        %1003 = vmatprep.subr.bf16.mxu0 0
        %1004 = vmatpush1.bf16.msra.mxu0 0
        %1005 = vmatprep.subr.bf16.mxu0 0
        %1006 = vmatpush1.bf16.msra.mxu0 0
        %1007 = vmatprep.subr.bf16.mxu0 0
        %1008 = vmatpush1.bf16.msra.mxu0 0
        %1009 = vmatprep.subr.bf16.mxu0 0
        %1010 = vmatpush1.bf16.msra.mxu0 0
        %1011 = vmatprep.subr.bf16.mxu0 0
        %1012 = vmatpush1.bf16.msra.mxu0 0
        %1013 = vmatprep.subr.bf16.mxu0 0
        %1014 = vmatpush1.bf16.msra.mxu0 0
        %1015 = vmatprep.subr.bf16.mxu0 0
        %1016 = vmatpush1.bf16.msra.mxu0 0
        %1017 = vmatprep.subr.bf16.mxu0 0
        %1018 = vmatpush1.bf16.msra.mxu0 0
        %1019 = vmatprep.subr.bf16.mxu0 0
        %1020 = vmatpush1.bf16.msra.mxu0 0
        %1021 = vmatprep.subr.bf16.mxu0 0
        %1022 = vmatpush1.bf16.msra.mxu0 0
        %1023 = vmatprep.subr.bf16.mxu0 0
        %1024 = vmatpush1.bf16.msra.mxu0 0
        %1025 = vmatprep.subr.bf16.mxu0 0
        %1026 = vmatpush1.bf16.msra.mxu0 0
        %1027 = vmatprep.subr.bf16.mxu0 0
        %1028 = vmatpush1.bf16.msra.mxu0 0
        %1029 = vmatprep.subr.bf16.mxu0 0
        %1030 = vmatpush1.bf16.msra.mxu0 0
        %1031 = vmatprep.mubr.bf16.mxu0 0
        %1032 = vmatmul.mubr.bf16.gmra.mrb[0].mxu0 %v467
        %v1033 = vpop.f32.mrb[0].mxu0
        %v1034 = vadd.f32 0.0, %v1033
        %v1035 = vpop.f32.mrb[0].mxu0
        %v1036 = vpop.f32.mrb[0].mxu0
        %v1037 = vpop.f32.mrb[0].mxu0
        %1038 = vdwg.mxu0
        %s1039 = scalar_lea.vmem %s332, 288 [#allocation2]
        %v1040 = vld [vmem:[%s1039] sm:$0xff]
        %v1041 = vld [vmem:[%s1039 + $0x8] sm:$0xff]
        %v1042 = vld [vmem:[%s1039 + $0x10] sm:$0xff]
        %v1043 = vld [vmem:[%s1039 + $0x18] sm:$0xff]
        %v1044 = vld [vmem:[%s1039 + $0x20] sm:$0xf]
        %v1045 = vld [vmem:[%s1039 + $0x24] sm:$0xff]
        %v1046 = vld [vmem:[%s1039 + $0x2c] sm:$0xff]
        %v1047 = vld [vmem:[%s1039 + $0x34] sm:$0xff]
        %v1048 = vld [vmem:[%s1039 + $0x3c] sm:$0xff]
        %v1049 = vld [vmem:[%s1039 + $0x44] sm:$0xf]
        %v1050 = vld [vmem:[%s1039 + $0x48] sm:$0xff]
        %v1051 = vld [vmem:[%s1039 + $0x50] sm:$0xff]
        %v1052 = vld [vmem:[%s1039 + $0x58] sm:$0xff]
        %v1053 = vld [vmem:[%s1039 + $0x60] sm:$0xff]
        %v1054 = vld [vmem:[%s1039 + $0x68] sm:$0xf]
        %v1055 = vld [vmem:[%s1039 + $0x6c] sm:$0x11]
        %v1056 = vld [vmem:[%s1039 + $0x74] sm:$0x11]
        %v1057 = vld [vmem:[%s1039 + $0x7c] sm:$0x11]
        %v1058 = vld [vmem:[%s1039 + $0x84] sm:$0x11]
        %v1059 = vld [vmem:[%s1039 + $0x8c] sm:$0x1]
        %v1080 = vunpack.c.l.b16 %v1040
        %v1081 = vunpack.c.h.b16 %v1040
        %v1082 = vunpack.c.l.b16 %v1041
        %v1083 = vunpack.c.h.b16 %v1041
        %v1084 = vunpack.c.l.b16 %v1042
        %v1085 = vunpack.c.h.b16 %v1042
        %v1086 = vunpack.c.l.b16 %v1043
        %v1087 = vunpack.c.h.b16 %v1043
        %v1088 = vunpack.c.l.b16 %v1044
        %v1089 = vunpack.c.l.b16 %v1045
        %v1090 = vunpack.c.h.b16 %v1045
        %v1091 = vunpack.c.l.b16 %v1046
        %v1092 = vunpack.c.h.b16 %v1046
        %v1093 = vunpack.c.l.b16 %v1047
        %v1094 = vunpack.c.h.b16 %v1047
        %v1095 = vunpack.c.l.b16 %v1048
        %v1096 = vunpack.c.h.b16 %v1048
        %v1097 = vunpack.c.l.b16 %v1049
        %v1098 = vunpack.c.l.b16 %v1050
        %v1099 = vunpack.c.h.b16 %v1050
        %v1100 = vunpack.c.l.b16 %v1051
        %v1101 = vunpack.c.h.b16 %v1051
        %v1102 = vunpack.c.l.b16 %v1052
        %v1103 = vunpack.c.h.b16 %v1052
        %v1104 = vunpack.c.l.b16 %v1053
        %v1105 = vunpack.c.h.b16 %v1053
        %v1106 = vunpack.c.l.b16 %v1054
        %v1107 = vunpack.c.l.b16 %v1055
        %v1108 = vunpack.c.h.b16 %v1055
        %v1109 = vunpack.c.l.b16 %v1056
        %v1110 = vunpack.c.h.b16 %v1056
        %v1111 = vunpack.c.l.b16 %v1057
        %v1112 = vunpack.c.h.b16 %v1057
        %v1113 = vunpack.c.l.b16 %v1058
        %v1114 = vunpack.c.h.b16 %v1058
        %v1115 = vunpack.c.l.b16 %v1059
        %v1116 = vpack.c.b16 %v1089, %v1080
        %v1117 = vpack.c.b16 %v1090, %v1081
        %v1118 = vpack.c.b16 %v1091, %v1082
        %v1119 = vpack.c.b16 %v1092, %v1083
        %v1120 = vpack.c.b16 %v1093, %v1084
        %v1121 = vpack.c.b16 %v1094, %v1085
        %v1122 = vpack.c.b16 %v1095, %v1086
        %v1123 = vpack.c.b16 %v1096, %v1087
        %v1124 = vpack.c.b16 %v1097, %v1088
        %v1125 = vpack.c.b16 %v1107, %v1098
        %v1126 = vpack.c.b16 %v1108, %v1099
        %v1127 = vpack.c.b16 %v1109, %v1100
        %v1128 = vpack.c.b16 %v1110, %v1101
        %v1129 = vpack.c.b16 %v1111, %v1102
        %v1130 = vpack.c.b16 %v1112, %v1103
        %v1131 = vpack.c.b16 %v1113, %v1104
        %v1132 = vpack.c.b16 %v1114, %v1105
        %v1133 = vpack.c.b16 %v1115, %v1106
        %v1144 = vand.u32 %v1125, %v472
        %v1147 = vand.u32 %v1126, %v472
        %v1150 = vand.u32 %v1127, %v472
        %v1153 = vand.u32 %v1128, %v472
        %v1156 = vand.u32 %v1129, %v472
        %v1159 = vand.u32 %v1130, %v472
        %v1162 = vand.u32 %v1131, %v472
        %v1165 = vand.u32 %v1132, %v472
        %v1168 = vand.u32 %v1133, %v472
        %1170 = vmatprep.subr.bf16.mxu0 %v1117
        %1171 = vmatpush1.bf16.msra.mxu0 %v1116
        %1172 = vmatprep.subr.bf16.mxu0 %v1147
        %1173 = vmatpush1.bf16.msra.mxu0 %v1144
        %1174 = vmatprep.subr.bf16.mxu0 0
        %1175 = vmatpush1.bf16.msra.mxu0 0
        %1176 = vmatprep.subr.bf16.mxu0 0
        %1177 = vmatpush1.bf16.msra.mxu0 0
        %1178 = vmatprep.subr.bf16.mxu0 0
        %1179 = vmatpush1.bf16.msra.mxu0 0
        %1180 = vmatprep.subr.bf16.mxu0 0
        %1181 = vmatpush1.bf16.msra.mxu0 0
        %1182 = vmatprep.subr.bf16.mxu0 0
        %1183 = vmatpush1.bf16.msra.mxu0 0
        %1184 = vmatprep.subr.bf16.mxu0 0
        %1185 = vmatpush1.bf16.msra.mxu0 0
        %1186 = vmatprep.subr.bf16.mxu0 0
        %1187 = vmatpush1.bf16.msra.mxu0 0
        %1188 = vmatprep.subr.bf16.mxu0 0
        %1189 = vmatpush1.bf16.msra.mxu0 0
        %1190 = vmatprep.subr.bf16.mxu0 0
        %1191 = vmatpush1.bf16.msra.mxu0 0
        %1192 = vmatprep.subr.bf16.mxu0 0
        %1193 = vmatpush1.bf16.msra.mxu0 0
        %1194 = vmatprep.subr.bf16.mxu0 0
        %1195 = vmatpush1.bf16.msra.mxu0 0
        %1196 = vmatprep.subr.bf16.mxu0 0
        %1197 = vmatpush1.bf16.msra.mxu0 0
        %1198 = vmatprep.subr.bf16.mxu0 0
        %1199 = vmatpush1.bf16.msra.mxu0 0
        %1200 = vmatprep.subr.bf16.mxu0 0
        %1201 = vmatpush1.bf16.msra.mxu0 0
        %1202 = vmatprep.mubr.bf16.mxu0 0
        %1203 = vmatmul.mubr.bf16.gmra.mrb[0].mxu0 %v467
        %v1204 = vpop.f32.mrb[0].mxu0
        %v1205 = vadd.f32 0.0, %v1204
        %v1206 = vpop.f32.mrb[0].mxu0
        %v1207 = vadd.f32 0.0, %v1206
        %v1208 = vpop.f32.mrb[0].mxu0
        %v1209 = vpop.f32.mrb[0].mxu0
        %1210 = vdwg.mxu0
        %1211 = vmatprep.subr.bf16.mxu0 %v1119
        %1212 = vmatpush1.bf16.msra.mxu0 %v1118
        %1213 = vmatprep.subr.bf16.mxu0 %v1153
        %1214 = vmatpush1.bf16.msra.mxu0 %v1150
        %1215 = vmatprep.subr.bf16.mxu0 0
        %1216 = vmatpush1.bf16.msra.mxu0 0
        %1217 = vmatprep.subr.bf16.mxu0 0
        %1218 = vmatpush1.bf16.msra.mxu0 0
        %1219 = vmatprep.subr.bf16.mxu0 0
        %1220 = vmatpush1.bf16.msra.mxu0 0
        %1221 = vmatprep.subr.bf16.mxu0 0
        %1222 = vmatpush1.bf16.msra.mxu0 0
        %1223 = vmatprep.subr.bf16.mxu0 0
        %1224 = vmatpush1.bf16.msra.mxu0 0
        %1225 = vmatprep.subr.bf16.mxu0 0
        %1226 = vmatpush1.bf16.msra.mxu0 0
        %1227 = vmatprep.subr.bf16.mxu0 0
        %1228 = vmatpush1.bf16.msra.mxu0 0
        %1229 = vmatprep.subr.bf16.mxu0 0
        %1230 = vmatpush1.bf16.msra.mxu0 0
        %1231 = vmatprep.subr.bf16.mxu0 0
        %1232 = vmatpush1.bf16.msra.mxu0 0
        %1233 = vmatprep.subr.bf16.mxu0 0
        %1234 = vmatpush1.bf16.msra.mxu0 0
        %1235 = vmatprep.subr.bf16.mxu0 0
        %1236 = vmatpush1.bf16.msra.mxu0 0
        %1237 = vmatprep.subr.bf16.mxu0 0
        %1238 = vmatpush1.bf16.msra.mxu0 0
        %1239 = vmatprep.subr.bf16.mxu0 0
        %1240 = vmatpush1.bf16.msra.mxu0 0
        %1241 = vmatprep.subr.bf16.mxu0 0
        %1242 = vmatpush1.bf16.msra.mxu0 0
        %1243 = vmatprep.mubr.bf16.mxu0 0
        %1244 = vmatmul.mubr.bf16.gmra.mrb[0].mxu0 %v467
        %v1245 = vpop.f32.mrb[0].mxu0
        %v1246 = vadd.f32 0.0, %v1245
        %v1247 = vpop.f32.mrb[0].mxu0
        %v1248 = vadd.f32 0.0, %v1247
        %v1249 = vpop.f32.mrb[0].mxu0
        %v1250 = vpop.f32.mrb[0].mxu0
        %1251 = vdwg.mxu0
        %1252 = vmatprep.subr.bf16.mxu0 %v1121
        %1253 = vmatpush1.bf16.msra.mxu0 %v1120
        %1254 = vmatprep.subr.bf16.mxu0 %v1159
        %1255 = vmatpush1.bf16.msra.mxu0 %v1156
        %1256 = vmatprep.subr.bf16.mxu0 0
        %1257 = vmatpush1.bf16.msra.mxu0 0
        %1258 = vmatprep.subr.bf16.mxu0 0
        %1259 = vmatpush1.bf16.msra.mxu0 0
        %1260 = vmatprep.subr.bf16.mxu0 0
        %1261 = vmatpush1.bf16.msra.mxu0 0
        %1262 = vmatprep.subr.bf16.mxu0 0
        %1263 = vmatpush1.bf16.msra.mxu0 0
        %1264 = vmatprep.subr.bf16.mxu0 0
        %1265 = vmatpush1.bf16.msra.mxu0 0
        %1266 = vmatprep.subr.bf16.mxu0 0
        %1267 = vmatpush1.bf16.msra.mxu0 0
        %1268 = vmatprep.subr.bf16.mxu0 0
        %1269 = vmatpush1.bf16.msra.mxu0 0
        %1270 = vmatprep.subr.bf16.mxu0 0
        %1271 = vmatpush1.bf16.msra.mxu0 0
        %1272 = vmatprep.subr.bf16.mxu0 0
        %1273 = vmatpush1.bf16.msra.mxu0 0
        %1274 = vmatprep.subr.bf16.mxu0 0
        %1275 = vmatpush1.bf16.msra.mxu0 0
        %1276 = vmatprep.subr.bf16.mxu0 0
        %1277 = vmatpush1.bf16.msra.mxu0 0
        %1278 = vmatprep.subr.bf16.mxu0 0
        %1279 = vmatpush1.bf16.msra.mxu0 0
        %1280 = vmatprep.subr.bf16.mxu0 0
        %1281 = vmatpush1.bf16.msra.mxu0 0
        %1282 = vmatprep.subr.bf16.mxu0 0
        %1283 = vmatpush1.bf16.msra.mxu0 0
        %1284 = vmatprep.mubr.bf16.mxu0 0
        %1285 = vmatmul.mubr.bf16.gmra.mrb[0].mxu0 %v467
        %v1286 = vpop.f32.mrb[0].mxu0
        %v1287 = vadd.f32 0.0, %v1286
        %v1288 = vpop.f32.mrb[0].mxu0
        %v1289 = vadd.f32 0.0, %v1288
        %v1290 = vpop.f32.mrb[0].mxu0
        %v1291 = vpop.f32.mrb[0].mxu0
        %1292 = vdwg.mxu0
        %1293 = vmatprep.subr.bf16.mxu0 %v1123
        %1294 = vmatpush1.bf16.msra.mxu0 %v1122
        %1295 = vmatprep.subr.bf16.mxu0 %v1165
        %1296 = vmatpush1.bf16.msra.mxu0 %v1162
        %1297 = vmatprep.subr.bf16.mxu0 0
        %1298 = vmatpush1.bf16.msra.mxu0 0
        %1299 = vmatprep.subr.bf16.mxu0 0
        %1300 = vmatpush1.bf16.msra.mxu0 0
        %1301 = vmatprep.subr.bf16.mxu0 0
        %1302 = vmatpush1.bf16.msra.mxu0 0
        %1303 = vmatprep.subr.bf16.mxu0 0
        %1304 = vmatpush1.bf16.msra.mxu0 0
        %1305 = vmatprep.subr.bf16.mxu0 0
        %1306 = vmatpush1.bf16.msra.mxu0 0
        %1307 = vmatprep.subr.bf16.mxu0 0
        %1308 = vmatpush1.bf16.msra.mxu0 0
        %1309 = vmatprep.subr.bf16.mxu0 0
        %1310 = vmatpush1.bf16.msra.mxu0 0
        %1311 = vmatprep.subr.bf16.mxu0 0
        %1312 = vmatpush1.bf16.msra.mxu0 0
        %1313 = vmatprep.subr.bf16.mxu0 0
        %1314 = vmatpush1.bf16.msra.mxu0 0
        %1315 = vmatprep.subr.bf16.mxu0 0
        %1316 = vmatpush1.bf16.msra.mxu0 0
        %1317 = vmatprep.subr.bf16.mxu0 0
        %1318 = vmatpush1.bf16.msra.mxu0 0
        %1319 = vmatprep.subr.bf16.mxu0 0
        %1320 = vmatpush1.bf16.msra.mxu0 0
        %1321 = vmatprep.subr.bf16.mxu0 0
        %1322 = vmatpush1.bf16.msra.mxu0 0
        %1323 = vmatprep.subr.bf16.mxu0 0
        %1324 = vmatpush1.bf16.msra.mxu0 0
        %1325 = vmatprep.mubr.bf16.mxu0 0
        %1326 = vmatmul.mubr.bf16.gmra.mrb[0].mxu0 %v467
        %v1327 = vpop.f32.mrb[0].mxu0
        %v1328 = vadd.f32 0.0, %v1327
        %v1329 = vpop.f32.mrb[0].mxu0
        %v1330 = vadd.f32 0.0, %v1329
        %v1331 = vpop.f32.mrb[0].mxu0
        %v1332 = vpop.f32.mrb[0].mxu0
        %1333 = vdwg.mxu0
        %1334 = vmatprep.subr.bf16.mxu0 0
        %1335 = vmatpush1.bf16.msra.mxu0 %v1124
        %1336 = vmatprep.subr.bf16.mxu0 0
        %1337 = vmatpush1.bf16.msra.mxu0 %v1168
        %1338 = vmatprep.subr.bf16.mxu0 0
        %1339 = vmatpush1.bf16.msra.mxu0 0
        %1340 = vmatprep.subr.bf16.mxu0 0
        %1341 = vmatpush1.bf16.msra.mxu0 0
        %1342 = vmatprep.subr.bf16.mxu0 0
        %1343 = vmatpush1.bf16.msra.mxu0 0
        %1344 = vmatprep.subr.bf16.mxu0 0
        %1345 = vmatpush1.bf16.msra.mxu0 0
        %1346 = vmatprep.subr.bf16.mxu0 0
        %1347 = vmatpush1.bf16.msra.mxu0 0
        %1348 = vmatprep.subr.bf16.mxu0 0
        %1349 = vmatpush1.bf16.msra.mxu0 0
        %1350 = vmatprep.subr.bf16.mxu0 0
        %1351 = vmatpush1.bf16.msra.mxu0 0
        %1352 = vmatprep.subr.bf16.mxu0 0
        %1353 = vmatpush1.bf16.msra.mxu0 0
        %1354 = vmatprep.subr.bf16.mxu0 0
        %1355 = vmatpush1.bf16.msra.mxu0 0
        %1356 = vmatprep.subr.bf16.mxu0 0
        %1357 = vmatpush1.bf16.msra.mxu0 0
        %1358 = vmatprep.subr.bf16.mxu0 0
        %1359 = vmatpush1.bf16.msra.mxu0 0
        %1360 = vmatprep.subr.bf16.mxu0 0
        %1361 = vmatpush1.bf16.msra.mxu0 0
        %1362 = vmatprep.subr.bf16.mxu0 0
        %1363 = vmatpush1.bf16.msra.mxu0 0
        %1364 = vmatprep.subr.bf16.mxu0 0
        %1365 = vmatpush1.bf16.msra.mxu0 0
        %1366 = vmatprep.mubr.bf16.mxu0 0
        %1367 = vmatmul.mubr.bf16.gmra.mrb[0].mxu0 %v467
        %v1368 = vpop.f32.mrb[0].mxu0
        %v1369 = vadd.f32 0.0, %v1368
        %v1370 = vpop.f32.mrb[0].mxu0
        %v1371 = vpop.f32.mrb[0].mxu0
        %v1372 = vpop.f32.mrb[0].mxu0
        %1373 = vdwg.mxu0
        %s1374 = scalar_lea.vmem %s332, 432 [#allocation2]
        %v1375 = vld [vmem:[%s1374] sm:$0xff]
        %v1376 = vld [vmem:[%s1374 + $0x8] sm:$0xff]
        %v1377 = vld [vmem:[%s1374 + $0x10] sm:$0xff]
        %v1378 = vld [vmem:[%s1374 + $0x18] sm:$0xff]
        %v1379 = vld [vmem:[%s1374 + $0x20] sm:$0xf]
        %v1380 = vld [vmem:[%s1374 + $0x24] sm:$0xff]
        %v1381 = vld [vmem:[%s1374 + $0x2c] sm:$0xff]
        %v1382 = vld [vmem:[%s1374 + $0x34] sm:$0xff]
        %v1383 = vld [vmem:[%s1374 + $0x3c] sm:$0xff]
        %v1384 = vld [vmem:[%s1374 + $0x44] sm:$0xf]
        %v1385 = vld [vmem:[%s1374 + $0x48] sm:$0xff]
        %v1386 = vld [vmem:[%s1374 + $0x50] sm:$0xff]
        %v1387 = vld [vmem:[%s1374 + $0x58] sm:$0xff]
        %v1388 = vld [vmem:[%s1374 + $0x60] sm:$0xff]
        %v1389 = vld [vmem:[%s1374 + $0x68] sm:$0xf]
        %v1390 = vld [vmem:[%s1374 + $0x6c] sm:$0x11]
        %v1391 = vld [vmem:[%s1374 + $0x74] sm:$0x11]
        %v1392 = vld [vmem:[%s1374 + $0x7c] sm:$0x11]
        %v1393 = vld [vmem:[%s1374 + $0x84] sm:$0x11]
        %v1394 = vld [vmem:[%s1374 + $0x8c] sm:$0x1]
        %v1415 = vunpack.c.l.b16 %v1375
        %v1416 = vunpack.c.h.b16 %v1375
        %v1417 = vunpack.c.l.b16 %v1376
        %v1418 = vunpack.c.h.b16 %v1376
        %v1419 = vunpack.c.l.b16 %v1377
        %v1420 = vunpack.c.h.b16 %v1377
        %v1421 = vunpack.c.l.b16 %v1378
        %v1422 = vunpack.c.h.b16 %v1378
        %v1423 = vunpack.c.l.b16 %v1379
        %v1424 = vunpack.c.l.b16 %v1380
        %v1425 = vunpack.c.h.b16 %v1380
        %v1426 = vunpack.c.l.b16 %v1381
        %v1427 = vunpack.c.h.b16 %v1381
        %v1428 = vunpack.c.l.b16 %v1382
        %v1429 = vunpack.c.h.b16 %v1382
        %v1430 = vunpack.c.l.b16 %v1383
        %v1431 = vunpack.c.h.b16 %v1383
        %v1432 = vunpack.c.l.b16 %v1384
        %v1433 = vunpack.c.l.b16 %v1385
        %v1434 = vunpack.c.h.b16 %v1385
        %v1435 = vunpack.c.l.b16 %v1386
        %v1436 = vunpack.c.h.b16 %v1386
        %v1437 = vunpack.c.l.b16 %v1387
        %v1438 = vunpack.c.h.b16 %v1387
        %v1439 = vunpack.c.l.b16 %v1388
        %v1440 = vunpack.c.h.b16 %v1388
        %v1441 = vunpack.c.l.b16 %v1389
        %v1442 = vunpack.c.l.b16 %v1390
        %v1443 = vunpack.c.h.b16 %v1390
        %v1444 = vunpack.c.l.b16 %v1391
        %v1445 = vunpack.c.h.b16 %v1391
        %v1446 = vunpack.c.l.b16 %v1392
        %v1447 = vunpack.c.h.b16 %v1392
        %v1448 = vunpack.c.l.b16 %v1393
        %v1449 = vunpack.c.h.b16 %v1393
        %v1450 = vunpack.c.l.b16 %v1394
        %v1451 = vpack.c.b16 %v1424, %v1415
        %v1452 = vpack.c.b16 %v1425, %v1416
        %v1453 = vpack.c.b16 %v1426, %v1417
        %v1454 = vpack.c.b16 %v1427, %v1418
        %v1455 = vpack.c.b16 %v1428, %v1419
        %v1456 = vpack.c.b16 %v1429, %v1420
        %v1457 = vpack.c.b16 %v1430, %v1421
        %v1458 = vpack.c.b16 %v1431, %v1422
        %v1459 = vpack.c.b16 %v1432, %v1423
        %v1460 = vpack.c.b16 %v1442, %v1433
        %v1461 = vpack.c.b16 %v1443, %v1434
        %v1462 = vpack.c.b16 %v1444, %v1435
        %v1463 = vpack.c.b16 %v1445, %v1436
        %v1464 = vpack.c.b16 %v1446, %v1437
        %v1465 = vpack.c.b16 %v1447, %v1438
        %v1466 = vpack.c.b16 %v1448, %v1439
        %v1467 = vpack.c.b16 %v1449, %v1440
        %v1468 = vpack.c.b16 %v1450, %v1441
        %v1479 = vand.u32 %v1460, %v472
        %v1482 = vand.u32 %v1461, %v472
        %v1485 = vand.u32 %v1462, %v472
        %v1488 = vand.u32 %v1463, %v472
        %v1491 = vand.u32 %v1464, %v472
        %v1494 = vand.u32 %v1465, %v472
        %v1497 = vand.u32 %v1466, %v472
        %v1500 = vand.u32 %v1467, %v472
        %v1503 = vand.u32 %v1468, %v472
        %1505 = vmatprep.subr.bf16.mxu0 %v1452
        %1506 = vmatpush1.bf16.msra.mxu0 %v1451
        %1507 = vmatprep.subr.bf16.mxu0 %v1482
        %1508 = vmatpush1.bf16.msra.mxu0 %v1479
        %1509 = vmatprep.subr.bf16.mxu0 0
        %1510 = vmatpush1.bf16.msra.mxu0 0
        %1511 = vmatprep.subr.bf16.mxu0 0
        %1512 = vmatpush1.bf16.msra.mxu0 0
        %1513 = vmatprep.subr.bf16.mxu0 0
        %1514 = vmatpush1.bf16.msra.mxu0 0
        %1515 = vmatprep.subr.bf16.mxu0 0
        %1516 = vmatpush1.bf16.msra.mxu0 0
        %1517 = vmatprep.subr.bf16.mxu0 0
        %1518 = vmatpush1.bf16.msra.mxu0 0
        %1519 = vmatprep.subr.bf16.mxu0 0
        %1520 = vmatpush1.bf16.msra.mxu0 0
        %1521 = vmatprep.subr.bf16.mxu0 0
        %1522 = vmatpush1.bf16.msra.mxu0 0
        %1523 = vmatprep.subr.bf16.mxu0 0
        %1524 = vmatpush1.bf16.msra.mxu0 0
        %1525 = vmatprep.subr.bf16.mxu0 0
        %1526 = vmatpush1.bf16.msra.mxu0 0
        %1527 = vmatprep.subr.bf16.mxu0 0
        %1528 = vmatpush1.bf16.msra.mxu0 0
        %1529 = vmatprep.subr.bf16.mxu0 0
        %1530 = vmatpush1.bf16.msra.mxu0 0
        %1531 = vmatprep.subr.bf16.mxu0 0
        %1532 = vmatpush1.bf16.msra.mxu0 0
        %1533 = vmatprep.subr.bf16.mxu0 0
        %1534 = vmatpush1.bf16.msra.mxu0 0
        %1535 = vmatprep.subr.bf16.mxu0 0
        %1536 = vmatpush1.bf16.msra.mxu0 0
        %1537 = vmatprep.mubr.bf16.mxu0 0
        %1538 = vmatmul.mubr.bf16.gmra.mrb[0].mxu0 %v467
        %v1539 = vpop.f32.mrb[0].mxu0
        %v1540 = vadd.f32 0.0, %v1539
        %v1541 = vpop.f32.mrb[0].mxu0
        %v1542 = vadd.f32 0.0, %v1541
        %v1543 = vpop.f32.mrb[0].mxu0
        %v1544 = vpop.f32.mrb[0].mxu0
        %1545 = vdwg.mxu0
        %1546 = vmatprep.subr.bf16.mxu0 %v1454
        %1547 = vmatpush1.bf16.msra.mxu0 %v1453
        %1548 = vmatprep.subr.bf16.mxu0 %v1488
        %1549 = vmatpush1.bf16.msra.mxu0 %v1485
        %1550 = vmatprep.subr.bf16.mxu0 0
        %1551 = vmatpush1.bf16.msra.mxu0 0
        %1552 = vmatprep.subr.bf16.mxu0 0
        %1553 = vmatpush1.bf16.msra.mxu0 0
        %1554 = vmatprep.subr.bf16.mxu0 0
        %1555 = vmatpush1.bf16.msra.mxu0 0
        %1556 = vmatprep.subr.bf16.mxu0 0
        %1557 = vmatpush1.bf16.msra.mxu0 0
        %1558 = vmatprep.subr.bf16.mxu0 0
        %1559 = vmatpush1.bf16.msra.mxu0 0
        %1560 = vmatprep.subr.bf16.mxu0 0
        %1561 = vmatpush1.bf16.msra.mxu0 0
        %1562 = vmatprep.subr.bf16.mxu0 0
        %1563 = vmatpush1.bf16.msra.mxu0 0
        %1564 = vmatprep.subr.bf16.mxu0 0
        %1565 = vmatpush1.bf16.msra.mxu0 0
        %1566 = vmatprep.subr.bf16.mxu0 0
        %1567 = vmatpush1.bf16.msra.mxu0 0
        %1568 = vmatprep.subr.bf16.mxu0 0
        %1569 = vmatpush1.bf16.msra.mxu0 0
        %1570 = vmatprep.subr.bf16.mxu0 0
        %1571 = vmatpush1.bf16.msra.mxu0 0
        %1572 = vmatprep.subr.bf16.mxu0 0
        %1573 = vmatpush1.bf16.msra.mxu0 0
        %1574 = vmatprep.subr.bf16.mxu0 0
        %1575 = vmatpush1.bf16.msra.mxu0 0
        %1576 = vmatprep.subr.bf16.mxu0 0
        %1577 = vmatpush1.bf16.msra.mxu0 0
        %1578 = vmatprep.mubr.bf16.mxu0 0
        %1579 = vmatmul.mubr.bf16.gmra.mrb[0].mxu0 %v467
        %v1580 = vpop.f32.mrb[0].mxu0
        %v1581 = vadd.f32 0.0, %v1580
        %v1582 = vpop.f32.mrb[0].mxu0
        %v1583 = vadd.f32 0.0, %v1582
        %v1584 = vpop.f32.mrb[0].mxu0
        %v1585 = vpop.f32.mrb[0].mxu0
        %1586 = vdwg.mxu0
        %1587 = vmatprep.subr.bf16.mxu0 %v1456
        %1588 = vmatpush1.bf16.msra.mxu0 %v1455
        %1589 = vmatprep.subr.bf16.mxu0 %v1494
        %1590 = vmatpush1.bf16.msra.mxu0 %v1491
        %1591 = vmatprep.subr.bf16.mxu0 0
        %1592 = vmatpush1.bf16.msra.mxu0 0
        %1593 = vmatprep.subr.bf16.mxu0 0
        %1594 = vmatpush1.bf16.msra.mxu0 0
        %1595 = vmatprep.subr.bf16.mxu0 0
        %1596 = vmatpush1.bf16.msra.mxu0 0
        %1597 = vmatprep.subr.bf16.mxu0 0
        %1598 = vmatpush1.bf16.msra.mxu0 0
        %1599 = vmatprep.subr.bf16.mxu0 0
        %1600 = vmatpush1.bf16.msra.mxu0 0
        %1601 = vmatprep.subr.bf16.mxu0 0
        %1602 = vmatpush1.bf16.msra.mxu0 0
        %1603 = vmatprep.subr.bf16.mxu0 0
        %1604 = vmatpush1.bf16.msra.mxu0 0
        %1605 = vmatprep.subr.bf16.mxu0 0
        %1606 = vmatpush1.bf16.msra.mxu0 0
        %1607 = vmatprep.subr.bf16.mxu0 0
        %1608 = vmatpush1.bf16.msra.mxu0 0
        %1609 = vmatprep.subr.bf16.mxu0 0
        %1610 = vmatpush1.bf16.msra.mxu0 0
        %1611 = vmatprep.subr.bf16.mxu0 0
        %1612 = vmatpush1.bf16.msra.mxu0 0
        %1613 = vmatprep.subr.bf16.mxu0 0
        %1614 = vmatpush1.bf16.msra.mxu0 0
        %1615 = vmatprep.subr.bf16.mxu0 0
        %1616 = vmatpush1.bf16.msra.mxu0 0
        %1617 = vmatprep.subr.bf16.mxu0 0
        %1618 = vmatpush1.bf16.msra.mxu0 0
        %1619 = vmatprep.mubr.bf16.mxu0 0
        %1620 = vmatmul.mubr.bf16.gmra.mrb[0].mxu0 %v467
        %v1621 = vpop.f32.mrb[0].mxu0
        %v1622 = vadd.f32 0.0, %v1621
        %v1623 = vpop.f32.mrb[0].mxu0
        %v1624 = vadd.f32 0.0, %v1623
        %v1625 = vpop.f32.mrb[0].mxu0
        %v1626 = vpop.f32.mrb[0].mxu0
        %1627 = vdwg.mxu0
        %1628 = vmatprep.subr.bf16.mxu0 %v1458
        %1629 = vmatpush1.bf16.msra.mxu0 %v1457
        %1630 = vmatprep.subr.bf16.mxu0 %v1500
        %1631 = vmatpush1.bf16.msra.mxu0 %v1497
        %1632 = vmatprep.subr.bf16.mxu0 0
        %1633 = vmatpush1.bf16.msra.mxu0 0
        %1634 = vmatprep.subr.bf16.mxu0 0
        %1635 = vmatpush1.bf16.msra.mxu0 0
        %1636 = vmatprep.subr.bf16.mxu0 0
        %1637 = vmatpush1.bf16.msra.mxu0 0
        %1638 = vmatprep.subr.bf16.mxu0 0
        %1639 = vmatpush1.bf16.msra.mxu0 0
        %1640 = vmatprep.subr.bf16.mxu0 0
        %1641 = vmatpush1.bf16.msra.mxu0 0
        %1642 = vmatprep.subr.bf16.mxu0 0
        %1643 = vmatpush1.bf16.msra.mxu0 0
        %1644 = vmatprep.subr.bf16.mxu0 0
        %1645 = vmatpush1.bf16.msra.mxu0 0
        %1646 = vmatprep.subr.bf16.mxu0 0
        %1647 = vmatpush1.bf16.msra.mxu0 0
        %1648 = vmatprep.subr.bf16.mxu0 0
        %1649 = vmatpush1.bf16.msra.mxu0 0
        %1650 = vmatprep.subr.bf16.mxu0 0
        %1651 = vmatpush1.bf16.msra.mxu0 0
        %1652 = vmatprep.subr.bf16.mxu0 0
        %1653 = vmatpush1.bf16.msra.mxu0 0
        %1654 = vmatprep.subr.bf16.mxu0 0
        %1655 = vmatpush1.bf16.msra.mxu0 0
        %1656 = vmatprep.subr.bf16.mxu0 0
        %1657 = vmatpush1.bf16.msra.mxu0 0
        %1658 = vmatprep.subr.bf16.mxu0 0
        %1659 = vmatpush1.bf16.msra.mxu0 0
        %1660 = vmatprep.mubr.bf16.mxu0 0
        %1661 = vmatmul.mubr.bf16.gmra.mrb[0].mxu0 %v467
        %v1662 = vpop.f32.mrb[0].mxu0
        %v1663 = vadd.f32 0.0, %v1662
        %v1664 = vpop.f32.mrb[0].mxu0
        %v1665 = vadd.f32 0.0, %v1664
        %v1666 = vpop.f32.mrb[0].mxu0
        %v1667 = vpop.f32.mrb[0].mxu0
        %1668 = vdwg.mxu0
        %1669 = vmatprep.subr.bf16.mxu0 0
        %1670 = vmatpush1.bf16.msra.mxu0 %v1459
        %1671 = vmatprep.subr.bf16.mxu0 0
        %1672 = vmatpush1.bf16.msra.mxu0 %v1503
        %1673 = vmatprep.subr.bf16.mxu0 0
        %1674 = vmatpush1.bf16.msra.mxu0 0
        %1675 = vmatprep.subr.bf16.mxu0 0
        %1676 = vmatpush1.bf16.msra.mxu0 0
        %1677 = vmatprep.subr.bf16.mxu0 0
        %1678 = vmatpush1.bf16.msra.mxu0 0
        %1679 = vmatprep.subr.bf16.mxu0 0
        %1680 = vmatpush1.bf16.msra.mxu0 0
        %1681 = vmatprep.subr.bf16.mxu0 0
        %1682 = vmatpush1.bf16.msra.mxu0 0
        %1683 = vmatprep.subr.bf16.mxu0 0
        %1684 = vmatpush1.bf16.msra.mxu0 0
        %1685 = vmatprep.subr.bf16.mxu0 0
        %1686 = vmatpush1.bf16.msra.mxu0 0
        %1687 = vmatprep.subr.bf16.mxu0 0
        %1688 = vmatpush1.bf16.msra.mxu0 0
        %1689 = vmatprep.subr.bf16.mxu0 0
        %1690 = vmatpush1.bf16.msra.mxu0 0
        %1691 = vmatprep.subr.bf16.mxu0 0
        %1692 = vmatpush1.bf16.msra.mxu0 0
        %1693 = vmatprep.subr.bf16.mxu0 0
        %1694 = vmatpush1.bf16.msra.mxu0 0
        %1695 = vmatprep.subr.bf16.mxu0 0
        %1696 = vmatpush1.bf16.msra.mxu0 0
        %1697 = vmatprep.subr.bf16.mxu0 0
        %1698 = vmatpush1.bf16.msra.mxu0 0
        %1699 = vmatprep.subr.bf16.mxu0 0
        %1700 = vmatpush1.bf16.msra.mxu0 0
        %1701 = vmatprep.mubr.bf16.mxu0 0
        %1702 = vmatmul.mubr.bf16.gmra.mrb[0].mxu0 %v467
        %v1703 = vpop.f32.mrb[0].mxu0
        %v1704 = vadd.f32 0.0, %v1703
        %v1705 = vpop.f32.mrb[0].mxu0
        %v1706 = vpop.f32.mrb[0].mxu0
        %v1707 = vpop.f32.mrb[0].mxu0
        %1708 = vdwg.mxu0
        %v1709 = vmax.f32 %v535, %v870
        %v1710 = vmax.f32 %v537, %v872
        %v1711 = vmax.f32 %v576, %v911
        %v1712 = vmax.f32 %v578, %v913
        %v1713 = vmax.f32 %v617, %v952
        %v1714 = vmax.f32 %v619, %v954
        %v1715 = vmax.f32 %v658, %v993
        %v1716 = vmax.f32 %v660, %v995
        %v1717 = vmax.f32 %v699, %v1034
        %v1718 = vmax.f32 %v1205, %v1540
        %v1719 = vmax.f32 %v1207, %v1542
        %v1720 = vmax.f32 %v1246, %v1581
        %v1721 = vmax.f32 %v1248, %v1583
        %v1722 = vmax.f32 %v1287, %v1622
        %v1723 = vmax.f32 %v1289, %v1624
        %v1724 = vmax.f32 %v1328, %v1663
        %v1725 = vmax.f32 %v1330, %v1665
        %v1726 = vmax.f32 %v1369, %v1704
        %v1727 = vmax.f32 %v1709, %v1718
        %v1728 = vmax.f32 %v1710, %v1719
        %v1729 = vmax.f32 %v1711, %v1720
        %v1730 = vmax.f32 %v1712, %v1721
        %v1731 = vmax.f32 %v1713, %v1722
        %v1732 = vmax.f32 %v1714, %v1723
        %v1733 = vmax.f32 %v1715, %v1724
        %v1734 = vmax.f32 %v1716, %v1725
        %v1735 = vmax.f32 %v1717, %v1726
        %v1736 = vld [vmem:[%s2] sm:$0x3f]
        %1738 = vset.pattern.permute.xlu0 0
        %1739 = vperm.xlu0 %1738, %v1736
        %v1740 = vpop.permute.xlu0 %1739
        %v1742 = vadd.f32 %v1727, %v1740
        %v1743 = vadd.f32 %v1728, %v1740
        %v1744 = vadd.f32 %v1729, %v1740
        %v1745 = vadd.f32 %v1730, %v1740
        %v1746 = vadd.f32 %v1731, %v1740
        %v1747 = vadd.f32 %v1732, %v1740
        %v1748 = vadd.f32 %v1733, %v1740
        %v1749 = vadd.f32 %v1734, %v1740
        %v1750 = vadd.f32 %v1735, %v1740
        %v1751 = vmax.f32 %v1742, 0.0
        %v1752 = vmax.f32 %v1743, 0.0
        %v1753 = vmax.f32 %v1744, 0.0
        %v1754 = vmax.f32 %v1745, 0.0
        %v1755 = vmax.f32 %v1746, 0.0
        %v1756 = vmax.f32 %v1747, 0.0
        %v1757 = vmax.f32 %v1748, 0.0
        %v1758 = vmax.f32 %v1749, 0.0
        %v1759 = vmax.f32 %v1750, 0.0
        %v1760 = vpack.c.bf16 %v1751, %v1751
        %v1761 = vpack.c.bf16 %v1752, %v1752
        %v1762 = vpack.c.bf16 %v1753, %v1753
        %v1763 = vpack.c.bf16 %v1754, %v1754
        %v1764 = vpack.c.bf16 %v1755, %v1755
        %v1765 = vpack.c.bf16 %v1756, %v1756
        %v1766 = vpack.c.bf16 %v1757, %v1757
        %v1767 = vpack.c.bf16 %v1758, %v1758
        %v1768 = vpack.c.bf16 %v1759, %v1759
        %v1778 = vunpack.c.l.b16 %v1760
        %v1779 = vunpack.c.l.b16 %v1761
        %v1780 = vunpack.c.l.b16 %v1762
        %v1781 = vunpack.c.l.b16 %v1763
        %v1782 = vunpack.c.l.b16 %v1764
        %v1783 = vunpack.c.l.b16 %v1765
        %v1784 = vunpack.c.l.b16 %v1766
        %v1785 = vunpack.c.l.b16 %v1767
        %v1786 = vunpack.c.l.b16 %v1768
        %v1787 = vpack.c.b16 %v1779, %v1778
        %v1788 = vpack.c.b16 %v1781, %v1780
        %v1789 = vpack.c.b16 %v1783, %v1782
        %v1790 = vpack.c.b16 %v1785, %v1784
        %v1791 = vpack.c.b16 %v1786, %v1786
        %1797 = vst [vmem:[%s358] sm:$0x77] %v1787
        %1798 = vst [vmem:[%s358 + $0x8] sm:$0x77] %v1788
        %1799 = vst [vmem:[%s358 + $0x10] sm:$0x77] %v1789
        %1800 = vst [vmem:[%s358 + $0x18] sm:$0x77] %v1790
        %1801 = vst [vmem:[%s358 + $0x20] sm:$0x7] %v1791
        %s1802 = smul.u32 9, %s14
        %p1803 = scmp.lt.s32.totalorder %s1802, 17
        %s1804 = scalar_select %p1803, %s1802, 17
        %s1805 = smul.addr %s1804, 4
        %s1806 = scalar_lea.vmem %s3, %s1805
        // Predicated region
        $region59: #{lenet5_forward.2} parent=53 // pred_check
          %p1807 = pneg %p100
        $region60: #{lenet5_forward.2} parent=53 // pred_check_branch
          %1809 = sbr.rel (%p1807) target = $region62
        $region61: #{lenet5_forward.2} parent=53 // pred_region
          %s1810 = smul.u32 9, %s14
        $region62: #{lenet5_forward.2} parent=53 // pred_fallthru
          _
      $region54: #{lenet5_forward.2} parent=5 // pred_fallthru
        _
      %p1811 = scmp.le.s32.totalorder 2, %s9
      // Predicated region
      $region63: #{lenet5_forward.2} parent=5 // pred_check
        %p1812 = pneg %p1811
      $region64: #{lenet5_forward.2} parent=5 // pred_check_branch
        %1814 = sbr.rel (%p1812) target = $region66
      $region65: #{lenet5_forward.2} parent=5 // pred_region
        %s1815 = ssub.s32 %s9, 2
        // Predicated region
        $region67: #{lenet5_forward.2} parent=65 // pred_check
          %p1816 = pneg %p106
        $region68: #{lenet5_forward.2} parent=65 // pred_check_branch
          %1818 = sbr.rel (%p1816) target = $region70
        $region69: #{lenet5_forward.2} parent=65 // pred_region
          %s1819 = smul.u32 9, %s15
          %p1820 = scmp.lt.s32.totalorder %s1819, 17
          %s1821 = scalar_select %p1820, %s1819, 17
          %s1822 = smul.addr %s1821, 4
          %s1823 = scalar_lea.vmem %s3, %s1822
        $region70: #{lenet5_forward.2} parent=65 // pred_fallthru
          _
      $region66: #{lenet5_forward.2} parent=5 // pred_fallthru
        _
    $region6: #{lenet5_forward.2} parent=1 // loop_footer
      %s13 = sadd.s32 1, %s9
    $region7: #{lenet5_forward.2} parent=1 // loop_footer_branch
      %8 = sbr.rel target = $region3
    $region8: #{lenet5_forward.2} parent=1 // loop_exit
      _

// kernel: lenet5_forward.3
$region0: #{lenet5_forward.3}
  #allocation0 [shape = 'u32[]', space=smem, size = 0x4, offset = 0x4, fixed_abs, tag = 'smem constant byte address 0x4 - core index']
  #allocation1 [shape = 'u32[144,128]{1,0:T(1,128)}', space=vmem, size = 0x12000, scoped, tag = 'internal scratch']
  %s0 = inlined_call_operand.vmem [shape: bf16[4,16,16,150], index: 0, kind: input, shape index: {}]
  %s1 = inlined_call_operand.vmem [shape: bf16[150,16], index: 1, kind: input, shape index: {}]
  %s2 = inlined_call_operand.vmem [shape: f32[1,16], index: 2, kind: input, shape index: {}]
  %s3 = inlined_call_operand.vmem [shape: f32[16,16,120], index: 3, kind: input, shape index: {}]
  %s4 = inlined_call_operand.vmem [shape: f32[1,120], index: 4, kind: input, shape index: {}]
  %s5 = inlined_call_operand.vmem [shape: f32[120,84], index: 5, kind: input, shape index: {}]
  %s6 = inlined_call_operand.vmem [shape: f32[1,84], index: 6, kind: input, shape index: {}]
  %s7 = inlined_call_operand.vmem [shape: f32[84,10], index: 7, kind: input, shape index: {}]
  %s8 = inlined_call_operand.vmem [shape: f32[1,10], index: 8, kind: input, shape index: {}]
  %s9 = inlined_call_operand.vmem [shape: f32[16,10], index: 9, kind: output, shape index: {}]
  %s10 = sld [smem:[#allocation0]]
  $region107: #{lenet5_forward.3} parent=0
    _
  %s12 = ssub.s32 1, %s10
  %s13 = scalar_select 0, %s12, %s10
  $region1: #{lenet5_forward.3} parent=0
    #allocation2 [shape = 'u8[524288]{0}', space=vmem, size = 0x80000, scoped, tag = 'input window, operand 0']
    loop: start=0, step=1, limit=4
    $region2: #{lenet5_forward.3} parent=1 // loop_pre_header
      _
    $region3: #{lenet5_forward.3} parent=1 // loop_header
      %s15 = sphi 0, %s19
      %p16 = scmp.ge.s32.totalorder %s15, 4
      %s25 = sphi 0, %s27
      %s28 = sphi 0, %s25
      %s29 = sphi 0, %s28
      %s45 = sphi 0, %s29
      %s49 = sphi 0, %s49
      %s51 = sphi 0, %s49
      %s52 = sphi 0, %s51
      %s66 = sphi 0, %s52
      %s70 = sphi 0, %s70
      %s72 = sphi 0, %s70
      %s73 = sphi 0, %s72
      %s87 = sphi 0, %s73
      %s91 = sphi 0, %s91
      %s93 = sphi 0, %s91
      %s94 = sphi 0, %s93
      %s108 = sphi 0, %s94
      %s112 = sphi 0, %s112
      %s114 = sphi 0, %s112
      %s115 = sphi 0, %s114
      %s129 = sphi 0, %s115
      %s133 = sphi 0, %s133
      %s135 = sphi 0, %s133
      %s136 = sphi 0, %s135
      %s150 = sphi 0, %s136
      %s154 = sphi 0, %s154
      %s156 = sphi 0, %s154
      %s157 = sphi 0, %s156
      %s171 = sphi 0, %s157
      %s175 = sphi 0, %s175
      %s177 = sphi 0, %s175
      %s178 = sphi 0, %s177
      %s192 = sphi 0, %s178
      %s196 = sphi 0, %s196
      %s198 = sphi 0, %s196
      %s199 = sphi 0, %s198
      %s213 = sphi 0, %s199
      %s219 = sphi 0, %s221
      %s222 = sphi 0, %s219
      %s223 = sphi 0, %s222
      %s239 = sphi 0, %s223
    $region4: #{lenet5_forward.3} parent=1 // loop_header_branch
      %18 = sbr.rel (%p16) target = $region8
    $region5: #{lenet5_forward.3} parent=1 // loop_body
      %s20 = ssub.s32 %s15, 1
      %s21 = ssub.s32 %s15, 2
      %s22 = sadd.s32 %s15, 1
      %s23 = ssub.s32 %s15, %s22
      %p24 = scmp.eq.s32.totalorder %s23, 0
      %s26 = sadd.s32 %s25, 1
      %s27 = scalar_select %p24, %s25, %s26
      %p30 = pneg %p24
      %p31 = scmp.eq.s32.totalorder %s15, 1
      %p32 = por %p30, %p31
      %p33 = scmp.ne.s32.totalorder %s25, %s28
      %p34 = scmp.eq.s32.totalorder %s15, 0
      %p35 = por %p33, %p34
      %p36 = scmp.ne.s32.totalorder %s25, %s28
      %p37 = scmp.eq.s32.totalorder %s20, 1
      %p38 = por %p36, %p37
      %p39 = scmp.ne.s32.totalorder %s28, %s29
      %p40 = scmp.eq.s32.totalorder %s20, 0
      %p41 = por %p39, %p40
      %p42 = scmp.ne.s32.totalorder %s28, %s29
      %p43 = scmp.eq.s32.totalorder %s21, 1
      %p44 = por %p42, %p43
      %p46 = scmp.ne.s32.totalorder %s29, %s45
      %p47 = scmp.eq.s32.totalorder %s21, 0
      %p48 = por %p46, %p47
      %s50 = sadd.s32 %s49, 1
      %p53 = scmp.eq.s32.totalorder %s15, 1
      %p54 = scmp.ne.s32.totalorder %s49, %s51
      %p55 = scmp.eq.s32.totalorder %s15, 0
      %p56 = por %p54, %p55
      %p57 = scmp.ne.s32.totalorder %s49, %s51
      %p58 = scmp.eq.s32.totalorder %s20, 1
      %p59 = por %p57, %p58
      %p60 = scmp.ne.s32.totalorder %s51, %s52
      %p61 = scmp.eq.s32.totalorder %s20, 0
      %p62 = por %p60, %p61
      %p63 = scmp.ne.s32.totalorder %s51, %s52
      %p64 = scmp.eq.s32.totalorder %s21, 1
      %p65 = por %p63, %p64
      %p67 = scmp.ne.s32.totalorder %s52, %s66
      %p68 = scmp.eq.s32.totalorder %s21, 0
      %p69 = por %p67, %p68
      %s71 = sadd.s32 %s70, 1
      %p74 = scmp.eq.s32.totalorder %s15, 1
      %p75 = scmp.ne.s32.totalorder %s70, %s72
      %p76 = scmp.eq.s32.totalorder %s15, 0
      %p77 = por %p75, %p76
      %p78 = scmp.ne.s32.totalorder %s70, %s72
      %p79 = scmp.eq.s32.totalorder %s20, 1
      %p80 = por %p78, %p79
      %p81 = scmp.ne.s32.totalorder %s72, %s73
      %p82 = scmp.eq.s32.totalorder %s20, 0
      %p83 = por %p81, %p82
      %p84 = scmp.ne.s32.totalorder %s72, %s73
      %p85 = scmp.eq.s32.totalorder %s21, 1
      %p86 = por %p84, %p85
      %p88 = scmp.ne.s32.totalorder %s73, %s87
      %p89 = scmp.eq.s32.totalorder %s21, 0
      %p90 = por %p88, %p89
      %s92 = sadd.s32 %s91, 1
      %p95 = scmp.eq.s32.totalorder %s15, 1
      %p96 = scmp.ne.s32.totalorder %s91, %s93
      %p97 = scmp.eq.s32.totalorder %s15, 0
      %p98 = por %p96, %p97
      %p99 = scmp.ne.s32.totalorder %s91, %s93
      %p100 = scmp.eq.s32.totalorder %s20, 1
      %p101 = por %p99, %p100
      %p102 = scmp.ne.s32.totalorder %s93, %s94
      %p103 = scmp.eq.s32.totalorder %s20, 0
      %p104 = por %p102, %p103
      %p105 = scmp.ne.s32.totalorder %s93, %s94
      %p106 = scmp.eq.s32.totalorder %s21, 1
      %p107 = por %p105, %p106
      %p109 = scmp.ne.s32.totalorder %s94, %s108
      %p110 = scmp.eq.s32.totalorder %s21, 0
      %p111 = por %p109, %p110
      %s113 = sadd.s32 %s112, 1
      %p116 = scmp.eq.s32.totalorder %s15, 1
      %p117 = scmp.ne.s32.totalorder %s112, %s114
      %p118 = scmp.eq.s32.totalorder %s15, 0
      %p119 = por %p117, %p118
      %p120 = scmp.ne.s32.totalorder %s112, %s114
      %p121 = scmp.eq.s32.totalorder %s20, 1
      %p122 = por %p120, %p121
      %p123 = scmp.ne.s32.totalorder %s114, %s115
      %p124 = scmp.eq.s32.totalorder %s20, 0
      %p125 = por %p123, %p124
      %p126 = scmp.ne.s32.totalorder %s114, %s115
      %p127 = scmp.eq.s32.totalorder %s21, 1
      %p128 = por %p126, %p127
      %p130 = scmp.ne.s32.totalorder %s115, %s129
      %p131 = scmp.eq.s32.totalorder %s21, 0
      %p132 = por %p130, %p131
      %s134 = sadd.s32 %s133, 1
      %p137 = scmp.eq.s32.totalorder %s15, 1
      %p138 = scmp.ne.s32.totalorder %s133, %s135
      %p139 = scmp.eq.s32.totalorder %s15, 0
      %p140 = por %p138, %p139
      %p141 = scmp.ne.s32.totalorder %s133, %s135
      %p142 = scmp.eq.s32.totalorder %s20, 1
      %p143 = por %p141, %p142
      %p144 = scmp.ne.s32.totalorder %s135, %s136
      %p145 = scmp.eq.s32.totalorder %s20, 0
      %p146 = por %p144, %p145
      %p147 = scmp.ne.s32.totalorder %s135, %s136
      %p148 = scmp.eq.s32.totalorder %s21, 1
      %p149 = por %p147, %p148
      %p151 = scmp.ne.s32.totalorder %s136, %s150
      %p152 = scmp.eq.s32.totalorder %s21, 0
      %p153 = por %p151, %p152
      %s155 = sadd.s32 %s154, 1
      %p158 = scmp.eq.s32.totalorder %s15, 1
      %p159 = scmp.ne.s32.totalorder %s154, %s156
      %p160 = scmp.eq.s32.totalorder %s15, 0
      %p161 = por %p159, %p160
      %p162 = scmp.ne.s32.totalorder %s154, %s156
      %p163 = scmp.eq.s32.totalorder %s20, 1
      %p164 = por %p162, %p163
      %p165 = scmp.ne.s32.totalorder %s156, %s157
      %p166 = scmp.eq.s32.totalorder %s20, 0
      %p167 = por %p165, %p166
      %p168 = scmp.ne.s32.totalorder %s156, %s157
      %p169 = scmp.eq.s32.totalorder %s21, 1
      %p170 = por %p168, %p169
      %p172 = scmp.ne.s32.totalorder %s157, %s171
      %p173 = scmp.eq.s32.totalorder %s21, 0
      %p174 = por %p172, %p173
      %s176 = sadd.s32 %s175, 1
      %p179 = scmp.eq.s32.totalorder %s15, 1
      %p180 = scmp.ne.s32.totalorder %s175, %s177
      %p181 = scmp.eq.s32.totalorder %s15, 0
      %p182 = por %p180, %p181
      %p183 = scmp.ne.s32.totalorder %s175, %s177
      %p184 = scmp.eq.s32.totalorder %s20, 1
      %p185 = por %p183, %p184
      %p186 = scmp.ne.s32.totalorder %s177, %s178
      %p187 = scmp.eq.s32.totalorder %s20, 0
      %p188 = por %p186, %p187
      %p189 = scmp.ne.s32.totalorder %s177, %s178
      %p190 = scmp.eq.s32.totalorder %s21, 1
      %p191 = por %p189, %p190
      %p193 = scmp.ne.s32.totalorder %s178, %s192
      %p194 = scmp.eq.s32.totalorder %s21, 0
      %p195 = por %p193, %p194
      %s197 = sadd.s32 %s196, 1
      %p200 = scmp.eq.s32.totalorder %s15, 1
      %p201 = scmp.ne.s32.totalorder %s196, %s198
      %p202 = scmp.eq.s32.totalorder %s15, 0
      %p203 = por %p201, %p202
      %p204 = scmp.ne.s32.totalorder %s196, %s198
      %p205 = scmp.eq.s32.totalorder %s20, 1
      %p206 = por %p204, %p205
      %p207 = scmp.ne.s32.totalorder %s198, %s199
      %p208 = scmp.eq.s32.totalorder %s20, 0
      %p209 = por %p207, %p208
      %p210 = scmp.ne.s32.totalorder %s198, %s199
      %p211 = scmp.eq.s32.totalorder %s21, 1
      %p212 = por %p210, %p211
      %p214 = scmp.ne.s32.totalorder %s199, %s213
      %p215 = scmp.eq.s32.totalorder %s21, 0
      %p216 = por %p214, %p215
      %s217 = ssub.s32 %s15, %s22
      %p218 = scmp.eq.s32.totalorder %s217, 0
      %s220 = sadd.s32 %s219, 1
      %s221 = scalar_select %p218, %s219, %s220
      %p224 = pneg %p218
      %p225 = scmp.eq.s32.totalorder %s15, 1
      %p226 = por %p224, %p225
      %p227 = scmp.ne.s32.totalorder %s219, %s222
      %p228 = scmp.eq.s32.totalorder %s15, 0
      %p229 = por %p227, %p228
      %p230 = scmp.ne.s32.totalorder %s219, %s222
      %p231 = scmp.eq.s32.totalorder %s20, 1
      %p232 = por %p230, %p231
      %p233 = scmp.ne.s32.totalorder %s222, %s223
      %p234 = scmp.eq.s32.totalorder %s20, 0
      %p235 = por %p233, %p234
      %p236 = scmp.ne.s32.totalorder %s222, %s223
      %p237 = scmp.eq.s32.totalorder %s21, 1
      %p238 = por %p236, %p237
      %p240 = scmp.ne.s32.totalorder %s223, %s239
      %p241 = scmp.eq.s32.totalorder %s21, 0
      %p242 = por %p240, %p241
      %p243 = scmp.le.s32.totalorder 1, %s15
      %p244 = scmp.lt.s32.totalorder %s15, 3
      %p245 = pnand %p243, %p244
      %p246 = pneg %p245
      // Predicated region
      $region9: #{lenet5_forward.3} parent=5 // pred_check
        _
      $region10: #{lenet5_forward.3} parent=5 // pred_check_branch
        %248 = sbr.rel (%p245) target = $region12
      $region11: #{lenet5_forward.3} parent=5 // pred_region
        %s249 = ssub.s32 %s15, 1
        // Predicated region
        $region13: #{lenet5_forward.3} parent=11 // pred_check
          %p250 = pneg %p62
        $region14: #{lenet5_forward.3} parent=11 // pred_check_branch
          %252 = sbr.rel (%p250) target = $region16
        $region15: #{lenet5_forward.3} parent=11 // pred_region
          _
        $region16: #{lenet5_forward.3} parent=11 // pred_fallthru
          _
        // Predicated region
        $region17: #{lenet5_forward.3} parent=11 // pred_check
          %p253 = pneg %p83
        $region18: #{lenet5_forward.3} parent=11 // pred_check_branch
          %255 = sbr.rel (%p253) target = $region20
        $region19: #{lenet5_forward.3} parent=11 // pred_region
          _
        $region20: #{lenet5_forward.3} parent=11 // pred_fallthru
          _
        // Predicated region
        $region21: #{lenet5_forward.3} parent=11 // pred_check
          %p256 = pneg %p104
        $region22: #{lenet5_forward.3} parent=11 // pred_check_branch
          %258 = sbr.rel (%p256) target = $region24
        $region23: #{lenet5_forward.3} parent=11 // pred_region
          _
        $region24: #{lenet5_forward.3} parent=11 // pred_fallthru
          _
        // Predicated region
        $region25: #{lenet5_forward.3} parent=11 // pred_check
          %p259 = pneg %p125
        $region26: #{lenet5_forward.3} parent=11 // pred_check_branch
          %261 = sbr.rel (%p259) target = $region28
        $region27: #{lenet5_forward.3} parent=11 // pred_region
          _
        $region28: #{lenet5_forward.3} parent=11 // pred_fallthru
          _
        // Predicated region
        $region29: #{lenet5_forward.3} parent=11 // pred_check
          %p262 = pneg %p146
        $region30: #{lenet5_forward.3} parent=11 // pred_check_branch
          %264 = sbr.rel (%p262) target = $region32
        $region31: #{lenet5_forward.3} parent=11 // pred_region
          _
        $region32: #{lenet5_forward.3} parent=11 // pred_fallthru
          _
        // Predicated region
        $region33: #{lenet5_forward.3} parent=11 // pred_check
          %p265 = pneg %p167
        $region34: #{lenet5_forward.3} parent=11 // pred_check_branch
          %267 = sbr.rel (%p265) target = $region36
        $region35: #{lenet5_forward.3} parent=11 // pred_region
          _
        $region36: #{lenet5_forward.3} parent=11 // pred_fallthru
          _
        // Predicated region
        $region37: #{lenet5_forward.3} parent=11 // pred_check
          %p268 = pneg %p188
        $region38: #{lenet5_forward.3} parent=11 // pred_check_branch
          %270 = sbr.rel (%p268) target = $region40
        $region39: #{lenet5_forward.3} parent=11 // pred_region
          _
        $region40: #{lenet5_forward.3} parent=11 // pred_fallthru
          _
        // Predicated region
        $region41: #{lenet5_forward.3} parent=11 // pred_check
          %p271 = pneg %p209
        $region42: #{lenet5_forward.3} parent=11 // pred_check_branch
          %273 = sbr.rel (%p271) target = $region44
        $region43: #{lenet5_forward.3} parent=11 // pred_region
          _
        $region44: #{lenet5_forward.3} parent=11 // pred_fallthru
          _
      $region12: #{lenet5_forward.3} parent=5 // pred_fallthru
        _
      %p274 = scmp.lt.s32.totalorder %s15, 2
      // Predicated region
      $region45: #{lenet5_forward.3} parent=5 // pred_check
        %p275 = pneg %p274
      $region46: #{lenet5_forward.3} parent=5 // pred_check_branch
        %277 = sbr.rel (%p275) target = $region48
      $region47: #{lenet5_forward.3} parent=5 // pred_region
        // Predicated region
        $region49: #{lenet5_forward.3} parent=47 // pred_check
          %p278 = pneg %p35
        $region50: #{lenet5_forward.3} parent=47 // pred_check_branch
          %280 = sbr.rel (%p278) target = $region52
        $region51: #{lenet5_forward.3} parent=47 // pred_region
          %s281 = sand.u32 %s25, 1
          %s282 = sand.u32 %s25, 1
          %s283 = smul.addr %s282, 512
          %s284 = scalar_lea.vmem [#allocation2], %s283
          %s285 = smul.addr %s15, 2
          %s286 = smul.addr %s285, 4
          %s287 = scalar_lea.vmem %s0, %s286
          // Predicated region
          $region53: #{lenet5_forward.3} parent=51 // pred_check
            _
          $region54: #{lenet5_forward.3} parent=51 // pred_check_branch
            %289 = sbr.rel (0) target = $region56
          $region55: #{lenet5_forward.3} parent=51 // pred_region
            // Predicated region
            $region57: #{lenet5_forward.3} parent=55 // pred_check
              _
            $region58: #{lenet5_forward.3} parent=55 // pred_check_branch
              %291 = sbr.rel (0) target = $region60
            $region59: #{lenet5_forward.3} parent=55 // pred_region
              // Predicated region
              $region72: #{lenet5_forward.3} parent=59 // pred_check
                _
              $region73: #{lenet5_forward.3} parent=59 // pred_check_branch
                %432 = sbr.rel (0) target = $region75
              $region74: #{lenet5_forward.3} parent=59 // pred_region
                loop: start=0, step=1, limit=1
                $region76: #{lenet5_forward.3} parent=74 // loop_pre_header
                  _
                $region77: #{lenet5_forward.3} parent=74 // loop_header
                  %s434 = sphi 0, %s438
                  %p435 = scmp.ge.s32.totalorder %s434, 1
                  %s439 = sphi %s287, %s287
                  %s440 = sphi %s284, %s284
                $region78: #{lenet5_forward.3} parent=74 // loop_header_branch
                  %437 = sbr.rel (%p435) target = $region82
                $region79: #{lenet5_forward.3} parent=74 // loop_body
                  %v441 = vld [vmem:[%s439] sm:$0xff]
                  %442 = vst [vmem:[%s440] sm:$0xff] %v441
                  %v443 = vld [vmem:[%s439 + $0x10] sm:$0xff]
                  %444 = vst [vmem:[%s440 + $0x8] sm:$0xff] %v443
                  %v445 = vld [vmem:[%s439 + $0x20] sm:$0xff]
                  %446 = vst [vmem:[%s440 + $0x10] sm:$0xff] %v445
                  %v447 = vld [vmem:[%s439 + $0x30] sm:$0xff]
                  %448 = vst [vmem:[%s440 + $0x18] sm:$0xff] %v447
                  %v449 = vld [vmem:[%s439 + $0x40] sm:$0xff]
                  %450 = vst [vmem:[%s440 + $0x20] sm:$0xff] %v449
                  %v451 = vld [vmem:[%s439 + $0x50] sm:$0xff]
                  %452 = vst [vmem:[%s440 + $0x28] sm:$0xff] %v451
                  %v453 = vld [vmem:[%s439 + $0x60] sm:$0xff]
                  %454 = vst [vmem:[%s440 + $0x30] sm:$0xff] %v453
                  %v455 = vld [vmem:[%s439 + $0x70] sm:$0xff]
                  %456 = vst [vmem:[%s440 + $0x38] sm:$0xff] %v455
                  %v457 = vld [vmem:[%s439 + $0x80] sm:$0xff]
                  %458 = vst [vmem:[%s440 + $0x40] sm:$0xff] %v457
                  %v459 = vld [vmem:[%s439 + $0x90] sm:$0xff]
                  %460 = vst [vmem:[%s440 + $0x48] sm:$0xff] %v459
                  %v461 = vld [vmem:[%s439 + $0xa0] sm:$0xff]
                  %462 = vst [vmem:[%s440 + $0x50] sm:$0xff] %v461
                  %v463 = vld [vmem:[%s439 + $0xb0] sm:$0xff]
                  %464 = vst [vmem:[%s440 + $0x58] sm:$0xff] %v463
                  %v465 = vld [vmem:[%s439 + $0xc0] sm:$0xff]
                  %466 = vst [vmem:[%s440 + $0x60] sm:$0xff] %v465
                  %v467 = vld [vmem:[%s439 + $0xd0] sm:$0xff]
                  %468 = vst [vmem:[%s440 + $0x68] sm:$0xff] %v467
                  %v469 = vld [vmem:[%s439 + $0xe0] sm:$0xff]
                  %470 = vst [vmem:[%s440 + $0x70] sm:$0xff] %v469
                  %v471 = vld [vmem:[%s439 + $0xf0] sm:$0xff]
                  %472 = vst [vmem:[%s440 + $0x78] sm:$0xff] %v471
                  %v473 = vld [vmem:[%s439 + $0x100] sm:$0xff]
                  %474 = vst [vmem:[%s440 + $0x80] sm:$0xff] %v473
                  %v475 = vld [vmem:[%s439 + $0x110] sm:$0xff]
                  %476 = vst [vmem:[%s440 + $0x88] sm:$0xff] %v475
                  %v477 = vld [vmem:[%s439 + $0x120] sm:$0xff]
                  %478 = vst [vmem:[%s440 + $0x90] sm:$0xff] %v477
                  %v479 = vld [vmem:[%s439 + $0x130] sm:$0xff]
                  %480 = vst [vmem:[%s440 + $0x98] sm:$0xff] %v479
                  %v481 = vld [vmem:[%s439 + $0x140] sm:$0xff]
                  %482 = vst [vmem:[%s440 + $0xa0] sm:$0xff] %v481
                  %v483 = vld [vmem:[%s439 + $0x150] sm:$0xff]
                  %484 = vst [vmem:[%s440 + $0xa8] sm:$0xff] %v483
                  %v485 = vld [vmem:[%s439 + $0x160] sm:$0xff]
                  %486 = vst [vmem:[%s440 + $0xb0] sm:$0xff] %v485
                  %v487 = vld [vmem:[%s439 + $0x170] sm:$0xff]
                  %488 = vst [vmem:[%s440 + $0xb8] sm:$0xff] %v487
                  %v489 = vld [vmem:[%s439 + $0x180] sm:$0xff]
                  %490 = vst [vmem:[%s440 + $0xc0] sm:$0xff] %v489
                  %v491 = vld [vmem:[%s439 + $0x190] sm:$0xff]
                  %492 = vst [vmem:[%s440 + $0xc8] sm:$0xff] %v491
                  %v493 = vld [vmem:[%s439 + $0x1a0] sm:$0xff]
                  %494 = vst [vmem:[%s440 + $0xd0] sm:$0xff] %v493
                  %v495 = vld [vmem:[%s439 + $0x1b0] sm:$0xff]
                  %496 = vst [vmem:[%s440 + $0xd8] sm:$0xff] %v495
                  %v497 = vld [vmem:[%s439 + $0x1c0] sm:$0xff]
                  %498 = vst [vmem:[%s440 + $0xe0] sm:$0xff] %v497
                  %v499 = vld [vmem:[%s439 + $0x1d0] sm:$0xff]
                  %500 = vst [vmem:[%s440 + $0xe8] sm:$0xff] %v499
                  %v501 = vld [vmem:[%s439 + $0x1e0] sm:$0xff]
                  %502 = vst [vmem:[%s440 + $0xf0] sm:$0xff] %v501
                  %v503 = vld [vmem:[%s439 + $0x1f0] sm:$0xff]
                  %504 = vst [vmem:[%s440 + $0xf8] sm:$0xff] %v503
                  %v505 = vld [vmem:[%s439 + $0x200] sm:$0xff]
                  %506 = vst [vmem:[%s440 + $0x100] sm:$0xff] %v505
                  %v507 = vld [vmem:[%s439 + $0x210] sm:$0xff]
                  %508 = vst [vmem:[%s440 + $0x108] sm:$0xff] %v507
                  %v509 = vld [vmem:[%s439 + $0x220] sm:$0xff]
                  %510 = vst [vmem:[%s440 + $0x110] sm:$0xff] %v509
                  %v511 = vld [vmem:[%s439 + $0x230] sm:$0xff]
                  %512 = vst [vmem:[%s440 + $0x118] sm:$0xff] %v511
                  %v513 = vld [vmem:[%s439 + $0x240] sm:$0xff]
                  %514 = vst [vmem:[%s440 + $0x120] sm:$0xff] %v513
                  %v515 = vld [vmem:[%s439 + $0x250] sm:$0xff]
                  %516 = vst [vmem:[%s440 + $0x128] sm:$0xff] %v515
                  %v517 = vld [vmem:[%s439 + $0x260] sm:$0xff]
                  %518 = vst [vmem:[%s440 + $0x130] sm:$0xff] %v517
                  %v519 = vld [vmem:[%s439 + $0x270] sm:$0xff]
                  %520 = vst [vmem:[%s440 + $0x138] sm:$0xff] %v519
                  %v521 = vld [vmem:[%s439 + $0x280] sm:$0xff]
                  %522 = vst [vmem:[%s440 + $0x140] sm:$0xff] %v521
                  %v523 = vld [vmem:[%s439 + $0x290] sm:$0xff]
                  %524 = vst [vmem:[%s440 + $0x148] sm:$0xff] %v523
                  %v525 = vld [vmem:[%s439 + $0x2a0] sm:$0xff]
                  %526 = vst [vmem:[%s440 + $0x150] sm:$0xff] %v525
                  %v527 = vld [vmem:[%s439 + $0x2b0] sm:$0xff]
                  %528 = vst [vmem:[%s440 + $0x158] sm:$0xff] %v527
                  %v529 = vld [vmem:[%s439 + $0x2c0] sm:$0xff]
                  %530 = vst [vmem:[%s440 + $0x160] sm:$0xff] %v529
                  %v531 = vld [vmem:[%s439 + $0x2d0] sm:$0xff]
                  %532 = vst [vmem:[%s440 + $0x168] sm:$0xff] %v531
                  %v533 = vld [vmem:[%s439 + $0x2e0] sm:$0xff]
                  %534 = vst [vmem:[%s440 + $0x170] sm:$0xff] %v533
                  %v535 = vld [vmem:[%s439 + $0x2f0] sm:$0xff]
                  %536 = vst [vmem:[%s440 + $0x178] sm:$0xff] %v535
                  %v537 = vld [vmem:[%s439 + $0x300] sm:$0xff]
                  %538 = vst [vmem:[%s440 + $0x180] sm:$0xff] %v537
                  %v539 = vld [vmem:[%s439 + $0x310] sm:$0xff]
                  %540 = vst [vmem:[%s440 + $0x188] sm:$0xff] %v539
                  %v541 = vld [vmem:[%s439 + $0x320] sm:$0xff]
                  %542 = vst [vmem:[%s440 + $0x190] sm:$0xff] %v541
                  %v543 = vld [vmem:[%s439 + $0x330] sm:$0xff]
                  %544 = vst [vmem:[%s440 + $0x198] sm:$0xff] %v543
                  %v545 = vld [vmem:[%s439 + $0x340] sm:$0xff]
                  %546 = vst [vmem:[%s440 + $0x1a0] sm:$0xff] %v545
                  %v547 = vld [vmem:[%s439 + $0x350] sm:$0xff]
                  %548 = vst [vmem:[%s440 + $0x1a8] sm:$0xff] %v547
                  %v549 = vld [vmem:[%s439 + $0x360] sm:$0xff]
                  %550 = vst [vmem:[%s440 + $0x1b0] sm:$0xff] %v549
                  %v551 = vld [vmem:[%s439 + $0x370] sm:$0xff]
                  %552 = vst [vmem:[%s440 + $0x1b8] sm:$0xff] %v551
                  %v553 = vld [vmem:[%s439 + $0x380] sm:$0xff]
                  %554 = vst [vmem:[%s440 + $0x1c0] sm:$0xff] %v553
                  %v555 = vld [vmem:[%s439 + $0x390] sm:$0xff]
                  %556 = vst [vmem:[%s440 + $0x1c8] sm:$0xff] %v555
                  %v557 = vld [vmem:[%s439 + $0x3a0] sm:$0xff]
                  %558 = vst [vmem:[%s440 + $0x1d0] sm:$0xff] %v557
                  %v559 = vld [vmem:[%s439 + $0x3b0] sm:$0xff]
                  %560 = vst [vmem:[%s440 + $0x1d8] sm:$0xff] %v559
                  %v561 = vld [vmem:[%s439 + $0x3c0] sm:$0xff]
                  %562 = vst [vmem:[%s440 + $0x1e0] sm:$0xff] %v561
                  %v563 = vld [vmem:[%s439 + $0x3d0] sm:$0xff]
                  %564 = vst [vmem:[%s440 + $0x1e8] sm:$0xff] %v563
                  %v565 = vld [vmem:[%s439 + $0x3e0] sm:$0xff]
                  %566 = vst [vmem:[%s440 + $0x1f0] sm:$0xff] %v565
                  %v567 = vld [vmem:[%s439 + $0x3f0] sm:$0xff]
                  %568 = vst [vmem:[%s440 + $0x1f8] sm:$0xff] %v567
                $region80: #{lenet5_forward.3} parent=74 // loop_footer
                  %s438 = sadd.s32 1, %s434
                $region81: #{lenet5_forward.3} parent=74 // loop_footer_branch
                  %433 = sbr.rel target = $region77
                $region82: #{lenet5_forward.3} parent=74 // loop_exit
                  _
              $region75: #{lenet5_forward.3} parent=59 // pred_fallthru
                _
              // Predicated region
              $region83: #{lenet5_forward.3} parent=59 // pred_check
                _
              $region84: #{lenet5_forward.3} parent=59 // pred_check_branch
                %570 = sbr.rel target = $region86
              $region85: #{lenet5_forward.3} parent=59 // pred_region
                _
              $region86: #{lenet5_forward.3} parent=59 // pred_fallthru
                _
            $region60: #{lenet5_forward.3} parent=55 // pred_fallthru
              _
            // Predicated region
            $region61: #{lenet5_forward.3} parent=55 // pred_check
              _
            $region62: #{lenet5_forward.3} parent=55 // pred_check_branch
              %293 = sbr.rel target = $region64
            $region63: #{lenet5_forward.3} parent=55 // pred_region
              loop: start=0, step=1, limit=1
              $region65: #{lenet5_forward.3} parent=63 // loop_pre_header
                _
              $region66: #{lenet5_forward.3} parent=63 // loop_header
                %s296 = sphi 0, %s300
                %p297 = scmp.ge.s32.totalorder %s296, 1
                %s301 = sphi %s287, %s287
                %s302 = sphi %s284, %s284
              $region67: #{lenet5_forward.3} parent=63 // loop_header_branch
                %299 = sbr.rel (%p297) target = $region71
              $region68: #{lenet5_forward.3} parent=63 // loop_body
                %v303 = vld [vmem:[%s301] sm:$0xff]
                %304 = vst [vmem:[%s302] sm:$0xff] %v303
                %v305 = vld [vmem:[%s301 + $0x10] sm:$0xff]
                %306 = vst [vmem:[%s302 + $0x8] sm:$0xff] %v305
                %v307 = vld [vmem:[%s301 + $0x20] sm:$0xff]
                %308 = vst [vmem:[%s302 + $0x10] sm:$0xff] %v307
                %v309 = vld [vmem:[%s301 + $0x30] sm:$0xff]
                %310 = vst [vmem:[%s302 + $0x18] sm:$0xff] %v309
                %v311 = vld [vmem:[%s301 + $0x40] sm:$0xff]
                %312 = vst [vmem:[%s302 + $0x20] sm:$0xff] %v311
                %v313 = vld [vmem:[%s301 + $0x50] sm:$0xff]
                %314 = vst [vmem:[%s302 + $0x28] sm:$0xff] %v313
                %v315 = vld [vmem:[%s301 + $0x60] sm:$0xff]
                %316 = vst [vmem:[%s302 + $0x30] sm:$0xff] %v315
                %v317 = vld [vmem:[%s301 + $0x70] sm:$0xff]
                %318 = vst [vmem:[%s302 + $0x38] sm:$0xff] %v317
                %v319 = vld [vmem:[%s301 + $0x80] sm:$0xff]
                %320 = vst [vmem:[%s302 + $0x40] sm:$0xff] %v319
                %v321 = vld [vmem:[%s301 + $0x90] sm:$0xff]
                %322 = vst [vmem:[%s302 + $0x48] sm:$0xff] %v321
                %v323 = vld [vmem:[%s301 + $0xa0] sm:$0xff]
                %324 = vst [vmem:[%s302 + $0x50] sm:$0xff] %v323
                %v325 = vld [vmem:[%s301 + $0xb0] sm:$0xff]
                %326 = vst [vmem:[%s302 + $0x58] sm:$0xff] %v325
                %v327 = vld [vmem:[%s301 + $0xc0] sm:$0xff]
                %328 = vst [vmem:[%s302 + $0x60] sm:$0xff] %v327
                %v329 = vld [vmem:[%s301 + $0xd0] sm:$0xff]
                %330 = vst [vmem:[%s302 + $0x68] sm:$0xff] %v329
                %v331 = vld [vmem:[%s301 + $0xe0] sm:$0xff]
                %332 = vst [vmem:[%s302 + $0x70] sm:$0xff] %v331
                %v333 = vld [vmem:[%s301 + $0xf0] sm:$0xff]
                %334 = vst [vmem:[%s302 + $0x78] sm:$0xff] %v333
                %v335 = vld [vmem:[%s301 + $0x100] sm:$0xff]
                %336 = vst [vmem:[%s302 + $0x80] sm:$0xff] %v335
                %v337 = vld [vmem:[%s301 + $0x110] sm:$0xff]
                %338 = vst [vmem:[%s302 + $0x88] sm:$0xff] %v337
                %v339 = vld [vmem:[%s301 + $0x120] sm:$0xff]
                %340 = vst [vmem:[%s302 + $0x90] sm:$0xff] %v339
                %v341 = vld [vmem:[%s301 + $0x130] sm:$0xff]
                %342 = vst [vmem:[%s302 + $0x98] sm:$0xff] %v341
                %v343 = vld [vmem:[%s301 + $0x140] sm:$0xff]
                %344 = vst [vmem:[%s302 + $0xa0] sm:$0xff] %v343
                %v345 = vld [vmem:[%s301 + $0x150] sm:$0xff]
                %346 = vst [vmem:[%s302 + $0xa8] sm:$0xff] %v345
                %v347 = vld [vmem:[%s301 + $0x160] sm:$0xff]
                %348 = vst [vmem:[%s302 + $0xb0] sm:$0xff] %v347
                %v349 = vld [vmem:[%s301 + $0x170] sm:$0xff]
                %350 = vst [vmem:[%s302 + $0xb8] sm:$0xff] %v349
                %v351 = vld [vmem:[%s301 + $0x180] sm:$0xff]
                %352 = vst [vmem:[%s302 + $0xc0] sm:$0xff] %v351
                %v353 = vld [vmem:[%s301 + $0x190] sm:$0xff]
                %354 = vst [vmem:[%s302 + $0xc8] sm:$0xff] %v353
                %v355 = vld [vmem:[%s301 + $0x1a0] sm:$0xff]
                %356 = vst [vmem:[%s302 + $0xd0] sm:$0xff] %v355
                %v357 = vld [vmem:[%s301 + $0x1b0] sm:$0xff]
                %358 = vst [vmem:[%s302 + $0xd8] sm:$0xff] %v357
                %v359 = vld [vmem:[%s301 + $0x1c0] sm:$0xff]
                %360 = vst [vmem:[%s302 + $0xe0] sm:$0xff] %v359
                %v361 = vld [vmem:[%s301 + $0x1d0] sm:$0xff]
                %362 = vst [vmem:[%s302 + $0xe8] sm:$0xff] %v361
                %v363 = vld [vmem:[%s301 + $0x1e0] sm:$0xff]
                %364 = vst [vmem:[%s302 + $0xf0] sm:$0xff] %v363
                %v365 = vld [vmem:[%s301 + $0x1f0] sm:$0xff]
                %366 = vst [vmem:[%s302 + $0xf8] sm:$0xff] %v365
                %v367 = vld [vmem:[%s301 + $0x200] sm:$0xff]
                %368 = vst [vmem:[%s302 + $0x100] sm:$0xff] %v367
                %v369 = vld [vmem:[%s301 + $0x210] sm:$0xff]
                %370 = vst [vmem:[%s302 + $0x108] sm:$0xff] %v369
                %v371 = vld [vmem:[%s301 + $0x220] sm:$0xff]
                %372 = vst [vmem:[%s302 + $0x110] sm:$0xff] %v371
                %v373 = vld [vmem:[%s301 + $0x230] sm:$0xff]
                %374 = vst [vmem:[%s302 + $0x118] sm:$0xff] %v373
                %v375 = vld [vmem:[%s301 + $0x240] sm:$0xff]
                %376 = vst [vmem:[%s302 + $0x120] sm:$0xff] %v375
                %v377 = vld [vmem:[%s301 + $0x250] sm:$0xff]
                %378 = vst [vmem:[%s302 + $0x128] sm:$0xff] %v377
                %v379 = vld [vmem:[%s301 + $0x260] sm:$0xff]
                %380 = vst [vmem:[%s302 + $0x130] sm:$0xff] %v379
                %v381 = vld [vmem:[%s301 + $0x270] sm:$0xff]
                %382 = vst [vmem:[%s302 + $0x138] sm:$0xff] %v381
                %v383 = vld [vmem:[%s301 + $0x280] sm:$0xff]
                %384 = vst [vmem:[%s302 + $0x140] sm:$0xff] %v383
                %v385 = vld [vmem:[%s301 + $0x290] sm:$0xff]
                %386 = vst [vmem:[%s302 + $0x148] sm:$0xff] %v385
                %v387 = vld [vmem:[%s301 + $0x2a0] sm:$0xff]
                %388 = vst [vmem:[%s302 + $0x150] sm:$0xff] %v387
                %v389 = vld [vmem:[%s301 + $0x2b0] sm:$0xff]
                %390 = vst [vmem:[%s302 + $0x158] sm:$0xff] %v389
                %v391 = vld [vmem:[%s301 + $0x2c0] sm:$0xff]
                %392 = vst [vmem:[%s302 + $0x160] sm:$0xff] %v391
                %v393 = vld [vmem:[%s301 + $0x2d0] sm:$0xff]
                %394 = vst [vmem:[%s302 + $0x168] sm:$0xff] %v393
                %v395 = vld [vmem:[%s301 + $0x2e0] sm:$0xff]
                %396 = vst [vmem:[%s302 + $0x170] sm:$0xff] %v395
                %v397 = vld [vmem:[%s301 + $0x2f0] sm:$0xff]
                %398 = vst [vmem:[%s302 + $0x178] sm:$0xff] %v397
                %v399 = vld [vmem:[%s301 + $0x300] sm:$0xff]
                %400 = vst [vmem:[%s302 + $0x180] sm:$0xff] %v399
                %v401 = vld [vmem:[%s301 + $0x310] sm:$0xff]
                %402 = vst [vmem:[%s302 + $0x188] sm:$0xff] %v401
                %v403 = vld [vmem:[%s301 + $0x320] sm:$0xff]
                %404 = vst [vmem:[%s302 + $0x190] sm:$0xff] %v403
                %v405 = vld [vmem:[%s301 + $0x330] sm:$0xff]
                %406 = vst [vmem:[%s302 + $0x198] sm:$0xff] %v405
                %v407 = vld [vmem:[%s301 + $0x340] sm:$0xff]
                %408 = vst [vmem:[%s302 + $0x1a0] sm:$0xff] %v407
                %v409 = vld [vmem:[%s301 + $0x350] sm:$0xff]
                %410 = vst [vmem:[%s302 + $0x1a8] sm:$0xff] %v409
                %v411 = vld [vmem:[%s301 + $0x360] sm:$0xff]
                %412 = vst [vmem:[%s302 + $0x1b0] sm:$0xff] %v411
                %v413 = vld [vmem:[%s301 + $0x370] sm:$0xff]
                %414 = vst [vmem:[%s302 + $0x1b8] sm:$0xff] %v413
                %v415 = vld [vmem:[%s301 + $0x380] sm:$0xff]
                %416 = vst [vmem:[%s302 + $0x1c0] sm:$0xff] %v415
                %v417 = vld [vmem:[%s301 + $0x390] sm:$0xff]
                %418 = vst [vmem:[%s302 + $0x1c8] sm:$0xff] %v417
                %v419 = vld [vmem:[%s301 + $0x3a0] sm:$0xff]
                %420 = vst [vmem:[%s302 + $0x1d0] sm:$0xff] %v419
                %v421 = vld [vmem:[%s301 + $0x3b0] sm:$0xff]
                %422 = vst [vmem:[%s302 + $0x1d8] sm:$0xff] %v421
                %v423 = vld [vmem:[%s301 + $0x3c0] sm:$0xff]
                %424 = vst [vmem:[%s302 + $0x1e0] sm:$0xff] %v423
                %v425 = vld [vmem:[%s301 + $0x3d0] sm:$0xff]
                %426 = vst [vmem:[%s302 + $0x1e8] sm:$0xff] %v425
                %v427 = vld [vmem:[%s301 + $0x3e0] sm:$0xff]
                %428 = vst [vmem:[%s302 + $0x1f0] sm:$0xff] %v427
                %v429 = vld [vmem:[%s301 + $0x3f0] sm:$0xff]
                %430 = vst [vmem:[%s302 + $0x1f8] sm:$0xff] %v429
              $region69: #{lenet5_forward.3} parent=63 // loop_footer
                %s300 = sadd.s32 1, %s296
              $region70: #{lenet5_forward.3} parent=63 // loop_footer_branch
                %295 = sbr.rel target = $region66
              $region71: #{lenet5_forward.3} parent=63 // loop_exit
                _
            $region64: #{lenet5_forward.3} parent=55 // pred_fallthru
              _
          $region56: #{lenet5_forward.3} parent=51 // pred_fallthru
            _
          %571 = vnop
        $region52: #{lenet5_forward.3} parent=47 // pred_fallthru
          _
      $region48: #{lenet5_forward.3} parent=5 // pred_fallthru
        _
      %p572 = scmp.le.s32.totalorder 1, %s15
      %p573 = scmp.lt.s32.totalorder %s15, 3
      %p574 = pnand %p572, %p573
      %p575 = pneg %p574
      // Predicated region
      $region87: #{lenet5_forward.3} parent=5 // pred_check
        _
      $region88: #{lenet5_forward.3} parent=5 // pred_check_branch
        %577 = sbr.rel (%p574) target = $region90
      $region89: #{lenet5_forward.3} parent=5 // pred_region
        %s578 = ssub.s32 %s15, 1
        %s579 = sand.u32 %s28, 1
        %s580 = sand.u32 %s28, 1
        %s581 = smul.addr %s580, 512
        %s582 = scalar_lea.vmem [#allocation2], %s581
        // Predicated region
        $region91: #{lenet5_forward.3} parent=89 // pred_check
          %p583 = pneg %p41
        $region92: #{lenet5_forward.3} parent=89 // pred_check_branch
          %585 = sbr.rel (%p583) target = $region94
        $region93: #{lenet5_forward.3} parent=89 // pred_region
          _
        $region94: #{lenet5_forward.3} parent=89 // pred_fallthru
          _
        %s586 = sand.u32 %s28, 1
        %s587 = sand.u32 %s28, 1
        %s588 = smul.addr %s587, 512
        %s589 = scalar_lea.vmem [#allocation2], %s588
        %p590 = pneg %p41
        %p591 = pneg %p38
        %p592 = pneg %p62
        %p593 = pneg %p59
        %p594 = pneg %p83
        %p595 = pneg %p80
        %p596 = pneg %p104
        %p597 = pneg %p101
        %p598 = pneg %p125
        %p599 = pneg %p122
        %p600 = pneg %p146
        %p601 = pneg %p143
        %p602 = pneg %p167
        %p603 = pneg %p164
        %p604 = pneg %p188
        %p605 = pneg %p185
        %p606 = pneg %p209
        %p607 = pneg %p206
        %p608 = pneg %p235
        %p609 = pneg %p232
        %p610 = scmp.lt.s32.totalorder %s20, 1
        %s611 = scalar_select %p610, %s20, 1
        %s612 = smul.addr %s611, 8
        %s613 = scalar_lea.vmem %s9, %s612
        %p614 = scmp.lt.s32.totalorder %s20, 1
        %s615 = scalar_select %p614, %s20, 1
        %s616 = smul.addr %s615, 8
        %s617 = scalar_lea.vmem %s9, %s616
        %v619 = vld [vmem:[%s582] sm:$0xff]
        %v620 = vld [vmem:[%s582 + $0x8] sm:$0xff]
        %v621 = vld [vmem:[%s582 + $0x10] sm:$0xff]
        %v622 = vld [vmem:[%s582 + $0x18] sm:$0xff]
        %v623 = vld [vmem:[%s582 + $0x20] sm:$0xff]
        %v624 = vld [vmem:[%s582 + $0x28] sm:$0xff]
        %v625 = vld [vmem:[%s582 + $0x30] sm:$0xff]
        %v626 = vld [vmem:[%s582 + $0x38] sm:$0xff]
        %v627 = vld [vmem:[%s582 + $0x40] sm:$0xff]
        %v628 = vld [vmem:[%s582 + $0x48] sm:$0xff]
        %v629 = vld [vmem:[%s582 + $0x50] sm:$0xff]
        %v630 = vld [vmem:[%s582 + $0x58] sm:$0xff]
        %v631 = vld [vmem:[%s582 + $0x60] sm:$0xff]
        %v632 = vld [vmem:[%s582 + $0x68] sm:$0xff]
        %v633 = vld [vmem:[%s582 + $0x70] sm:$0xff]
        %v634 = vld [vmem:[%s582 + $0x78] sm:$0xff]
        %v635 = vld [vmem:[%s582 + $0x80] sm:$0xff]
        %v636 = vld [vmem:[%s582 + $0x88] sm:$0xff]
        %v637 = vld [vmem:[%s582 + $0x90] sm:$0xff]
        %v638 = vld [vmem:[%s582 + $0x98] sm:$0xff]
        %v639 = vld [vmem:[%s582 + $0xa0] sm:$0xff]
        %v640 = vld [vmem:[%s582 + $0xa8] sm:$0xff]
        %v641 = vld [vmem:[%s582 + $0xb0] sm:$0xff]
        %v642 = vld [vmem:[%s582 + $0xb8] sm:$0xff]
        %v643 = vld [vmem:[%s582 + $0xc0] sm:$0xff]
        %v644 = vld [vmem:[%s582 + $0xc8] sm:$0xff]
        %v645 = vld [vmem:[%s582 + $0xd0] sm:$0xff]
        %v646 = vld [vmem:[%s582 + $0xd8] sm:$0xff]
        %v647 = vld [vmem:[%s582 + $0xe0] sm:$0xff]
        %v648 = vld [vmem:[%s582 + $0xe8] sm:$0xff]
        %v649 = vld [vmem:[%s582 + $0xf0] sm:$0xff]
        %v650 = vld [vmem:[%s582 + $0xf8] sm:$0xff]
        %v651 = vld [vmem:[%s582 + $0x100] sm:$0xff]
        %v652 = vld [vmem:[%s582 + $0x108] sm:$0xff]
        %v653 = vld [vmem:[%s582 + $0x110] sm:$0xff]
        %v654 = vld [vmem:[%s582 + $0x118] sm:$0xff]
        %v655 = vld [vmem:[%s582 + $0x120] sm:$0xff]
        %v656 = vld [vmem:[%s582 + $0x128] sm:$0xff]
        %v657 = vld [vmem:[%s582 + $0x130] sm:$0xff]
        %v658 = vld [vmem:[%s582 + $0x138] sm:$0xff]
        %v659 = vld [vmem:[%s582 + $0x140] sm:$0xff]
        %v660 = vld [vmem:[%s582 + $0x148] sm:$0xff]
        %v661 = vld [vmem:[%s582 + $0x150] sm:$0xff]
        %v662 = vld [vmem:[%s582 + $0x158] sm:$0xff]
        %v663 = vld [vmem:[%s582 + $0x160] sm:$0xff]
        %v664 = vld [vmem:[%s582 + $0x168] sm:$0xff]
        %v665 = vld [vmem:[%s582 + $0x170] sm:$0xff]
        %v666 = vld [vmem:[%s582 + $0x178] sm:$0xff]
        %v667 = vld [vmem:[%s582 + $0x180] sm:$0xff]
        %v668 = vld [vmem:[%s582 + $0x188] sm:$0xff]
        %v669 = vld [vmem:[%s582 + $0x190] sm:$0xff]
        %v670 = vld [vmem:[%s582 + $0x198] sm:$0xff]
        %v671 = vld [vmem:[%s582 + $0x1a0] sm:$0xff]
        %v672 = vld [vmem:[%s582 + $0x1a8] sm:$0xff]
        %v673 = vld [vmem:[%s582 + $0x1b0] sm:$0xff]
        %v674 = vld [vmem:[%s582 + $0x1b8] sm:$0xff]
        %v675 = vld [vmem:[%s582 + $0x1c0] sm:$0xff]
        %v676 = vld [vmem:[%s582 + $0x1c8] sm:$0xff]
        %v677 = vld [vmem:[%s582 + $0x1d0] sm:$0xff]
        %v678 = vld [vmem:[%s582 + $0x1d8] sm:$0xff]
        %v679 = vld [vmem:[%s582 + $0x1e0] sm:$0xff]
        %v680 = vld [vmem:[%s582 + $0x1e8] sm:$0xff]
        %v681 = vld [vmem:[%s582 + $0x1f0] sm:$0xff]
        %v682 = vld [vmem:[%s582 + $0x1f8] sm:$0xff]
        %v683 = vld [vmem:[%s1] sm:$0xf]
        %v684 = vld [vmem:[%s1 + $0x4] sm:$0xf]
        %v685 = vld [vmem:[%s1 + $0x8] sm:$0xf]
        %v686 = vld [vmem:[%s1 + $0xc] sm:$0xf]
        %v687 = vld [vmem:[%s1 + $0x10] sm:$0xf]
        %v688 = vld [vmem:[%s1 + $0x14] sm:$0xf]
        %v689 = vld [vmem:[%s1 + $0x18] sm:$0xf]
        %v690 = vld [vmem:[%s1 + $0x1c] sm:$0xf]
        %v691 = vld [vmem:[%s1 + $0x20] sm:$0xf]
        %v692 = vld [vmem:[%s1 + $0x24] sm:$0xf]
        %v693 = vld [vmem:[%s1 + $0x28] sm:$0xf]
        %v694 = vld [vmem:[%s1 + $0x2c] sm:$0xf]
        %v695 = vld [vmem:[%s1 + $0x30] sm:$0xf]
        %v696 = vld [vmem:[%s1 + $0x34] sm:$0xf]
        %v697 = vld [vmem:[%s1 + $0x38] sm:$0xf]
        %v698 = vld [vmem:[%s1 + $0x3c] sm:$0xf]
        %v699 = vld [vmem:[%s1 + $0x40] sm:$0xf]
        %v700 = vld [vmem:[%s1 + $0x44] sm:$0xf]
        %v701 = vld [vmem:[%s1 + $0x48] sm:$0x7]
        %v766 = vunpack.c.l.b16 %v619
        %v767 = vunpack.c.h.b16 %v619
        %v768 = vunpack.c.l.b16 %v620
        %v769 = vunpack.c.h.b16 %v620
        %v770 = vunpack.c.l.b16 %v621
        %v771 = vunpack.c.h.b16 %v621
        %v772 = vunpack.c.l.b16 %v622
        %v773 = vunpack.c.h.b16 %v622
        %v774 = vunpack.c.l.b16 %v623
        %v775 = vunpack.c.h.b16 %v623
        %v776 = vunpack.c.l.b16 %v624
        %v777 = vunpack.c.h.b16 %v624
        %v778 = vunpack.c.l.b16 %v625
        %v779 = vunpack.c.h.b16 %v625
        %v780 = vunpack.c.l.b16 %v626
        %v781 = vunpack.c.h.b16 %v626
        %v782 = vunpack.c.l.b16 %v627
        %v783 = vunpack.c.h.b16 %v627
        %v784 = vunpack.c.l.b16 %v628
        %v785 = vunpack.c.h.b16 %v628
        %v786 = vunpack.c.l.b16 %v629
        %v787 = vunpack.c.h.b16 %v629
        %v788 = vunpack.c.l.b16 %v630
        %v789 = vunpack.c.h.b16 %v630
        %v790 = vunpack.c.l.b16 %v631
        %v791 = vunpack.c.h.b16 %v631
        %v792 = vunpack.c.l.b16 %v632
        %v793 = vunpack.c.h.b16 %v632
        %v794 = vunpack.c.l.b16 %v633
        %v795 = vunpack.c.h.b16 %v633
        %v796 = vunpack.c.l.b16 %v634
        %v797 = vunpack.c.h.b16 %v634
        %v798 = vunpack.c.l.b16 %v635
        %v799 = vunpack.c.h.b16 %v635
        %v800 = vunpack.c.l.b16 %v636
        %v801 = vunpack.c.h.b16 %v636
        %v802 = vunpack.c.l.b16 %v637
        %v803 = vunpack.c.h.b16 %v637
        %v804 = vunpack.c.l.b16 %v638
        %v805 = vunpack.c.h.b16 %v638
        %v806 = vunpack.c.l.b16 %v639
        %v807 = vunpack.c.h.b16 %v639
        %v808 = vunpack.c.l.b16 %v640
        %v809 = vunpack.c.h.b16 %v640
        %v810 = vunpack.c.l.b16 %v641
        %v811 = vunpack.c.h.b16 %v641
        %v812 = vunpack.c.l.b16 %v642
        %v813 = vunpack.c.h.b16 %v642
        %v814 = vunpack.c.l.b16 %v643
        %v815 = vunpack.c.h.b16 %v643
        %v816 = vunpack.c.l.b16 %v644
        %v817 = vunpack.c.h.b16 %v644
        %v818 = vunpack.c.l.b16 %v645
        %v819 = vunpack.c.h.b16 %v645
        %v820 = vunpack.c.l.b16 %v646
        %v821 = vunpack.c.h.b16 %v646
        %v822 = vunpack.c.l.b16 %v647
        %v823 = vunpack.c.h.b16 %v647
        %v824 = vunpack.c.l.b16 %v648
        %v825 = vunpack.c.h.b16 %v648
        %v826 = vunpack.c.l.b16 %v649
        %v827 = vunpack.c.h.b16 %v649
        %v828 = vunpack.c.l.b16 %v650
        %v829 = vunpack.c.h.b16 %v650
        %v830 = vunpack.c.l.b16 %v651
        %v831 = vunpack.c.h.b16 %v651
        %v832 = vunpack.c.l.b16 %v652
        %v833 = vunpack.c.h.b16 %v652
        %v834 = vunpack.c.l.b16 %v653
        %v835 = vunpack.c.h.b16 %v653
        %v836 = vunpack.c.l.b16 %v654
        %v837 = vunpack.c.h.b16 %v654
        %v838 = vunpack.c.l.b16 %v655
        %v839 = vunpack.c.h.b16 %v655
        %v840 = vunpack.c.l.b16 %v656
        %v841 = vunpack.c.h.b16 %v656
        %v842 = vunpack.c.l.b16 %v657
        %v843 = vunpack.c.h.b16 %v657
        %v844 = vunpack.c.l.b16 %v658
        %v845 = vunpack.c.h.b16 %v658
        %v846 = vunpack.c.l.b16 %v659
        %v847 = vunpack.c.h.b16 %v659
        %v848 = vunpack.c.l.b16 %v660
        %v849 = vunpack.c.h.b16 %v660
        %v850 = vunpack.c.l.b16 %v661
        %v851 = vunpack.c.h.b16 %v661
        %v852 = vunpack.c.l.b16 %v662
        %v853 = vunpack.c.h.b16 %v662
        %v854 = vunpack.c.l.b16 %v663
        %v855 = vunpack.c.h.b16 %v663
        %v856 = vunpack.c.l.b16 %v664
        %v857 = vunpack.c.h.b16 %v664
        %v858 = vunpack.c.l.b16 %v665
        %v859 = vunpack.c.h.b16 %v665
        %v860 = vunpack.c.l.b16 %v666
        %v861 = vunpack.c.h.b16 %v666
        %v862 = vunpack.c.l.b16 %v667
        %v863 = vunpack.c.h.b16 %v667
        %v864 = vunpack.c.l.b16 %v668
        %v865 = vunpack.c.h.b16 %v668
        %v866 = vunpack.c.l.b16 %v669
        %v867 = vunpack.c.h.b16 %v669
        %v868 = vunpack.c.l.b16 %v670
        %v869 = vunpack.c.h.b16 %v670
        %v870 = vunpack.c.l.b16 %v671
        %v871 = vunpack.c.h.b16 %v671
        %v872 = vunpack.c.l.b16 %v672
        %v873 = vunpack.c.h.b16 %v672
        %v874 = vunpack.c.l.b16 %v673
        %v875 = vunpack.c.h.b16 %v673
        %v876 = vunpack.c.l.b16 %v674
        %v877 = vunpack.c.h.b16 %v674
        %v878 = vunpack.c.l.b16 %v675
        %v879 = vunpack.c.h.b16 %v675
        %v880 = vunpack.c.l.b16 %v676
        %v881 = vunpack.c.h.b16 %v676
        %v882 = vunpack.c.l.b16 %v677
        %v883 = vunpack.c.h.b16 %v677
        %v884 = vunpack.c.l.b16 %v678
        %v885 = vunpack.c.h.b16 %v678
        %v886 = vunpack.c.l.b16 %v679
        %v887 = vunpack.c.h.b16 %v679
        %v888 = vunpack.c.l.b16 %v680
        %v889 = vunpack.c.h.b16 %v680
        %v890 = vunpack.c.l.b16 %v681
        %v891 = vunpack.c.h.b16 %v681
        %v892 = vunpack.c.l.b16 %v682
        %v893 = vunpack.c.h.b16 %v682
        %v894 = vpack.c.b16 %v768, %v766
        %v895 = vpack.c.b16 %v769, %v767
        %v896 = vpack.c.b16 %v772, %v770
        %v897 = vpack.c.b16 %v773, %v771
        %v898 = vpack.c.b16 %v776, %v774
        %v899 = vpack.c.b16 %v777, %v775
        %v900 = vpack.c.b16 %v780, %v778
        %v901 = vpack.c.b16 %v781, %v779
        %v902 = vpack.c.b16 %v784, %v782
        %v903 = vpack.c.b16 %v785, %v783
        %v904 = vpack.c.b16 %v788, %v786
        %v905 = vpack.c.b16 %v789, %v787
        %v906 = vpack.c.b16 %v792, %v790
        %v907 = vpack.c.b16 %v793, %v791
        %v908 = vpack.c.b16 %v796, %v794
        %v909 = vpack.c.b16 %v797, %v795
        %v910 = vpack.c.b16 %v800, %v798
        %v911 = vpack.c.b16 %v801, %v799
        %v912 = vpack.c.b16 %v804, %v802
        %v913 = vpack.c.b16 %v805, %v803
        %v914 = vpack.c.b16 %v808, %v806
        %v915 = vpack.c.b16 %v809, %v807
        %v916 = vpack.c.b16 %v812, %v810
        %v917 = vpack.c.b16 %v813, %v811
        %v918 = vpack.c.b16 %v816, %v814
        %v919 = vpack.c.b16 %v817, %v815
        %v920 = vpack.c.b16 %v820, %v818
        %v921 = vpack.c.b16 %v821, %v819
        %v922 = vpack.c.b16 %v824, %v822
        %v923 = vpack.c.b16 %v825, %v823
        %v924 = vpack.c.b16 %v828, %v826
        %v925 = vpack.c.b16 %v829, %v827
        %v926 = vpack.c.b16 %v832, %v830
        %v927 = vpack.c.b16 %v833, %v831
        %v928 = vpack.c.b16 %v836, %v834
        %v929 = vpack.c.b16 %v837, %v835
        %v930 = vpack.c.b16 %v840, %v838
        %v931 = vpack.c.b16 %v841, %v839
        %v932 = vpack.c.b16 %v844, %v842
        %v933 = vpack.c.b16 %v845, %v843
        %v934 = vpack.c.b16 %v848, %v846
        %v935 = vpack.c.b16 %v849, %v847
        %v936 = vpack.c.b16 %v852, %v850
        %v937 = vpack.c.b16 %v853, %v851
        %v938 = vpack.c.b16 %v856, %v854
        %v939 = vpack.c.b16 %v857, %v855
        %v940 = vpack.c.b16 %v860, %v858
        %v941 = vpack.c.b16 %v861, %v859
        %v942 = vpack.c.b16 %v864, %v862
        %v943 = vpack.c.b16 %v865, %v863
        %v944 = vpack.c.b16 %v868, %v866
        %v945 = vpack.c.b16 %v869, %v867
        %v946 = vpack.c.b16 %v872, %v870
        %v947 = vpack.c.b16 %v873, %v871
        %v948 = vpack.c.b16 %v876, %v874
        %v949 = vpack.c.b16 %v877, %v875
        %v950 = vpack.c.b16 %v880, %v878
        %v951 = vpack.c.b16 %v881, %v879
        %v952 = vpack.c.b16 %v884, %v882
        %v953 = vpack.c.b16 %v885, %v883
        %v954 = vpack.c.b16 %v888, %v886
        %v955 = vpack.c.b16 %v889, %v887
        %v956 = vpack.c.b16 %v892, %v890
        %v957 = vpack.c.b16 %v893, %v891
        %v1009 = vunpack.c.l.b16 %v683
        %v1010 = vunpack.c.l.b16 %v684
        %v1011 = vunpack.c.l.b16 %v685
        %v1012 = vunpack.c.l.b16 %v686
        %v1013 = vunpack.c.l.b16 %v687
        %v1014 = vunpack.c.l.b16 %v688
        %v1015 = vunpack.c.l.b16 %v689
        %v1016 = vunpack.c.l.b16 %v690
        %v1017 = vunpack.c.l.b16 %v691
        %v1018 = vunpack.c.l.b16 %v692
        %v1019 = vunpack.c.l.b16 %v693
        %v1020 = vunpack.c.l.b16 %v694
        %v1021 = vunpack.c.l.b16 %v695
        %v1022 = vunpack.c.l.b16 %v696
        %v1023 = vunpack.c.l.b16 %v697
        %v1024 = vunpack.c.l.b16 %v698
        %v1025 = vunpack.c.l.b16 %v699
        %v1026 = vunpack.c.l.b16 %v700
        %v1027 = vunpack.c.l.b16 %v701
        %v1028 = vpack.c.b16 %v1010, %v1009
        %v1029 = vpack.c.b16 %v1012, %v1011
        %v1030 = vpack.c.b16 %v1014, %v1013
        %v1031 = vpack.c.b16 %v1016, %v1015
        %v1032 = vpack.c.b16 %v1018, %v1017
        %v1033 = vpack.c.b16 %v1020, %v1019
        %v1034 = vpack.c.b16 %v1022, %v1021
        %v1035 = vpack.c.b16 %v1024, %v1023
        %v1036 = vpack.c.b16 %v1026, %v1025
        %v1037 = vpack.c.b16 %v1027, %v1027
        %vm1047 = vcmask 179200
        %v1049 = vsel %vm1047, %v895, 0
        %v1052 = vsel %vm1047, %v897, 0
        %v1055 = vsel %vm1047, %v899, 0
        %v1058 = vsel %vm1047, %v901, 0
        %v1061 = vsel %vm1047, %v903, 0
        %v1064 = vsel %vm1047, %v905, 0
        %v1067 = vsel %vm1047, %v907, 0
        %v1070 = vsel %vm1047, %v909, 0
        %v1073 = vsel %vm1047, %v911, 0
        %v1076 = vsel %vm1047, %v913, 0
        %v1079 = vsel %vm1047, %v915, 0
        %v1082 = vsel %vm1047, %v917, 0
        %v1085 = vsel %vm1047, %v919, 0
        %v1088 = vsel %vm1047, %v921, 0
        %v1091 = vsel %vm1047, %v923, 0
        %v1094 = vsel %vm1047, %v925, 0
        %v1097 = vsel %vm1047, %v927, 0
        %v1100 = vsel %vm1047, %v929, 0
        %v1103 = vsel %vm1047, %v931, 0
        %v1106 = vsel %vm1047, %v933, 0
        %v1109 = vsel %vm1047, %v935, 0
        %v1112 = vsel %vm1047, %v937, 0
        %v1115 = vsel %vm1047, %v939, 0
        %v1118 = vsel %vm1047, %v941, 0
        %v1121 = vsel %vm1047, %v943, 0
        %v1124 = vsel %vm1047, %v945, 0
        %v1127 = vsel %vm1047, %v947, 0
        %v1130 = vsel %vm1047, %v949, 0
        %v1133 = vsel %vm1047, %v951, 0
        %v1136 = vsel %vm1047, %v953, 0
        %v1139 = vsel %vm1047, %v955, 0
        %v1142 = vsel %vm1047, %v957, 0
        %vm1144 = vcmask 1042432
        %v1146 = vsel %vm1144, %v1037, 0
        %1148 = vmatprep.subr.bf16.mxu0 0
        %1149 = vmatpush1.bf16.msra.mxu0 %v1028
        %1150 = vmatprep.subr.bf16.mxu0 0
        %1151 = vmatpush1.bf16.msra.mxu0 %v1029
        %1152 = vmatprep.subr.bf16.mxu0 0
        %1153 = vmatpush1.bf16.msra.mxu0 %v1030
        %1154 = vmatprep.subr.bf16.mxu0 0
        %1155 = vmatpush1.bf16.msra.mxu0 %v1031
        %1156 = vmatprep.subr.bf16.mxu0 0
        %1157 = vmatpush1.bf16.msra.mxu0 %v1032
        %1158 = vmatprep.subr.bf16.mxu0 0
        %1159 = vmatpush1.bf16.msra.mxu0 %v1033
        %1160 = vmatprep.subr.bf16.mxu0 0
        %1161 = vmatpush1.bf16.msra.mxu0 %v1034
        %1162 = vmatprep.subr.bf16.mxu0 0
        %1163 = vmatpush1.bf16.msra.mxu0 %v1035
        %1164 = vmatprep.subr.bf16.mxu0 0
        %1165 = vmatpush1.bf16.msra.mxu0 %v1036
        %1166 = vmatprep.subr.bf16.mxu0 0
        %1167 = vmatpush1.bf16.msra.mxu0 %v1146
        %1168 = vmatprep.subr.bf16.mxu0 0
        %1169 = vmatpush1.bf16.msra.mxu0 0
        %1170 = vmatprep.subr.bf16.mxu0 0
        %1171 = vmatpush1.bf16.msra.mxu0 0
        %1172 = vmatprep.subr.bf16.mxu0 0
        %1173 = vmatpush1.bf16.msra.mxu0 0
        %1174 = vmatprep.subr.bf16.mxu0 0
        %1175 = vmatpush1.bf16.msra.mxu0 0
        %1176 = vmatprep.subr.bf16.mxu0 0
        %1177 = vmatpush1.bf16.msra.mxu0 0
        %1178 = vmatprep.subr.bf16.mxu0 0
        %1179 = vmatpush1.bf16.msra.mxu0 0
        %1180 = vmatprep.mubr.bf16.mxu0 %v1049
        %1181 = vmatmul.mubr.bf16.gmra.mrb[0].mxu0 %v894
        %v1182 = vpop.f32.mrb[0].mxu0
        %v1183 = vadd.f32 0.0, %v1182
        %v1184 = vpop.f32.mrb[0].mxu0
        %v1185 = vpop.f32.mrb[0].mxu0
        %v1186 = vadd.f32 0.0, %v1185
        %v1187 = vpop.f32.mrb[0].mxu0
        %1188 = vmatprep.mubr.bf16.mxu0 %v1052
        %1189 = vmatmul.mubr.bf16.gmra.mrb[0].mxu0 %v896
        %v1190 = vpop.f32.mrb[0].mxu0
        %v1191 = vadd.f32 0.0, %v1190
        %v1192 = vpop.f32.mrb[0].mxu0
        %v1193 = vpop.f32.mrb[0].mxu0
        %v1194 = vadd.f32 0.0, %v1193
        %v1195 = vpop.f32.mrb[0].mxu0
        %1196 = vmatprep.mubr.bf16.mxu0 %v1055
        %1197 = vmatmul.mubr.bf16.gmra.mrb[0].mxu0 %v898
        %v1198 = vpop.f32.mrb[0].mxu0
        %v1199 = vadd.f32 0.0, %v1198
        %v1200 = vpop.f32.mrb[0].mxu0
        %v1201 = vpop.f32.mrb[0].mxu0
        %v1202 = vadd.f32 0.0, %v1201
        %v1203 = vpop.f32.mrb[0].mxu0
        %1204 = vmatprep.mubr.bf16.mxu0 %v1058
        %1205 = vmatmul.mubr.bf16.gmra.mrb[0].mxu0 %v900
        %v1206 = vpop.f32.mrb[0].mxu0
        %v1207 = vadd.f32 0.0, %v1206
        %v1208 = vpop.f32.mrb[0].mxu0
        %v1209 = vpop.f32.mrb[0].mxu0
        %v1210 = vadd.f32 0.0, %v1209
        %v1211 = vpop.f32.mrb[0].mxu0
        %1212 = vmatprep.mubr.bf16.mxu0 %v1061
        %1213 = vmatmul.mubr.bf16.gmra.mrb[0].mxu0 %v902
        %v1214 = vpop.f32.mrb[0].mxu0
        %v1215 = vadd.f32 0.0, %v1214
        %v1216 = vpop.f32.mrb[0].mxu0
        %v1217 = vpop.f32.mrb[0].mxu0
        %v1218 = vadd.f32 0.0, %v1217
        %v1219 = vpop.f32.mrb[0].mxu0
        %1220 = vmatprep.mubr.bf16.mxu0 %v1064
        %1221 = vmatmul.mubr.bf16.gmra.mrb[0].mxu0 %v904
        %v1222 = vpop.f32.mrb[0].mxu0
        %v1223 = vadd.f32 0.0, %v1222
        %v1224 = vpop.f32.mrb[0].mxu0
        %v1225 = vpop.f32.mrb[0].mxu0
        %v1226 = vadd.f32 0.0, %v1225
        %v1227 = vpop.f32.mrb[0].mxu0
        %1228 = vmatprep.mubr.bf16.mxu0 %v1067
        %1229 = vmatmul.mubr.bf16.gmra.mrb[0].mxu0 %v906
        %v1230 = vpop.f32.mrb[0].mxu0
        %v1231 = vadd.f32 0.0, %v1230
        %v1232 = vpop.f32.mrb[0].mxu0
        %v1233 = vpop.f32.mrb[0].mxu0
        %v1234 = vadd.f32 0.0, %v1233
        %v1235 = vpop.f32.mrb[0].mxu0
        %1236 = vmatprep.mubr.bf16.mxu0 %v1070
        %1237 = vmatmul.mubr.bf16.gmra.mrb[0].mxu0 %v908
        %v1238 = vpop.f32.mrb[0].mxu0
        %v1239 = vadd.f32 0.0, %v1238
        %v1240 = vpop.f32.mrb[0].mxu0
        %v1241 = vpop.f32.mrb[0].mxu0
        %v1242 = vadd.f32 0.0, %v1241
        %v1243 = vpop.f32.mrb[0].mxu0
        %1244 = vmatprep.mubr.bf16.mxu0 %v1073
        %1245 = vmatmul.mubr.bf16.gmra.mrb[0].mxu0 %v910
        %v1246 = vpop.f32.mrb[0].mxu0
        %v1247 = vadd.f32 0.0, %v1246
        %v1248 = vpop.f32.mrb[0].mxu0
        %v1249 = vpop.f32.mrb[0].mxu0
        %v1250 = vadd.f32 0.0, %v1249
        %v1251 = vpop.f32.mrb[0].mxu0
        %1252 = vmatprep.mubr.bf16.mxu0 %v1076
        %1253 = vmatmul.mubr.bf16.gmra.mrb[0].mxu0 %v912
        %v1254 = vpop.f32.mrb[0].mxu0
        %v1255 = vadd.f32 0.0, %v1254
        %v1256 = vpop.f32.mrb[0].mxu0
        %v1257 = vpop.f32.mrb[0].mxu0
        %v1258 = vadd.f32 0.0, %v1257
        %v1259 = vpop.f32.mrb[0].mxu0
        %1260 = vmatprep.mubr.bf16.mxu0 %v1079
        %1261 = vmatmul.mubr.bf16.gmra.mrb[0].mxu0 %v914
        %v1262 = vpop.f32.mrb[0].mxu0
        %v1263 = vadd.f32 0.0, %v1262
        %v1264 = vpop.f32.mrb[0].mxu0
        %v1265 = vpop.f32.mrb[0].mxu0
        %v1266 = vadd.f32 0.0, %v1265
        %v1267 = vpop.f32.mrb[0].mxu0
        %1268 = vmatprep.mubr.bf16.mxu0 %v1082
        %1269 = vmatmul.mubr.bf16.gmra.mrb[0].mxu0 %v916
        %v1270 = vpop.f32.mrb[0].mxu0
        %v1271 = vadd.f32 0.0, %v1270
        %v1272 = vpop.f32.mrb[0].mxu0
        %v1273 = vpop.f32.mrb[0].mxu0
        %v1274 = vadd.f32 0.0, %v1273
        %v1275 = vpop.f32.mrb[0].mxu0
        %1276 = vmatprep.mubr.bf16.mxu0 %v1085
        %1277 = vmatmul.mubr.bf16.gmra.mrb[0].mxu0 %v918
        %v1278 = vpop.f32.mrb[0].mxu0
        %v1279 = vadd.f32 0.0, %v1278
        %v1280 = vpop.f32.mrb[0].mxu0
        %v1281 = vpop.f32.mrb[0].mxu0
        %v1282 = vadd.f32 0.0, %v1281
        %v1283 = vpop.f32.mrb[0].mxu0
        %1284 = vmatprep.mubr.bf16.mxu0 %v1088
        %1285 = vmatmul.mubr.bf16.gmra.mrb[0].mxu0 %v920
        %v1286 = vpop.f32.mrb[0].mxu0
        %v1287 = vadd.f32 0.0, %v1286
        %v1288 = vpop.f32.mrb[0].mxu0
        %v1289 = vpop.f32.mrb[0].mxu0
        %v1290 = vadd.f32 0.0, %v1289
        %v1291 = vpop.f32.mrb[0].mxu0
        %1292 = vmatprep.mubr.bf16.mxu0 %v1091
        %1293 = vmatmul.mubr.bf16.gmra.mrb[0].mxu0 %v922
        %v1294 = vpop.f32.mrb[0].mxu0
        %v1295 = vadd.f32 0.0, %v1294
        %v1296 = vpop.f32.mrb[0].mxu0
        %v1297 = vpop.f32.mrb[0].mxu0
        %v1298 = vadd.f32 0.0, %v1297
        %v1299 = vpop.f32.mrb[0].mxu0
        %1300 = vmatprep.mubr.bf16.mxu0 %v1094
        %1301 = vmatmul.mubr.bf16.gmra.mrb[0].mxu0 %v924
        %v1302 = vpop.f32.mrb[0].mxu0
        %v1303 = vadd.f32 0.0, %v1302
        %v1304 = vpop.f32.mrb[0].mxu0
        %v1305 = vpop.f32.mrb[0].mxu0
        %v1306 = vadd.f32 0.0, %v1305
        %v1307 = vpop.f32.mrb[0].mxu0
        %1308 = vmatprep.mubr.bf16.mxu0 %v1097
        %1309 = vmatmul.mubr.bf16.gmra.mrb[0].mxu0 %v926
        %v1310 = vpop.f32.mrb[0].mxu0
        %v1311 = vadd.f32 0.0, %v1310
        %v1312 = vpop.f32.mrb[0].mxu0
        %v1313 = vpop.f32.mrb[0].mxu0
        %v1314 = vadd.f32 0.0, %v1313
        %v1315 = vpop.f32.mrb[0].mxu0
        %1316 = vmatprep.mubr.bf16.mxu0 %v1100
        %1317 = vmatmul.mubr.bf16.gmra.mrb[0].mxu0 %v928
        %v1318 = vpop.f32.mrb[0].mxu0
        %v1319 = vadd.f32 0.0, %v1318
        %v1320 = vpop.f32.mrb[0].mxu0
        %v1321 = vpop.f32.mrb[0].mxu0
        %v1322 = vadd.f32 0.0, %v1321
        %v1323 = vpop.f32.mrb[0].mxu0
        %1324 = vmatprep.mubr.bf16.mxu0 %v1103
        %1325 = vmatmul.mubr.bf16.gmra.mrb[0].mxu0 %v930
        %v1326 = vpop.f32.mrb[0].mxu0
        %v1327 = vadd.f32 0.0, %v1326
        %v1328 = vpop.f32.mrb[0].mxu0
        %v1329 = vpop.f32.mrb[0].mxu0
        %v1330 = vadd.f32 0.0, %v1329
        %v1331 = vpop.f32.mrb[0].mxu0
        %1332 = vmatprep.mubr.bf16.mxu0 %v1106
        %1333 = vmatmul.mubr.bf16.gmra.mrb[0].mxu0 %v932
        %v1334 = vpop.f32.mrb[0].mxu0
        %v1335 = vadd.f32 0.0, %v1334
        %v1336 = vpop.f32.mrb[0].mxu0
        %v1337 = vpop.f32.mrb[0].mxu0
        %v1338 = vadd.f32 0.0, %v1337
        %v1339 = vpop.f32.mrb[0].mxu0
        %1340 = vmatprep.mubr.bf16.mxu0 %v1109
        %1341 = vmatmul.mubr.bf16.gmra.mrb[0].mxu0 %v934
        %v1342 = vpop.f32.mrb[0].mxu0
        %v1343 = vadd.f32 0.0, %v1342
        %v1344 = vpop.f32.mrb[0].mxu0
        %v1345 = vpop.f32.mrb[0].mxu0
        %v1346 = vadd.f32 0.0, %v1345
        %v1347 = vpop.f32.mrb[0].mxu0
        %1348 = vmatprep.mubr.bf16.mxu0 %v1112
        %1349 = vmatmul.mubr.bf16.gmra.mrb[0].mxu0 %v936
        %v1350 = vpop.f32.mrb[0].mxu0
        %v1351 = vadd.f32 0.0, %v1350
        %v1352 = vpop.f32.mrb[0].mxu0
        %v1353 = vpop.f32.mrb[0].mxu0
        %v1354 = vadd.f32 0.0, %v1353
        %v1355 = vpop.f32.mrb[0].mxu0
        %1356 = vmatprep.mubr.bf16.mxu0 %v1115
        %1357 = vmatmul.mubr.bf16.gmra.mrb[0].mxu0 %v938
        %v1358 = vpop.f32.mrb[0].mxu0
        %v1359 = vadd.f32 0.0, %v1358
        %v1360 = vpop.f32.mrb[0].mxu0
        %v1361 = vpop.f32.mrb[0].mxu0
        %v1362 = vadd.f32 0.0, %v1361
        %v1363 = vpop.f32.mrb[0].mxu0
        %1364 = vmatprep.mubr.bf16.mxu0 %v1118
        %1365 = vmatmul.mubr.bf16.gmra.mrb[0].mxu0 %v940
        %v1366 = vpop.f32.mrb[0].mxu0
        %v1367 = vadd.f32 0.0, %v1366
        %v1368 = vpop.f32.mrb[0].mxu0
        %v1369 = vpop.f32.mrb[0].mxu0
        %v1370 = vadd.f32 0.0, %v1369
        %v1371 = vpop.f32.mrb[0].mxu0
        %1372 = vmatprep.mubr.bf16.mxu0 %v1121
        %1373 = vmatmul.mubr.bf16.gmra.mrb[0].mxu0 %v942
        %v1374 = vpop.f32.mrb[0].mxu0
        %v1375 = vadd.f32 0.0, %v1374
        %v1376 = vpop.f32.mrb[0].mxu0
        %v1377 = vpop.f32.mrb[0].mxu0
        %v1378 = vadd.f32 0.0, %v1377
        %v1379 = vpop.f32.mrb[0].mxu0
        %1380 = vmatprep.mubr.bf16.mxu0 %v1124
        %1381 = vmatmul.mubr.bf16.gmra.mrb[0].mxu0 %v944
        %v1382 = vpop.f32.mrb[0].mxu0
        %v1383 = vadd.f32 0.0, %v1382
        %v1384 = vpop.f32.mrb[0].mxu0
        %v1385 = vpop.f32.mrb[0].mxu0
        %v1386 = vadd.f32 0.0, %v1385
        %v1387 = vpop.f32.mrb[0].mxu0
        %1388 = vmatprep.mubr.bf16.mxu0 %v1127
        %1389 = vmatmul.mubr.bf16.gmra.mrb[0].mxu0 %v946
        %v1390 = vpop.f32.mrb[0].mxu0
        %v1391 = vadd.f32 0.0, %v1390
        %v1392 = vpop.f32.mrb[0].mxu0
        %v1393 = vpop.f32.mrb[0].mxu0
        %v1394 = vadd.f32 0.0, %v1393
        %v1395 = vpop.f32.mrb[0].mxu0
        %1396 = vmatprep.mubr.bf16.mxu0 %v1130
        %1397 = vmatmul.mubr.bf16.gmra.mrb[0].mxu0 %v948
        %v1398 = vpop.f32.mrb[0].mxu0
        %v1399 = vadd.f32 0.0, %v1398
        %v1400 = vpop.f32.mrb[0].mxu0
        %v1401 = vpop.f32.mrb[0].mxu0
        %v1402 = vadd.f32 0.0, %v1401
        %v1403 = vpop.f32.mrb[0].mxu0
        %1404 = vmatprep.mubr.bf16.mxu0 %v1133
        %1405 = vmatmul.mubr.bf16.gmra.mrb[0].mxu0 %v950
        %v1406 = vpop.f32.mrb[0].mxu0
        %v1407 = vadd.f32 0.0, %v1406
        %v1408 = vpop.f32.mrb[0].mxu0
        %v1409 = vpop.f32.mrb[0].mxu0
        %v1410 = vadd.f32 0.0, %v1409
        %v1411 = vpop.f32.mrb[0].mxu0
        %1412 = vmatprep.mubr.bf16.mxu0 %v1136
        %1413 = vmatmul.mubr.bf16.gmra.mrb[0].mxu0 %v952
        %v1414 = vpop.f32.mrb[0].mxu0
        %v1415 = vadd.f32 0.0, %v1414
        %v1416 = vpop.f32.mrb[0].mxu0
        %v1417 = vpop.f32.mrb[0].mxu0
        %v1418 = vadd.f32 0.0, %v1417
        %v1419 = vpop.f32.mrb[0].mxu0
        %1420 = vmatprep.mubr.bf16.mxu0 %v1139
        %1421 = vmatmul.mubr.bf16.gmra.mrb[0].mxu0 %v954
        %v1422 = vpop.f32.mrb[0].mxu0
        %v1423 = vadd.f32 0.0, %v1422
        %v1424 = vpop.f32.mrb[0].mxu0
        %v1425 = vpop.f32.mrb[0].mxu0
        %v1426 = vadd.f32 0.0, %v1425
        %v1427 = vpop.f32.mrb[0].mxu0
        %1428 = vmatprep.mubr.bf16.mxu0 %v1142
        %1429 = vmatmul.mubr.bf16.gmra.mrb[0].mxu0 %v956
        %v1430 = vpop.f32.mrb[0].mxu0
        %v1431 = vadd.f32 0.0, %v1430
        %v1432 = vpop.f32.mrb[0].mxu0
        %v1433 = vpop.f32.mrb[0].mxu0
        %v1434 = vadd.f32 0.0, %v1433
        %v1435 = vpop.f32.mrb[0].mxu0
        %1436 = vdwg.mxu0
        %v1437 = vmax.f32 %v1183, %v1247
        %v1438 = vmax.f32 %v1186, %v1250
        %v1439 = vmax.f32 %v1191, %v1255
        %v1440 = vmax.f32 %v1194, %v1258
        %v1441 = vmax.f32 %v1199, %v1263
        %v1442 = vmax.f32 %v1202, %v1266
        %v1443 = vmax.f32 %v1207, %v1271
        %v1444 = vmax.f32 %v1210, %v1274
        %v1445 = vmax.f32 %v1215, %v1279
        %v1446 = vmax.f32 %v1218, %v1282
        %v1447 = vmax.f32 %v1223, %v1287
        %v1448 = vmax.f32 %v1226, %v1290
        %v1449 = vmax.f32 %v1231, %v1295
        %v1450 = vmax.f32 %v1234, %v1298
        %v1451 = vmax.f32 %v1239, %v1303
        %v1452 = vmax.f32 %v1242, %v1306
        %v1453 = vmax.f32 %v1311, %v1375
        %v1454 = vmax.f32 %v1314, %v1378
        %v1455 = vmax.f32 %v1319, %v1383
        %v1456 = vmax.f32 %v1322, %v1386
        %v1457 = vmax.f32 %v1327, %v1391
        %v1458 = vmax.f32 %v1330, %v1394
        %v1459 = vmax.f32 %v1335, %v1399
        %v1460 = vmax.f32 %v1338, %v1402
        %v1461 = vmax.f32 %v1343, %v1407
        %v1462 = vmax.f32 %v1346, %v1410
        %v1463 = vmax.f32 %v1351, %v1415
        %v1464 = vmax.f32 %v1354, %v1418
        %v1465 = vmax.f32 %v1359, %v1423
        %v1466 = vmax.f32 %v1362, %v1426
        %v1467 = vmax.f32 %v1367, %v1431
        %v1468 = vmax.f32 %v1370, %v1434
        %v1469 = vmax.f32 %v1437, %v1453
        %v1470 = vmax.f32 %v1438, %v1454
        %v1471 = vmax.f32 %v1439, %v1455
        %v1472 = vmax.f32 %v1440, %v1456
        %v1473 = vmax.f32 %v1441, %v1457
        %v1474 = vmax.f32 %v1442, %v1458
        %v1475 = vmax.f32 %v1443, %v1459
        %v1476 = vmax.f32 %v1444, %v1460
        %v1477 = vmax.f32 %v1445, %v1461
        %v1478 = vmax.f32 %v1446, %v1462
        %v1479 = vmax.f32 %v1447, %v1463
        %v1480 = vmax.f32 %v1448, %v1464
        %v1481 = vmax.f32 %v1449, %v1465
        %v1482 = vmax.f32 %v1450, %v1466
        %v1483 = vmax.f32 %v1451, %v1467
        %v1484 = vmax.f32 %v1452, %v1468
        %v1485 = vld [vmem:[%s2] sm:$0x1]
        %v1487 = vlaneseq
        %v1488 = vshrl.u32 %v1487, 7
        %v1489 = vsub.s32 0, %v1488
        %v1490 = vrot.slane %v1485, %v1489
        %v1492 = vadd.f32 %v1469, %v1490
        %v1493 = vadd.f32 %v1470, %v1490
        %v1494 = vadd.f32 %v1471, %v1490
        %v1495 = vadd.f32 %v1472, %v1490
        %v1496 = vadd.f32 %v1473, %v1490
        %v1497 = vadd.f32 %v1474, %v1490
        %v1498 = vadd.f32 %v1475, %v1490
        %v1499 = vadd.f32 %v1476, %v1490
        %v1500 = vadd.f32 %v1477, %v1490
        %v1501 = vadd.f32 %v1478, %v1490
        %v1502 = vadd.f32 %v1479, %v1490
        %v1503 = vadd.f32 %v1480, %v1490
        %v1504 = vadd.f32 %v1481, %v1490
        %v1505 = vadd.f32 %v1482, %v1490
        %v1506 = vadd.f32 %v1483, %v1490
        %v1507 = vadd.f32 %v1484, %v1490
        %v1508 = vmax.f32 %v1492, 0.0
        %v1509 = vmax.f32 %v1493, 0.0
        %v1510 = vmax.f32 %v1494, 0.0
        %v1511 = vmax.f32 %v1495, 0.0
        %v1512 = vmax.f32 %v1496, 0.0
        %v1513 = vmax.f32 %v1497, 0.0
        %v1514 = vmax.f32 %v1498, 0.0
        %v1515 = vmax.f32 %v1499, 0.0
        %v1516 = vmax.f32 %v1500, 0.0
        %v1517 = vmax.f32 %v1501, 0.0
        %v1518 = vmax.f32 %v1502, 0.0
        %v1519 = vmax.f32 %v1503, 0.0
        %v1520 = vmax.f32 %v1504, 0.0
        %v1521 = vmax.f32 %v1505, 0.0
        %v1522 = vmax.f32 %v1506, 0.0
        %v1523 = vmax.f32 %v1507, 0.0
        %v1524 = vld [vmem:[%s3] sm:$0xff]
        %v1525 = vld [vmem:[%s3 + $0x8] sm:$0xff]
        %v1526 = vld [vmem:[%s3 + $0x10] sm:$0xff]
        %v1527 = vld [vmem:[%s3 + $0x18] sm:$0xff]
        %v1528 = vld [vmem:[%s3 + $0x20] sm:$0xff]
        %v1529 = vld [vmem:[%s3 + $0x28] sm:$0xff]
        %v1530 = vld [vmem:[%s3 + $0x30] sm:$0xff]
        %v1531 = vld [vmem:[%s3 + $0x38] sm:$0xff]
        %v1532 = vld [vmem:[%s3 + $0x40] sm:$0xff]
        %v1533 = vld [vmem:[%s3 + $0x48] sm:$0xff]
        %v1534 = vld [vmem:[%s3 + $0x50] sm:$0xff]
        %v1535 = vld [vmem:[%s3 + $0x58] sm:$0xff]
        %v1536 = vld [vmem:[%s3 + $0x60] sm:$0xff]
        %v1537 = vld [vmem:[%s3 + $0x68] sm:$0xff]
        %v1538 = vld [vmem:[%s3 + $0x70] sm:$0xff]
        %v1539 = vld [vmem:[%s3 + $0x78] sm:$0xff]
        %v1540 = vld [vmem:[%s3 + $0x80] sm:$0xff]
        %v1541 = vld [vmem:[%s3 + $0x88] sm:$0xff]
        %v1542 = vld [vmem:[%s3 + $0x90] sm:$0xff]
        %v1543 = vld [vmem:[%s3 + $0x98] sm:$0xff]
        %v1544 = vld [vmem:[%s3 + $0xa0] sm:$0xff]
        %v1545 = vld [vmem:[%s3 + $0xa8] sm:$0xff]
        %v1546 = vld [vmem:[%s3 + $0xb0] sm:$0xff]
        %v1547 = vld [vmem:[%s3 + $0xb8] sm:$0xff]
        %v1548 = vld [vmem:[%s3 + $0xc0] sm:$0xff]
        %v1549 = vld [vmem:[%s3 + $0xc8] sm:$0xff]
        %v1550 = vld [vmem:[%s3 + $0xd0] sm:$0xff]
        %v1551 = vld [vmem:[%s3 + $0xd8] sm:$0xff]
        %v1552 = vld [vmem:[%s3 + $0xe0] sm:$0xff]
        %v1553 = vld [vmem:[%s3 + $0xe8] sm:$0xff]
        %v1554 = vld [vmem:[%s3 + $0xf0] sm:$0xff]
        %v1555 = vld [vmem:[%s3 + $0xf8] sm:$0xff]
        %vm1556 = vcmask 130048
        %v1558 = vsel %vm1556, %v1508, 0
        %1560 = vmatprep.subr.mxu0 0.0
        %1561 = vmatpush1.msra.mxu0 %v1524
        %1562 = vmatprep.subr.mxu0 0.0
        %1563 = vmatpush1.msra.mxu0 %v1525
        %1564 = vmatprep.subr.mxu0 0.0
        %1565 = vmatpush1.msra.mxu0 0.0
        %1566 = vmatprep.subr.mxu0 0.0
        %1567 = vmatpush1.msra.mxu0 0.0
        %1568 = vmatprep.subr.mxu0 0.0
        %1569 = vmatpush1.msra.mxu0 0.0
        %1570 = vmatprep.subr.mxu0 0.0
        %1571 = vmatpush1.msra.mxu0 0.0
        %1572 = vmatprep.subr.mxu0 0.0
        %1573 = vmatpush1.msra.mxu0 0.0
        %1574 = vmatprep.subr.mxu0 0.0
        %1575 = vmatpush1.msra.mxu0 0.0
        %1576 = vmatprep.subr.mxu0 0.0
        %1577 = vmatpush1.msra.mxu0 0.0
        %1578 = vmatprep.subr.mxu0 0.0
        %1579 = vmatpush1.msra.mxu0 0.0
        %1580 = vmatprep.subr.mxu0 0.0
        %1581 = vmatpush1.msra.mxu0 0.0
        %1582 = vmatprep.subr.mxu0 0.0
        %1583 = vmatpush1.msra.mxu0 0.0
        %1584 = vmatprep.subr.mxu0 0.0
        %1585 = vmatpush1.msra.mxu0 0.0
        %1586 = vmatprep.subr.mxu0 0.0
        %1587 = vmatpush1.msra.mxu0 0.0
        %1588 = vmatprep.subr.mxu0 0.0
        %1589 = vmatpush1.msra.mxu0 0.0
        %1590 = vmatprep.subr.mxu0 0.0
        %1591 = vmatpush1.msra.mxu0 0.0
        %1592 = vmatprep.subr.mxu0 0.0
        %1593 = vmatpush1.msra.mxu0 0.0
        %1594 = vmatprep.subr.mxu0 0.0
        %1595 = vmatpush1.msra.mxu0 0.0
        %1596 = vmatprep.subr.mxu0 0.0
        %1597 = vmatpush1.msra.mxu0 0.0
        %1598 = vmatprep.subr.mxu0 0.0
        %1599 = vmatpush1.msra.mxu0 0.0
        %1600 = vmatprep.subr.mxu0 0.0
        %1601 = vmatpush1.msra.mxu0 0.0
        %1602 = vmatprep.subr.mxu0 0.0
        %1603 = vmatpush1.msra.mxu0 0.0
        %1604 = vmatprep.subr.mxu0 0.0
        %1605 = vmatpush1.msra.mxu0 0.0
        %1606 = vmatprep.subr.mxu0 0.0
        %1607 = vmatpush1.msra.mxu0 0.0
        %1608 = vmatprep.subr.mxu0 0.0
        %1609 = vmatpush1.msra.mxu0 0.0
        %1610 = vmatprep.subr.mxu0 0.0
        %1611 = vmatpush1.msra.mxu0 0.0
        %1612 = vmatprep.subr.mxu0 0.0
        %1613 = vmatpush1.msra.mxu0 0.0
        %1614 = vmatprep.subr.mxu0 0.0
        %1615 = vmatpush1.msra.mxu0 0.0
        %1616 = vmatprep.subr.mxu0 0.0
        %1617 = vmatpush1.msra.mxu0 0.0
        %1618 = vmatprep.subr.mxu0 0.0
        %1619 = vmatpush1.msra.mxu0 0.0
        %1620 = vmatprep.subr.mxu0 0.0
        %1621 = vmatpush1.msra.mxu0 0.0
        %1622 = vmatprep.subr.mxu0 0.0
        %1623 = vmatpush1.msra.mxu0 0.0
        %1624 = vmatprep.mubr.f32.mxu0 0.0
        %1625 = vmatmul.mubr.f32.gmra.mrb[0].mxu0 %v1558
        %v1626 = vpop.f32.mrb[0].mxu0
        %v1627 = vadd.f32 0.0, %v1626
        %v1628 = vpop.f32.mrb[0].mxu0
        %1629 = vdwg.mxu0
        %v1631 = vsel %vm1556, %v1509, 0
        %1633 = vmatprep.subr.mxu0 0.0
        %1634 = vmatpush1.msra.mxu0 %v1526
        %1635 = vmatprep.subr.mxu0 0.0
        %1636 = vmatpush1.msra.mxu0 %v1527
        %1637 = vmatprep.subr.mxu0 0.0
        %1638 = vmatpush1.msra.mxu0 0.0
        %1639 = vmatprep.subr.mxu0 0.0
        %1640 = vmatpush1.msra.mxu0 0.0
        %1641 = vmatprep.subr.mxu0 0.0
        %1642 = vmatpush1.msra.mxu0 0.0
        %1643 = vmatprep.subr.mxu0 0.0
        %1644 = vmatpush1.msra.mxu0 0.0
        %1645 = vmatprep.subr.mxu0 0.0
        %1646 = vmatpush1.msra.mxu0 0.0
        %1647 = vmatprep.subr.mxu0 0.0
        %1648 = vmatpush1.msra.mxu0 0.0
        %1649 = vmatprep.subr.mxu0 0.0
        %1650 = vmatpush1.msra.mxu0 0.0
        %1651 = vmatprep.subr.mxu0 0.0
        %1652 = vmatpush1.msra.mxu0 0.0
        %1653 = vmatprep.subr.mxu0 0.0
        %1654 = vmatpush1.msra.mxu0 0.0
        %1655 = vmatprep.subr.mxu0 0.0
        %1656 = vmatpush1.msra.mxu0 0.0
        %1657 = vmatprep.subr.mxu0 0.0
        %1658 = vmatpush1.msra.mxu0 0.0
        %1659 = vmatprep.subr.mxu0 0.0
        %1660 = vmatpush1.msra.mxu0 0.0
        %1661 = vmatprep.subr.mxu0 0.0
        %1662 = vmatpush1.msra.mxu0 0.0
        %1663 = vmatprep.subr.mxu0 0.0
        %1664 = vmatpush1.msra.mxu0 0.0
        %1665 = vmatprep.subr.mxu0 0.0
        %1666 = vmatpush1.msra.mxu0 0.0
        %1667 = vmatprep.subr.mxu0 0.0
        %1668 = vmatpush1.msra.mxu0 0.0
        %1669 = vmatprep.subr.mxu0 0.0
        %1670 = vmatpush1.msra.mxu0 0.0
        %1671 = vmatprep.subr.mxu0 0.0
        %1672 = vmatpush1.msra.mxu0 0.0
        %1673 = vmatprep.subr.mxu0 0.0
        %1674 = vmatpush1.msra.mxu0 0.0
        %1675 = vmatprep.subr.mxu0 0.0
        %1676 = vmatpush1.msra.mxu0 0.0
        %1677 = vmatprep.subr.mxu0 0.0
        %1678 = vmatpush1.msra.mxu0 0.0
        %1679 = vmatprep.subr.mxu0 0.0
        %1680 = vmatpush1.msra.mxu0 0.0
        %1681 = vmatprep.subr.mxu0 0.0
        %1682 = vmatpush1.msra.mxu0 0.0
        %1683 = vmatprep.subr.mxu0 0.0
        %1684 = vmatpush1.msra.mxu0 0.0
        %1685 = vmatprep.subr.mxu0 0.0
        %1686 = vmatpush1.msra.mxu0 0.0
        %1687 = vmatprep.subr.mxu0 0.0
        %1688 = vmatpush1.msra.mxu0 0.0
        %1689 = vmatprep.subr.mxu0 0.0
        %1690 = vmatpush1.msra.mxu0 0.0
        %1691 = vmatprep.subr.mxu0 0.0
        %1692 = vmatpush1.msra.mxu0 0.0
        %1693 = vmatprep.subr.mxu0 0.0
        %1694 = vmatpush1.msra.mxu0 0.0
        %1695 = vmatprep.subr.mxu0 0.0
        %1696 = vmatpush1.msra.mxu0 0.0
        %1697 = vmatprep.mubr.f32.mxu0 0.0
        %1698 = vmatmul.mubr.f32.gmra.mrb[0].mxu0 %v1631
        %v1699 = vpop.f32.mrb[0].mxu0
        %v1700 = vadd.f32 0.0, %v1699
        %v1701 = vpop.f32.mrb[0].mxu0
        %1702 = vdwg.mxu0
        %v1704 = vsel %vm1556, %v1510, 0
        %1706 = vmatprep.subr.mxu0 0.0
        %1707 = vmatpush1.msra.mxu0 %v1528
        %1708 = vmatprep.subr.mxu0 0.0
        %1709 = vmatpush1.msra.mxu0 %v1529
        %1710 = vmatprep.subr.mxu0 0.0
        %1711 = vmatpush1.msra.mxu0 0.0
        %1712 = vmatprep.subr.mxu0 0.0
        %1713 = vmatpush1.msra.mxu0 0.0
        %1714 = vmatprep.subr.mxu0 0.0
        %1715 = vmatpush1.msra.mxu0 0.0
        %1716 = vmatprep.subr.mxu0 0.0
        %1717 = vmatpush1.msra.mxu0 0.0
        %1718 = vmatprep.subr.mxu0 0.0
        %1719 = vmatpush1.msra.mxu0 0.0
        %1720 = vmatprep.subr.mxu0 0.0
        %1721 = vmatpush1.msra.mxu0 0.0
        %1722 = vmatprep.subr.mxu0 0.0
        %1723 = vmatpush1.msra.mxu0 0.0
        %1724 = vmatprep.subr.mxu0 0.0
        %1725 = vmatpush1.msra.mxu0 0.0
        %1726 = vmatprep.subr.mxu0 0.0
        %1727 = vmatpush1.msra.mxu0 0.0
        %1728 = vmatprep.subr.mxu0 0.0
        %1729 = vmatpush1.msra.mxu0 0.0
        %1730 = vmatprep.subr.mxu0 0.0
        %1731 = vmatpush1.msra.mxu0 0.0
        %1732 = vmatprep.subr.mxu0 0.0
        %1733 = vmatpush1.msra.mxu0 0.0
        %1734 = vmatprep.subr.mxu0 0.0
        %1735 = vmatpush1.msra.mxu0 0.0
        %1736 = vmatprep.subr.mxu0 0.0
        %1737 = vmatpush1.msra.mxu0 0.0
        %1738 = vmatprep.subr.mxu0 0.0
        %1739 = vmatpush1.msra.mxu0 0.0
        %1740 = vmatprep.subr.mxu0 0.0
        %1741 = vmatpush1.msra.mxu0 0.0
        %1742 = vmatprep.subr.mxu0 0.0
        %1743 = vmatpush1.msra.mxu0 0.0
        %1744 = vmatprep.subr.mxu0 0.0
        %1745 = vmatpush1.msra.mxu0 0.0
        %1746 = vmatprep.subr.mxu0 0.0
        %1747 = vmatpush1.msra.mxu0 0.0
        %1748 = vmatprep.subr.mxu0 0.0
        %1749 = vmatpush1.msra.mxu0 0.0
        %1750 = vmatprep.subr.mxu0 0.0
        %1751 = vmatpush1.msra.mxu0 0.0
        %1752 = vmatprep.subr.mxu0 0.0
        %1753 = vmatpush1.msra.mxu0 0.0
        %1754 = vmatprep.subr.mxu0 0.0
        %1755 = vmatpush1.msra.mxu0 0.0
        %1756 = vmatprep.subr.mxu0 0.0
        %1757 = vmatpush1.msra.mxu0 0.0
        %1758 = vmatprep.subr.mxu0 0.0
        %1759 = vmatpush1.msra.mxu0 0.0
        %1760 = vmatprep.subr.mxu0 0.0
        %1761 = vmatpush1.msra.mxu0 0.0
        %1762 = vmatprep.subr.mxu0 0.0
        %1763 = vmatpush1.msra.mxu0 0.0
        %1764 = vmatprep.subr.mxu0 0.0
        %1765 = vmatpush1.msra.mxu0 0.0
        %1766 = vmatprep.subr.mxu0 0.0
        %1767 = vmatpush1.msra.mxu0 0.0
        %1768 = vmatprep.subr.mxu0 0.0
        %1769 = vmatpush1.msra.mxu0 0.0
        %1770 = vmatprep.mubr.f32.mxu0 0.0
        %1771 = vmatmul.mubr.f32.gmra.mrb[0].mxu0 %v1704
        %v1772 = vpop.f32.mrb[0].mxu0
        %v1773 = vadd.f32 0.0, %v1772
        %v1774 = vpop.f32.mrb[0].mxu0
        %1775 = vdwg.mxu0
        %v1777 = vsel %vm1556, %v1511, 0
        %1779 = vmatprep.subr.mxu0 0.0
        %1780 = vmatpush1.msra.mxu0 %v1530
        %1781 = vmatprep.subr.mxu0 0.0
        %1782 = vmatpush1.msra.mxu0 %v1531
        %1783 = vmatprep.subr.mxu0 0.0
        %1784 = vmatpush1.msra.mxu0 0.0
        %1785 = vmatprep.subr.mxu0 0.0
        %1786 = vmatpush1.msra.mxu0 0.0
        %1787 = vmatprep.subr.mxu0 0.0
        %1788 = vmatpush1.msra.mxu0 0.0
        %1789 = vmatprep.subr.mxu0 0.0
        %1790 = vmatpush1.msra.mxu0 0.0
        %1791 = vmatprep.subr.mxu0 0.0
        %1792 = vmatpush1.msra.mxu0 0.0
        %1793 = vmatprep.subr.mxu0 0.0
        %1794 = vmatpush1.msra.mxu0 0.0
        %1795 = vmatprep.subr.mxu0 0.0
        %1796 = vmatpush1.msra.mxu0 0.0
        %1797 = vmatprep.subr.mxu0 0.0
        %1798 = vmatpush1.msra.mxu0 0.0
        %1799 = vmatprep.subr.mxu0 0.0
        %1800 = vmatpush1.msra.mxu0 0.0
        %1801 = vmatprep.subr.mxu0 0.0
        %1802 = vmatpush1.msra.mxu0 0.0
        %1803 = vmatprep.subr.mxu0 0.0
        %1804 = vmatpush1.msra.mxu0 0.0
        %1805 = vmatprep.subr.mxu0 0.0
        %1806 = vmatpush1.msra.mxu0 0.0
        %1807 = vmatprep.subr.mxu0 0.0
        %1808 = vmatpush1.msra.mxu0 0.0
        %1809 = vmatprep.subr.mxu0 0.0
        %1810 = vmatpush1.msra.mxu0 0.0
        %1811 = vmatprep.subr.mxu0 0.0
        %1812 = vmatpush1.msra.mxu0 0.0
        %1813 = vmatprep.subr.mxu0 0.0
        %1814 = vmatpush1.msra.mxu0 0.0
        %1815 = vmatprep.subr.mxu0 0.0
        %1816 = vmatpush1.msra.mxu0 0.0
        %1817 = vmatprep.subr.mxu0 0.0
        %1818 = vmatpush1.msra.mxu0 0.0
        %1819 = vmatprep.subr.mxu0 0.0
        %1820 = vmatpush1.msra.mxu0 0.0
        %1821 = vmatprep.subr.mxu0 0.0
        %1822 = vmatpush1.msra.mxu0 0.0
        %1823 = vmatprep.subr.mxu0 0.0
        %1824 = vmatpush1.msra.mxu0 0.0
        %1825 = vmatprep.subr.mxu0 0.0
        %1826 = vmatpush1.msra.mxu0 0.0
        %1827 = vmatprep.subr.mxu0 0.0
        %1828 = vmatpush1.msra.mxu0 0.0
        %1829 = vmatprep.subr.mxu0 0.0
        %1830 = vmatpush1.msra.mxu0 0.0
        %1831 = vmatprep.subr.mxu0 0.0
        %1832 = vmatpush1.msra.mxu0 0.0
        %1833 = vmatprep.subr.mxu0 0.0
        %1834 = vmatpush1.msra.mxu0 0.0
        %1835 = vmatprep.subr.mxu0 0.0
        %1836 = vmatpush1.msra.mxu0 0.0
        %1837 = vmatprep.subr.mxu0 0.0
        %1838 = vmatpush1.msra.mxu0 0.0
        %1839 = vmatprep.subr.mxu0 0.0
        %1840 = vmatpush1.msra.mxu0 0.0
        %1841 = vmatprep.subr.mxu0 0.0
        %1842 = vmatpush1.msra.mxu0 0.0
        %1843 = vmatprep.mubr.f32.mxu0 0.0
        %1844 = vmatmul.mubr.f32.gmra.mrb[0].mxu0 %v1777
        %v1845 = vpop.f32.mrb[0].mxu0
        %v1846 = vadd.f32 0.0, %v1845
        %v1847 = vpop.f32.mrb[0].mxu0
        %1848 = vdwg.mxu0
        %v1850 = vsel %vm1556, %v1512, 0
        %1852 = vmatprep.subr.mxu0 0.0
        %1853 = vmatpush1.msra.mxu0 %v1532
        %1854 = vmatprep.subr.mxu0 0.0
        %1855 = vmatpush1.msra.mxu0 %v1533
        %1856 = vmatprep.subr.mxu0 0.0
        %1857 = vmatpush1.msra.mxu0 0.0
        %1858 = vmatprep.subr.mxu0 0.0
        %1859 = vmatpush1.msra.mxu0 0.0
        %1860 = vmatprep.subr.mxu0 0.0
        %1861 = vmatpush1.msra.mxu0 0.0
        %1862 = vmatprep.subr.mxu0 0.0
        %1863 = vmatpush1.msra.mxu0 0.0
        %1864 = vmatprep.subr.mxu0 0.0
        %1865 = vmatpush1.msra.mxu0 0.0
        %1866 = vmatprep.subr.mxu0 0.0
        %1867 = vmatpush1.msra.mxu0 0.0
        %1868 = vmatprep.subr.mxu0 0.0
        %1869 = vmatpush1.msra.mxu0 0.0
        %1870 = vmatprep.subr.mxu0 0.0
        %1871 = vmatpush1.msra.mxu0 0.0
        %1872 = vmatprep.subr.mxu0 0.0
        %1873 = vmatpush1.msra.mxu0 0.0
        %1874 = vmatprep.subr.mxu0 0.0
        %1875 = vmatpush1.msra.mxu0 0.0
        %1876 = vmatprep.subr.mxu0 0.0
        %1877 = vmatpush1.msra.mxu0 0.0
        %1878 = vmatprep.subr.mxu0 0.0
        %1879 = vmatpush1.msra.mxu0 0.0
        %1880 = vmatprep.subr.mxu0 0.0
        %1881 = vmatpush1.msra.mxu0 0.0
        %1882 = vmatprep.subr.mxu0 0.0
        %1883 = vmatpush1.msra.mxu0 0.0
        %1884 = vmatprep.subr.mxu0 0.0
        %1885 = vmatpush1.msra.mxu0 0.0
        %1886 = vmatprep.subr.mxu0 0.0
        %1887 = vmatpush1.msra.mxu0 0.0
        %1888 = vmatprep.subr.mxu0 0.0
        %1889 = vmatpush1.msra.mxu0 0.0
        %1890 = vmatprep.subr.mxu0 0.0
        %1891 = vmatpush1.msra.mxu0 0.0
        %1892 = vmatprep.subr.mxu0 0.0
        %1893 = vmatpush1.msra.mxu0 0.0
        %1894 = vmatprep.subr.mxu0 0.0
        %1895 = vmatpush1.msra.mxu0 0.0
        %1896 = vmatprep.subr.mxu0 0.0
        %1897 = vmatpush1.msra.mxu0 0.0
        %1898 = vmatprep.subr.mxu0 0.0
        %1899 = vmatpush1.msra.mxu0 0.0
        %1900 = vmatprep.subr.mxu0 0.0
        %1901 = vmatpush1.msra.mxu0 0.0
        %1902 = vmatprep.subr.mxu0 0.0
        %1903 = vmatpush1.msra.mxu0 0.0
        %1904 = vmatprep.subr.mxu0 0.0
        %1905 = vmatpush1.msra.mxu0 0.0
        %1906 = vmatprep.subr.mxu0 0.0
        %1907 = vmatpush1.msra.mxu0 0.0
        %1908 = vmatprep.subr.mxu0 0.0
        %1909 = vmatpush1.msra.mxu0 0.0
        %1910 = vmatprep.subr.mxu0 0.0
        %1911 = vmatpush1.msra.mxu0 0.0
        %1912 = vmatprep.subr.mxu0 0.0
        %1913 = vmatpush1.msra.mxu0 0.0
        %1914 = vmatprep.subr.mxu0 0.0
        %1915 = vmatpush1.msra.mxu0 0.0
        %1916 = vmatprep.mubr.f32.mxu0 0.0
        %1917 = vmatmul.mubr.f32.gmra.mrb[0].mxu0 %v1850
        %v1918 = vpop.f32.mrb[0].mxu0
        %v1919 = vadd.f32 0.0, %v1918
        %v1920 = vpop.f32.mrb[0].mxu0
        %1921 = vdwg.mxu0
        %v1923 = vsel %vm1556, %v1513, 0
        %1925 = vmatprep.subr.mxu0 0.0
        %1926 = vmatpush1.msra.mxu0 %v1534
        %1927 = vmatprep.subr.mxu0 0.0
        %1928 = vmatpush1.msra.mxu0 %v1535
        %1929 = vmatprep.subr.mxu0 0.0
        %1930 = vmatpush1.msra.mxu0 0.0
        %1931 = vmatprep.subr.mxu0 0.0
        %1932 = vmatpush1.msra.mxu0 0.0
        %1933 = vmatprep.subr.mxu0 0.0
        %1934 = vmatpush1.msra.mxu0 0.0
        %1935 = vmatprep.subr.mxu0 0.0
        %1936 = vmatpush1.msra.mxu0 0.0
        %1937 = vmatprep.subr.mxu0 0.0
        %1938 = vmatpush1.msra.mxu0 0.0
        %1939 = vmatprep.subr.mxu0 0.0
        %1940 = vmatpush1.msra.mxu0 0.0
        %1941 = vmatprep.subr.mxu0 0.0
        %1942 = vmatpush1.msra.mxu0 0.0
        %1943 = vmatprep.subr.mxu0 0.0
        %1944 = vmatpush1.msra.mxu0 0.0
        %1945 = vmatprep.subr.mxu0 0.0
        %1946 = vmatpush1.msra.mxu0 0.0
        %1947 = vmatprep.subr.mxu0 0.0
        %1948 = vmatpush1.msra.mxu0 0.0
        %1949 = vmatprep.subr.mxu0 0.0
        %1950 = vmatpush1.msra.mxu0 0.0
        %1951 = vmatprep.subr.mxu0 0.0
        %1952 = vmatpush1.msra.mxu0 0.0
        %1953 = vmatprep.subr.mxu0 0.0
        %1954 = vmatpush1.msra.mxu0 0.0
        %1955 = vmatprep.subr.mxu0 0.0
        %1956 = vmatpush1.msra.mxu0 0.0
        %1957 = vmatprep.subr.mxu0 0.0
        %1958 = vmatpush1.msra.mxu0 0.0
        %1959 = vmatprep.subr.mxu0 0.0
        %1960 = vmatpush1.msra.mxu0 0.0
        %1961 = vmatprep.subr.mxu0 0.0
        %1962 = vmatpush1.msra.mxu0 0.0
        %1963 = vmatprep.subr.mxu0 0.0
        %1964 = vmatpush1.msra.mxu0 0.0
        %1965 = vmatprep.subr.mxu0 0.0
        %1966 = vmatpush1.msra.mxu0 0.0
        %1967 = vmatprep.subr.mxu0 0.0
        %1968 = vmatpush1.msra.mxu0 0.0
        %1969 = vmatprep.subr.mxu0 0.0
        %1970 = vmatpush1.msra.mxu0 0.0
        %1971 = vmatprep.subr.mxu0 0.0
        %1972 = vmatpush1.msra.mxu0 0.0
        %1973 = vmatprep.subr.mxu0 0.0
        %1974 = vmatpush1.msra.mxu0 0.0
        %1975 = vmatprep.subr.mxu0 0.0
        %1976 = vmatpush1.msra.mxu0 0.0
        %1977 = vmatprep.subr.mxu0 0.0
        %1978 = vmatpush1.msra.mxu0 0.0
        %1979 = vmatprep.subr.mxu0 0.0
        %1980 = vmatpush1.msra.mxu0 0.0
        %1981 = vmatprep.subr.mxu0 0.0
        %1982 = vmatpush1.msra.mxu0 0.0
        %1983 = vmatprep.subr.mxu0 0.0
        %1984 = vmatpush1.msra.mxu0 0.0
        %1985 = vmatprep.subr.mxu0 0.0
        %1986 = vmatpush1.msra.mxu0 0.0
        %1987 = vmatprep.subr.mxu0 0.0
        %1988 = vmatpush1.msra.mxu0 0.0
        %1989 = vmatprep.mubr.f32.mxu0 0.0
        %1990 = vmatmul.mubr.f32.gmra.mrb[0].mxu0 %v1923
        %v1991 = vpop.f32.mrb[0].mxu0
        %v1992 = vadd.f32 0.0, %v1991
        %v1993 = vpop.f32.mrb[0].mxu0
        %1994 = vdwg.mxu0
        %v1996 = vsel %vm1556, %v1514, 0
        %1998 = vmatprep.subr.mxu0 0.0
        %1999 = vmatpush1.msra.mxu0 %v1536
        %2000 = vmatprep.subr.mxu0 0.0
        %2001 = vmatpush1.msra.mxu0 %v1537
        %2002 = vmatprep.subr.mxu0 0.0
        %2003 = vmatpush1.msra.mxu0 0.0
        %2004 = vmatprep.subr.mxu0 0.0
        %2005 = vmatpush1.msra.mxu0 0.0
        %2006 = vmatprep.subr.mxu0 0.0
        %2007 = vmatpush1.msra.mxu0 0.0
        %2008 = vmatprep.subr.mxu0 0.0
        %2009 = vmatpush1.msra.mxu0 0.0
        %2010 = vmatprep.subr.mxu0 0.0
        %2011 = vmatpush1.msra.mxu0 0.0
        %2012 = vmatprep.subr.mxu0 0.0
        %2013 = vmatpush1.msra.mxu0 0.0
        %2014 = vmatprep.subr.mxu0 0.0
        %2015 = vmatpush1.msra.mxu0 0.0
        %2016 = vmatprep.subr.mxu0 0.0
        %2017 = vmatpush1.msra.mxu0 0.0
        %2018 = vmatprep.subr.mxu0 0.0
        %2019 = vmatpush1.msra.mxu0 0.0
        %2020 = vmatprep.subr.mxu0 0.0
        %2021 = vmatpush1.msra.mxu0 0.0
        %2022 = vmatprep.subr.mxu0 0.0
        %2023 = vmatpush1.msra.mxu0 0.0
        %2024 = vmatprep.subr.mxu0 0.0
        %2025 = vmatpush1.msra.mxu0 0.0
        %2026 = vmatprep.subr.mxu0 0.0
        %2027 = vmatpush1.msra.mxu0 0.0
        %2028 = vmatprep.subr.mxu0 0.0
        %2029 = vmatpush1.msra.mxu0 0.0
        %2030 = vmatprep.subr.mxu0 0.0
        %2031 = vmatpush1.msra.mxu0 0.0
        %2032 = vmatprep.subr.mxu0 0.0
        %2033 = vmatpush1.msra.mxu0 0.0
        %2034 = vmatprep.subr.mxu0 0.0
        %2035 = vmatpush1.msra.mxu0 0.0
        %2036 = vmatprep.subr.mxu0 0.0
        %2037 = vmatpush1.msra.mxu0 0.0
        %2038 = vmatprep.subr.mxu0 0.0
        %2039 = vmatpush1.msra.mxu0 0.0
        %2040 = vmatprep.subr.mxu0 0.0
        %2041 = vmatpush1.msra.mxu0 0.0
        %2042 = vmatprep.subr.mxu0 0.0
        %2043 = vmatpush1.msra.mxu0 0.0
        %2044 = vmatprep.subr.mxu0 0.0
        %2045 = vmatpush1.msra.mxu0 0.0
        %2046 = vmatprep.subr.mxu0 0.0
        %2047 = vmatpush1.msra.mxu0 0.0
        %2048 = vmatprep.subr.mxu0 0.0
        %2049 = vmatpush1.msra.mxu0 0.0
        %2050 = vmatprep.subr.mxu0 0.0
        %2051 = vmatpush1.msra.mxu0 0.0
        %2052 = vmatprep.subr.mxu0 0.0
        %2053 = vmatpush1.msra.mxu0 0.0
        %2054 = vmatprep.subr.mxu0 0.0
        %2055 = vmatpush1.msra.mxu0 0.0
        %2056 = vmatprep.subr.mxu0 0.0
        %2057 = vmatpush1.msra.mxu0 0.0
        %2058 = vmatprep.subr.mxu0 0.0
        %2059 = vmatpush1.msra.mxu0 0.0
        %2060 = vmatprep.subr.mxu0 0.0
        %2061 = vmatpush1.msra.mxu0 0.0
        %2062 = vmatprep.mubr.f32.mxu0 0.0
        %2063 = vmatmul.mubr.f32.gmra.mrb[0].mxu0 %v1996
        %v2064 = vpop.f32.mrb[0].mxu0
        %v2065 = vadd.f32 0.0, %v2064
        %v2066 = vpop.f32.mrb[0].mxu0
        %2067 = vdwg.mxu0
        %v2069 = vsel %vm1556, %v1515, 0
        %2071 = vmatprep.subr.mxu0 0.0
        %2072 = vmatpush1.msra.mxu0 %v1538
        %2073 = vmatprep.subr.mxu0 0.0
        %2074 = vmatpush1.msra.mxu0 %v1539
        %2075 = vmatprep.subr.mxu0 0.0
        %2076 = vmatpush1.msra.mxu0 0.0
        %2077 = vmatprep.subr.mxu0 0.0
        %2078 = vmatpush1.msra.mxu0 0.0
        %2079 = vmatprep.subr.mxu0 0.0
        %2080 = vmatpush1.msra.mxu0 0.0
        %2081 = vmatprep.subr.mxu0 0.0
        %2082 = vmatpush1.msra.mxu0 0.0
        %2083 = vmatprep.subr.mxu0 0.0
        %2084 = vmatpush1.msra.mxu0 0.0
        %2085 = vmatprep.subr.mxu0 0.0
        %2086 = vmatpush1.msra.mxu0 0.0
        %2087 = vmatprep.subr.mxu0 0.0
        %2088 = vmatpush1.msra.mxu0 0.0
        %2089 = vmatprep.subr.mxu0 0.0
        %2090 = vmatpush1.msra.mxu0 0.0
        %2091 = vmatprep.subr.mxu0 0.0
        %2092 = vmatpush1.msra.mxu0 0.0
        %2093 = vmatprep.subr.mxu0 0.0
        %2094 = vmatpush1.msra.mxu0 0.0
        %2095 = vmatprep.subr.mxu0 0.0
        %2096 = vmatpush1.msra.mxu0 0.0
        %2097 = vmatprep.subr.mxu0 0.0
        %2098 = vmatpush1.msra.mxu0 0.0
        %2099 = vmatprep.subr.mxu0 0.0
        %2100 = vmatpush1.msra.mxu0 0.0
        %2101 = vmatprep.subr.mxu0 0.0
        %2102 = vmatpush1.msra.mxu0 0.0
        %2103 = vmatprep.subr.mxu0 0.0
        %2104 = vmatpush1.msra.mxu0 0.0
        %2105 = vmatprep.subr.mxu0 0.0
        %2106 = vmatpush1.msra.mxu0 0.0
        %2107 = vmatprep.subr.mxu0 0.0
        %2108 = vmatpush1.msra.mxu0 0.0
        %2109 = vmatprep.subr.mxu0 0.0
        %2110 = vmatpush1.msra.mxu0 0.0
        %2111 = vmatprep.subr.mxu0 0.0
        %2112 = vmatpush1.msra.mxu0 0.0
        %2113 = vmatprep.subr.mxu0 0.0
        %2114 = vmatpush1.msra.mxu0 0.0
        %2115 = vmatprep.subr.mxu0 0.0
        %2116 = vmatpush1.msra.mxu0 0.0
        %2117 = vmatprep.subr.mxu0 0.0
        %2118 = vmatpush1.msra.mxu0 0.0
        %2119 = vmatprep.subr.mxu0 0.0
        %2120 = vmatpush1.msra.mxu0 0.0
        %2121 = vmatprep.subr.mxu0 0.0
        %2122 = vmatpush1.msra.mxu0 0.0
        %2123 = vmatprep.subr.mxu0 0.0
        %2124 = vmatpush1.msra.mxu0 0.0
        %2125 = vmatprep.subr.mxu0 0.0
        %2126 = vmatpush1.msra.mxu0 0.0
        %2127 = vmatprep.subr.mxu0 0.0
        %2128 = vmatpush1.msra.mxu0 0.0
        %2129 = vmatprep.subr.mxu0 0.0
        %2130 = vmatpush1.msra.mxu0 0.0
        %2131 = vmatprep.subr.mxu0 0.0
        %2132 = vmatpush1.msra.mxu0 0.0
        %2133 = vmatprep.subr.mxu0 0.0
        %2134 = vmatpush1.msra.mxu0 0.0
        %2135 = vmatprep.mubr.f32.mxu0 0.0
        %2136 = vmatmul.mubr.f32.gmra.mrb[0].mxu0 %v2069
        %v2137 = vpop.f32.mrb[0].mxu0
        %v2138 = vadd.f32 0.0, %v2137
        %v2139 = vpop.f32.mrb[0].mxu0
        %2140 = vdwg.mxu0
        %v2142 = vsel %vm1556, %v1516, 0
        %2144 = vmatprep.subr.mxu0 0.0
        %2145 = vmatpush1.msra.mxu0 %v1540
        %2146 = vmatprep.subr.mxu0 0.0
        %2147 = vmatpush1.msra.mxu0 %v1541
        %2148 = vmatprep.subr.mxu0 0.0
        %2149 = vmatpush1.msra.mxu0 0.0
        %2150 = vmatprep.subr.mxu0 0.0
        %2151 = vmatpush1.msra.mxu0 0.0
        %2152 = vmatprep.subr.mxu0 0.0
        %2153 = vmatpush1.msra.mxu0 0.0
        %2154 = vmatprep.subr.mxu0 0.0
        %2155 = vmatpush1.msra.mxu0 0.0
        %2156 = vmatprep.subr.mxu0 0.0
        %2157 = vmatpush1.msra.mxu0 0.0
        %2158 = vmatprep.subr.mxu0 0.0
        %2159 = vmatpush1.msra.mxu0 0.0
        %2160 = vmatprep.subr.mxu0 0.0
        %2161 = vmatpush1.msra.mxu0 0.0
        %2162 = vmatprep.subr.mxu0 0.0
        %2163 = vmatpush1.msra.mxu0 0.0
        %2164 = vmatprep.subr.mxu0 0.0
        %2165 = vmatpush1.msra.mxu0 0.0
        %2166 = vmatprep.subr.mxu0 0.0
        %2167 = vmatpush1.msra.mxu0 0.0
        %2168 = vmatprep.subr.mxu0 0.0
        %2169 = vmatpush1.msra.mxu0 0.0
        %2170 = vmatprep.subr.mxu0 0.0
        %2171 = vmatpush1.msra.mxu0 0.0
        %2172 = vmatprep.subr.mxu0 0.0
        %2173 = vmatpush1.msra.mxu0 0.0
        %2174 = vmatprep.subr.mxu0 0.0
        %2175 = vmatpush1.msra.mxu0 0.0
        %2176 = vmatprep.subr.mxu0 0.0
        %2177 = vmatpush1.msra.mxu0 0.0
        %2178 = vmatprep.subr.mxu0 0.0
        %2179 = vmatpush1.msra.mxu0 0.0
        %2180 = vmatprep.subr.mxu0 0.0
        %2181 = vmatpush1.msra.mxu0 0.0
        %2182 = vmatprep.subr.mxu0 0.0
        %2183 = vmatpush1.msra.mxu0 0.0
        %2184 = vmatprep.subr.mxu0 0.0
        %2185 = vmatpush1.msra.mxu0 0.0
        %2186 = vmatprep.subr.mxu0 0.0
        %2187 = vmatpush1.msra.mxu0 0.0
        %2188 = vmatprep.subr.mxu0 0.0
        %2189 = vmatpush1.msra.mxu0 0.0
        %2190 = vmatprep.subr.mxu0 0.0
        %2191 = vmatpush1.msra.mxu0 0.0
        %2192 = vmatprep.subr.mxu0 0.0
        %2193 = vmatpush1.msra.mxu0 0.0
        %2194 = vmatprep.subr.mxu0 0.0
        %2195 = vmatpush1.msra.mxu0 0.0
        %2196 = vmatprep.subr.mxu0 0.0
        %2197 = vmatpush1.msra.mxu0 0.0
        %2198 = vmatprep.subr.mxu0 0.0
        %2199 = vmatpush1.msra.mxu0 0.0
        %2200 = vmatprep.subr.mxu0 0.0
        %2201 = vmatpush1.msra.mxu0 0.0
        %2202 = vmatprep.subr.mxu0 0.0
        %2203 = vmatpush1.msra.mxu0 0.0
        %2204 = vmatprep.subr.mxu0 0.0
        %2205 = vmatpush1.msra.mxu0 0.0
        %2206 = vmatprep.subr.mxu0 0.0
        %2207 = vmatpush1.msra.mxu0 0.0
        %2208 = vmatprep.mubr.f32.mxu0 0.0
        %2209 = vmatmul.mubr.f32.gmra.mrb[0].mxu0 %v2142
        %v2210 = vpop.f32.mrb[0].mxu0
        %v2211 = vadd.f32 0.0, %v2210
        %v2212 = vpop.f32.mrb[0].mxu0
        %2213 = vdwg.mxu0
        %v2215 = vsel %vm1556, %v1517, 0
        %2217 = vmatprep.subr.mxu0 0.0
        %2218 = vmatpush1.msra.mxu0 %v1542
        %2219 = vmatprep.subr.mxu0 0.0
        %2220 = vmatpush1.msra.mxu0 %v1543
        %2221 = vmatprep.subr.mxu0 0.0
        %2222 = vmatpush1.msra.mxu0 0.0
        %2223 = vmatprep.subr.mxu0 0.0
        %2224 = vmatpush1.msra.mxu0 0.0
        %2225 = vmatprep.subr.mxu0 0.0
        %2226 = vmatpush1.msra.mxu0 0.0
        %2227 = vmatprep.subr.mxu0 0.0
        %2228 = vmatpush1.msra.mxu0 0.0
        %2229 = vmatprep.subr.mxu0 0.0
        %2230 = vmatpush1.msra.mxu0 0.0
        %2231 = vmatprep.subr.mxu0 0.0
        %2232 = vmatpush1.msra.mxu0 0.0
        %2233 = vmatprep.subr.mxu0 0.0
        %2234 = vmatpush1.msra.mxu0 0.0
        %2235 = vmatprep.subr.mxu0 0.0
        %2236 = vmatpush1.msra.mxu0 0.0
        %2237 = vmatprep.subr.mxu0 0.0
        %2238 = vmatpush1.msra.mxu0 0.0
        %2239 = vmatprep.subr.mxu0 0.0
        %2240 = vmatpush1.msra.mxu0 0.0
        %2241 = vmatprep.subr.mxu0 0.0
        %2242 = vmatpush1.msra.mxu0 0.0
        %2243 = vmatprep.subr.mxu0 0.0
        %2244 = vmatpush1.msra.mxu0 0.0
        %2245 = vmatprep.subr.mxu0 0.0
        %2246 = vmatpush1.msra.mxu0 0.0
        %2247 = vmatprep.subr.mxu0 0.0
        %2248 = vmatpush1.msra.mxu0 0.0
        %2249 = vmatprep.subr.mxu0 0.0
        %2250 = vmatpush1.msra.mxu0 0.0
        %2251 = vmatprep.subr.mxu0 0.0
        %2252 = vmatpush1.msra.mxu0 0.0
        %2253 = vmatprep.subr.mxu0 0.0
        %2254 = vmatpush1.msra.mxu0 0.0
        %2255 = vmatprep.subr.mxu0 0.0
        %2256 = vmatpush1.msra.mxu0 0.0
        %2257 = vmatprep.subr.mxu0 0.0
        %2258 = vmatpush1.msra.mxu0 0.0
        %2259 = vmatprep.subr.mxu0 0.0
        %2260 = vmatpush1.msra.mxu0 0.0
        %2261 = vmatprep.subr.mxu0 0.0
        %2262 = vmatpush1.msra.mxu0 0.0
        %2263 = vmatprep.subr.mxu0 0.0
        %2264 = vmatpush1.msra.mxu0 0.0
        %2265 = vmatprep.subr.mxu0 0.0
        %2266 = vmatpush1.msra.mxu0 0.0
        %2267 = vmatprep.subr.mxu0 0.0
        %2268 = vmatpush1.msra.mxu0 0.0
        %2269 = vmatprep.subr.mxu0 0.0
        %2270 = vmatpush1.msra.mxu0 0.0
        %2271 = vmatprep.subr.mxu0 0.0
        %2272 = vmatpush1.msra.mxu0 0.0
        %2273 = vmatprep.subr.mxu0 0.0
        %2274 = vmatpush1.msra.mxu0 0.0
        %2275 = vmatprep.subr.mxu0 0.0
        %2276 = vmatpush1.msra.mxu0 0.0
        %2277 = vmatprep.subr.mxu0 0.0
        %2278 = vmatpush1.msra.mxu0 0.0
        %2279 = vmatprep.subr.mxu0 0.0
        %2280 = vmatpush1.msra.mxu0 0.0
        %2281 = vmatprep.mubr.f32.mxu0 0.0
        %2282 = vmatmul.mubr.f32.gmra.mrb[0].mxu0 %v2215
        %v2283 = vpop.f32.mrb[0].mxu0
        %v2284 = vadd.f32 0.0, %v2283
        %v2285 = vpop.f32.mrb[0].mxu0
        %2286 = vdwg.mxu0
        %v2288 = vsel %vm1556, %v1518, 0
        %2290 = vmatprep.subr.mxu0 0.0
        %2291 = vmatpush1.msra.mxu0 %v1544
        %2292 = vmatprep.subr.mxu0 0.0
        %2293 = vmatpush1.msra.mxu0 %v1545
        %2294 = vmatprep.subr.mxu0 0.0
        %2295 = vmatpush1.msra.mxu0 0.0
        %2296 = vmatprep.subr.mxu0 0.0
        %2297 = vmatpush1.msra.mxu0 0.0
        %2298 = vmatprep.subr.mxu0 0.0
        %2299 = vmatpush1.msra.mxu0 0.0
        %2300 = vmatprep.subr.mxu0 0.0
        %2301 = vmatpush1.msra.mxu0 0.0
        %2302 = vmatprep.subr.mxu0 0.0
        %2303 = vmatpush1.msra.mxu0 0.0
        %2304 = vmatprep.subr.mxu0 0.0
        %2305 = vmatpush1.msra.mxu0 0.0
        %2306 = vmatprep.subr.mxu0 0.0
        %2307 = vmatpush1.msra.mxu0 0.0
        %2308 = vmatprep.subr.mxu0 0.0
        %2309 = vmatpush1.msra.mxu0 0.0
        %2310 = vmatprep.subr.mxu0 0.0
        %2311 = vmatpush1.msra.mxu0 0.0
        %2312 = vmatprep.subr.mxu0 0.0
        %2313 = vmatpush1.msra.mxu0 0.0
        %2314 = vmatprep.subr.mxu0 0.0
        %2315 = vmatpush1.msra.mxu0 0.0
        %2316 = vmatprep.subr.mxu0 0.0
        %2317 = vmatpush1.msra.mxu0 0.0
        %2318 = vmatprep.subr.mxu0 0.0
        %2319 = vmatpush1.msra.mxu0 0.0
        %2320 = vmatprep.subr.mxu0 0.0
        %2321 = vmatpush1.msra.mxu0 0.0
        %2322 = vmatprep.subr.mxu0 0.0
        %2323 = vmatpush1.msra.mxu0 0.0
        %2324 = vmatprep.subr.mxu0 0.0
        %2325 = vmatpush1.msra.mxu0 0.0
        %2326 = vmatprep.subr.mxu0 0.0
        %2327 = vmatpush1.msra.mxu0 0.0
        %2328 = vmatprep.subr.mxu0 0.0
        %2329 = vmatpush1.msra.mxu0 0.0
        %2330 = vmatprep.subr.mxu0 0.0
        %2331 = vmatpush1.msra.mxu0 0.0
        %2332 = vmatprep.subr.mxu0 0.0
        %2333 = vmatpush1.msra.mxu0 0.0
        %2334 = vmatprep.subr.mxu0 0.0
        %2335 = vmatpush1.msra.mxu0 0.0
        %2336 = vmatprep.subr.mxu0 0.0
        %2337 = vmatpush1.msra.mxu0 0.0
        %2338 = vmatprep.subr.mxu0 0.0
        %2339 = vmatpush1.msra.mxu0 0.0
        %2340 = vmatprep.subr.mxu0 0.0
        %2341 = vmatpush1.msra.mxu0 0.0
        %2342 = vmatprep.subr.mxu0 0.0
        %2343 = vmatpush1.msra.mxu0 0.0
        %2344 = vmatprep.subr.mxu0 0.0
        %2345 = vmatpush1.msra.mxu0 0.0
        %2346 = vmatprep.subr.mxu0 0.0
        %2347 = vmatpush1.msra.mxu0 0.0
        %2348 = vmatprep.subr.mxu0 0.0
        %2349 = vmatpush1.msra.mxu0 0.0
        %2350 = vmatprep.subr.mxu0 0.0
        %2351 = vmatpush1.msra.mxu0 0.0
        %2352 = vmatprep.subr.mxu0 0.0
        %2353 = vmatpush1.msra.mxu0 0.0
        %2354 = vmatprep.mubr.f32.mxu0 0.0
        %2355 = vmatmul.mubr.f32.gmra.mrb[0].mxu0 %v2288
        %v2356 = vpop.f32.mrb[0].mxu0
        %v2357 = vadd.f32 0.0, %v2356
        %v2358 = vpop.f32.mrb[0].mxu0
        %2359 = vdwg.mxu0
        %v2361 = vsel %vm1556, %v1519, 0
        %2363 = vmatprep.subr.mxu0 0.0
        %2364 = vmatpush1.msra.mxu0 %v1546
        %2365 = vmatprep.subr.mxu0 0.0
        %2366 = vmatpush1.msra.mxu0 %v1547
        %2367 = vmatprep.subr.mxu0 0.0
        %2368 = vmatpush1.msra.mxu0 0.0
        %2369 = vmatprep.subr.mxu0 0.0
        %2370 = vmatpush1.msra.mxu0 0.0
        %2371 = vmatprep.subr.mxu0 0.0
        %2372 = vmatpush1.msra.mxu0 0.0
        %2373 = vmatprep.subr.mxu0 0.0
        %2374 = vmatpush1.msra.mxu0 0.0
        %2375 = vmatprep.subr.mxu0 0.0
        %2376 = vmatpush1.msra.mxu0 0.0
        %2377 = vmatprep.subr.mxu0 0.0
        %2378 = vmatpush1.msra.mxu0 0.0
        %2379 = vmatprep.subr.mxu0 0.0
        %2380 = vmatpush1.msra.mxu0 0.0
        %2381 = vmatprep.subr.mxu0 0.0
        %2382 = vmatpush1.msra.mxu0 0.0
        %2383 = vmatprep.subr.mxu0 0.0
        %2384 = vmatpush1.msra.mxu0 0.0
        %2385 = vmatprep.subr.mxu0 0.0
        %2386 = vmatpush1.msra.mxu0 0.0
        %2387 = vmatprep.subr.mxu0 0.0
        %2388 = vmatpush1.msra.mxu0 0.0
        %2389 = vmatprep.subr.mxu0 0.0
        %2390 = vmatpush1.msra.mxu0 0.0
        %2391 = vmatprep.subr.mxu0 0.0
        %2392 = vmatpush1.msra.mxu0 0.0
        %2393 = vmatprep.subr.mxu0 0.0
        %2394 = vmatpush1.msra.mxu0 0.0
        %2395 = vmatprep.subr.mxu0 0.0
        %2396 = vmatpush1.msra.mxu0 0.0
        %2397 = vmatprep.subr.mxu0 0.0
        %2398 = vmatpush1.msra.mxu0 0.0
        %2399 = vmatprep.subr.mxu0 0.0
        %2400 = vmatpush1.msra.mxu0 0.0
        %2401 = vmatprep.subr.mxu0 0.0
        %2402 = vmatpush1.msra.mxu0 0.0
        %2403 = vmatprep.subr.mxu0 0.0
        %2404 = vmatpush1.msra.mxu0 0.0
        %2405 = vmatprep.subr.mxu0 0.0
        %2406 = vmatpush1.msra.mxu0 0.0
        %2407 = vmatprep.subr.mxu0 0.0
        %2408 = vmatpush1.msra.mxu0 0.0
        %2409 = vmatprep.subr.mxu0 0.0
        %2410 = vmatpush1.msra.mxu0 0.0
        %2411 = vmatprep.subr.mxu0 0.0
        %2412 = vmatpush1.msra.mxu0 0.0
        %2413 = vmatprep.subr.mxu0 0.0
        %2414 = vmatpush1.msra.mxu0 0.0
        %2415 = vmatprep.subr.mxu0 0.0
        %2416 = vmatpush1.msra.mxu0 0.0
        %2417 = vmatprep.subr.mxu0 0.0
        %2418 = vmatpush1.msra.mxu0 0.0
        %2419 = vmatprep.subr.mxu0 0.0
        %2420 = vmatpush1.msra.mxu0 0.0
        %2421 = vmatprep.subr.mxu0 0.0
        %2422 = vmatpush1.msra.mxu0 0.0
        %2423 = vmatprep.subr.mxu0 0.0
        %2424 = vmatpush1.msra.mxu0 0.0
        %2425 = vmatprep.subr.mxu0 0.0
        %2426 = vmatpush1.msra.mxu0 0.0
        %2427 = vmatprep.mubr.f32.mxu0 0.0
        %2428 = vmatmul.mubr.f32.gmra.mrb[0].mxu0 %v2361
        %v2429 = vpop.f32.mrb[0].mxu0
        %v2430 = vadd.f32 0.0, %v2429
        %v2431 = vpop.f32.mrb[0].mxu0
        %2432 = vdwg.mxu0
        %v2434 = vsel %vm1556, %v1520, 0
        %2436 = vmatprep.subr.mxu0 0.0
        %2437 = vmatpush1.msra.mxu0 %v1548
        %2438 = vmatprep.subr.mxu0 0.0
        %2439 = vmatpush1.msra.mxu0 %v1549
        %2440 = vmatprep.subr.mxu0 0.0
        %2441 = vmatpush1.msra.mxu0 0.0
        %2442 = vmatprep.subr.mxu0 0.0
        %2443 = vmatpush1.msra.mxu0 0.0
        %2444 = vmatprep.subr.mxu0 0.0
        %2445 = vmatpush1.msra.mxu0 0.0
        %2446 = vmatprep.subr.mxu0 0.0
        %2447 = vmatpush1.msra.mxu0 0.0
        %2448 = vmatprep.subr.mxu0 0.0
        %2449 = vmatpush1.msra.mxu0 0.0
        %2450 = vmatprep.subr.mxu0 0.0
        %2451 = vmatpush1.msra.mxu0 0.0
        %2452 = vmatprep.subr.mxu0 0.0
        %2453 = vmatpush1.msra.mxu0 0.0
        %2454 = vmatprep.subr.mxu0 0.0
        %2455 = vmatpush1.msra.mxu0 0.0
        %2456 = vmatprep.subr.mxu0 0.0
        %2457 = vmatpush1.msra.mxu0 0.0
        %2458 = vmatprep.subr.mxu0 0.0
        %2459 = vmatpush1.msra.mxu0 0.0
        %2460 = vmatprep.subr.mxu0 0.0
        %2461 = vmatpush1.msra.mxu0 0.0
        %2462 = vmatprep.subr.mxu0 0.0
        %2463 = vmatpush1.msra.mxu0 0.0
        %2464 = vmatprep.subr.mxu0 0.0
        %2465 = vmatpush1.msra.mxu0 0.0
        %2466 = vmatprep.subr.mxu0 0.0
        %2467 = vmatpush1.msra.mxu0 0.0
        %2468 = vmatprep.subr.mxu0 0.0
        %2469 = vmatpush1.msra.mxu0 0.0
        %2470 = vmatprep.subr.mxu0 0.0
        %2471 = vmatpush1.msra.mxu0 0.0
        %2472 = vmatprep.subr.mxu0 0.0
        %2473 = vmatpush1.msra.mxu0 0.0
        %2474 = vmatprep.subr.mxu0 0.0
        %2475 = vmatpush1.msra.mxu0 0.0
        %2476 = vmatprep.subr.mxu0 0.0
        %2477 = vmatpush1.msra.mxu0 0.0
        %2478 = vmatprep.subr.mxu0 0.0
        %2479 = vmatpush1.msra.mxu0 0.0
        %2480 = vmatprep.subr.mxu0 0.0
        %2481 = vmatpush1.msra.mxu0 0.0
        %2482 = vmatprep.subr.mxu0 0.0
        %2483 = vmatpush1.msra.mxu0 0.0
        %2484 = vmatprep.subr.mxu0 0.0
        %2485 = vmatpush1.msra.mxu0 0.0
        %2486 = vmatprep.subr.mxu0 0.0
        %2487 = vmatpush1.msra.mxu0 0.0
        %2488 = vmatprep.subr.mxu0 0.0
        %2489 = vmatpush1.msra.mxu0 0.0
        %2490 = vmatprep.subr.mxu0 0.0
        %2491 = vmatpush1.msra.mxu0 0.0
        %2492 = vmatprep.subr.mxu0 0.0
        %2493 = vmatpush1.msra.mxu0 0.0
        %2494 = vmatprep.subr.mxu0 0.0
        %2495 = vmatpush1.msra.mxu0 0.0
        %2496 = vmatprep.subr.mxu0 0.0
        %2497 = vmatpush1.msra.mxu0 0.0
        %2498 = vmatprep.subr.mxu0 0.0
        %2499 = vmatpush1.msra.mxu0 0.0
        %2500 = vmatprep.mubr.f32.mxu0 0.0
        %2501 = vmatmul.mubr.f32.gmra.mrb[0].mxu0 %v2434
        %v2502 = vpop.f32.mrb[0].mxu0
        %v2503 = vadd.f32 0.0, %v2502
        %v2504 = vpop.f32.mrb[0].mxu0
        %2505 = vdwg.mxu0
        %v2507 = vsel %vm1556, %v1521, 0
        %2509 = vmatprep.subr.mxu0 0.0
        %2510 = vmatpush1.msra.mxu0 %v1550
        %2511 = vmatprep.subr.mxu0 0.0
        %2512 = vmatpush1.msra.mxu0 %v1551
        %2513 = vmatprep.subr.mxu0 0.0
        %2514 = vmatpush1.msra.mxu0 0.0
        %2515 = vmatprep.subr.mxu0 0.0
        %2516 = vmatpush1.msra.mxu0 0.0
        %2517 = vmatprep.subr.mxu0 0.0
        %2518 = vmatpush1.msra.mxu0 0.0
        %2519 = vmatprep.subr.mxu0 0.0
        %2520 = vmatpush1.msra.mxu0 0.0
        %2521 = vmatprep.subr.mxu0 0.0
        %2522 = vmatpush1.msra.mxu0 0.0
        %2523 = vmatprep.subr.mxu0 0.0
        %2524 = vmatpush1.msra.mxu0 0.0
        %2525 = vmatprep.subr.mxu0 0.0
        %2526 = vmatpush1.msra.mxu0 0.0
        %2527 = vmatprep.subr.mxu0 0.0
        %2528 = vmatpush1.msra.mxu0 0.0
        %2529 = vmatprep.subr.mxu0 0.0
        %2530 = vmatpush1.msra.mxu0 0.0
        %2531 = vmatprep.subr.mxu0 0.0
        %2532 = vmatpush1.msra.mxu0 0.0
        %2533 = vmatprep.subr.mxu0 0.0
        %2534 = vmatpush1.msra.mxu0 0.0
        %2535 = vmatprep.subr.mxu0 0.0
        %2536 = vmatpush1.msra.mxu0 0.0
        %2537 = vmatprep.subr.mxu0 0.0
        %2538 = vmatpush1.msra.mxu0 0.0
        %2539 = vmatprep.subr.mxu0 0.0
        %2540 = vmatpush1.msra.mxu0 0.0
        %2541 = vmatprep.subr.mxu0 0.0
        %2542 = vmatpush1.msra.mxu0 0.0
        %2543 = vmatprep.subr.mxu0 0.0
        %2544 = vmatpush1.msra.mxu0 0.0
        %2545 = vmatprep.subr.mxu0 0.0
        %2546 = vmatpush1.msra.mxu0 0.0
        %2547 = vmatprep.subr.mxu0 0.0
        %2548 = vmatpush1.msra.mxu0 0.0
        %2549 = vmatprep.subr.mxu0 0.0
        %2550 = vmatpush1.msra.mxu0 0.0
        %2551 = vmatprep.subr.mxu0 0.0
        %2552 = vmatpush1.msra.mxu0 0.0
        %2553 = vmatprep.subr.mxu0 0.0
        %2554 = vmatpush1.msra.mxu0 0.0
        %2555 = vmatprep.subr.mxu0 0.0
        %2556 = vmatpush1.msra.mxu0 0.0
        %2557 = vmatprep.subr.mxu0 0.0
        %2558 = vmatpush1.msra.mxu0 0.0
        %2559 = vmatprep.subr.mxu0 0.0
        %2560 = vmatpush1.msra.mxu0 0.0
        %2561 = vmatprep.subr.mxu0 0.0
        %2562 = vmatpush1.msra.mxu0 0.0
        %2563 = vmatprep.subr.mxu0 0.0
        %2564 = vmatpush1.msra.mxu0 0.0
        %2565 = vmatprep.subr.mxu0 0.0
        %2566 = vmatpush1.msra.mxu0 0.0
        %2567 = vmatprep.subr.mxu0 0.0
        %2568 = vmatpush1.msra.mxu0 0.0
        %2569 = vmatprep.subr.mxu0 0.0
        %2570 = vmatpush1.msra.mxu0 0.0
        %2571 = vmatprep.subr.mxu0 0.0
        %2572 = vmatpush1.msra.mxu0 0.0
        %2573 = vmatprep.mubr.f32.mxu0 0.0
        %2574 = vmatmul.mubr.f32.gmra.mrb[0].mxu0 %v2507
        %v2575 = vpop.f32.mrb[0].mxu0
        %v2576 = vadd.f32 0.0, %v2575
        %v2577 = vpop.f32.mrb[0].mxu0
        %2578 = vdwg.mxu0
        %v2580 = vsel %vm1556, %v1522, 0
        %2582 = vmatprep.subr.mxu0 0.0
        %2583 = vmatpush1.msra.mxu0 %v1552
        %2584 = vmatprep.subr.mxu0 0.0
        %2585 = vmatpush1.msra.mxu0 %v1553
        %2586 = vmatprep.subr.mxu0 0.0
        %2587 = vmatpush1.msra.mxu0 0.0
        %2588 = vmatprep.subr.mxu0 0.0
        %2589 = vmatpush1.msra.mxu0 0.0
        %2590 = vmatprep.subr.mxu0 0.0
        %2591 = vmatpush1.msra.mxu0 0.0
        %2592 = vmatprep.subr.mxu0 0.0
        %2593 = vmatpush1.msra.mxu0 0.0
        %2594 = vmatprep.subr.mxu0 0.0
        %2595 = vmatpush1.msra.mxu0 0.0
        %2596 = vmatprep.subr.mxu0 0.0
        %2597 = vmatpush1.msra.mxu0 0.0
        %2598 = vmatprep.subr.mxu0 0.0
        %2599 = vmatpush1.msra.mxu0 0.0
        %2600 = vmatprep.subr.mxu0 0.0
        %2601 = vmatpush1.msra.mxu0 0.0
        %2602 = vmatprep.subr.mxu0 0.0
        %2603 = vmatpush1.msra.mxu0 0.0
        %2604 = vmatprep.subr.mxu0 0.0
        %2605 = vmatpush1.msra.mxu0 0.0
        %2606 = vmatprep.subr.mxu0 0.0
        %2607 = vmatpush1.msra.mxu0 0.0
        %2608 = vmatprep.subr.mxu0 0.0
        %2609 = vmatpush1.msra.mxu0 0.0
        %2610 = vmatprep.subr.mxu0 0.0
        %2611 = vmatpush1.msra.mxu0 0.0
        %2612 = vmatprep.subr.mxu0 0.0
        %2613 = vmatpush1.msra.mxu0 0.0
        %2614 = vmatprep.subr.mxu0 0.0
        %2615 = vmatpush1.msra.mxu0 0.0
        %2616 = vmatprep.subr.mxu0 0.0
        %2617 = vmatpush1.msra.mxu0 0.0
        %2618 = vmatprep.subr.mxu0 0.0
        %2619 = vmatpush1.msra.mxu0 0.0
        %2620 = vmatprep.subr.mxu0 0.0
        %2621 = vmatpush1.msra.mxu0 0.0
        %2622 = vmatprep.subr.mxu0 0.0
        %2623 = vmatpush1.msra.mxu0 0.0
        %2624 = vmatprep.subr.mxu0 0.0
        %2625 = vmatpush1.msra.mxu0 0.0
        %2626 = vmatprep.subr.mxu0 0.0
        %2627 = vmatpush1.msra.mxu0 0.0
        %2628 = vmatprep.subr.mxu0 0.0
        %2629 = vmatpush1.msra.mxu0 0.0
        %2630 = vmatprep.subr.mxu0 0.0
        %2631 = vmatpush1.msra.mxu0 0.0
        %2632 = vmatprep.subr.mxu0 0.0
        %2633 = vmatpush1.msra.mxu0 0.0
        %2634 = vmatprep.subr.mxu0 0.0
        %2635 = vmatpush1.msra.mxu0 0.0
        %2636 = vmatprep.subr.mxu0 0.0
        %2637 = vmatpush1.msra.mxu0 0.0
        %2638 = vmatprep.subr.mxu0 0.0
        %2639 = vmatpush1.msra.mxu0 0.0
        %2640 = vmatprep.subr.mxu0 0.0
        %2641 = vmatpush1.msra.mxu0 0.0
        %2642 = vmatprep.subr.mxu0 0.0
        %2643 = vmatpush1.msra.mxu0 0.0
        %2644 = vmatprep.subr.mxu0 0.0
        %2645 = vmatpush1.msra.mxu0 0.0
        %2646 = vmatprep.mubr.f32.mxu0 0.0
        %2647 = vmatmul.mubr.f32.gmra.mrb[0].mxu0 %v2580
        %v2648 = vpop.f32.mrb[0].mxu0
        %v2649 = vadd.f32 0.0, %v2648
        %v2650 = vpop.f32.mrb[0].mxu0
        %2651 = vdwg.mxu0
        %v2653 = vsel %vm1556, %v1523, 0
        %2655 = vmatprep.subr.mxu0 0.0
        %2656 = vmatpush1.msra.mxu0 %v1554
        %2657 = vmatprep.subr.mxu0 0.0
        %2658 = vmatpush1.msra.mxu0 %v1555
        %2659 = vmatprep.subr.mxu0 0.0
        %2660 = vmatpush1.msra.mxu0 0.0
        %2661 = vmatprep.subr.mxu0 0.0
        %2662 = vmatpush1.msra.mxu0 0.0
        %2663 = vmatprep.subr.mxu0 0.0
        %2664 = vmatpush1.msra.mxu0 0.0
        %2665 = vmatprep.subr.mxu0 0.0
        %2666 = vmatpush1.msra.mxu0 0.0
        %2667 = vmatprep.subr.mxu0 0.0
        %2668 = vmatpush1.msra.mxu0 0.0
        %2669 = vmatprep.subr.mxu0 0.0
        %2670 = vmatpush1.msra.mxu0 0.0
        %2671 = vmatprep.subr.mxu0 0.0
        %2672 = vmatpush1.msra.mxu0 0.0
        %2673 = vmatprep.subr.mxu0 0.0
        %2674 = vmatpush1.msra.mxu0 0.0
        %2675 = vmatprep.subr.mxu0 0.0
        %2676 = vmatpush1.msra.mxu0 0.0
        %2677 = vmatprep.subr.mxu0 0.0
        %2678 = vmatpush1.msra.mxu0 0.0
        %2679 = vmatprep.subr.mxu0 0.0
        %2680 = vmatpush1.msra.mxu0 0.0
        %2681 = vmatprep.subr.mxu0 0.0
        %2682 = vmatpush1.msra.mxu0 0.0
        %2683 = vmatprep.subr.mxu0 0.0
        %2684 = vmatpush1.msra.mxu0 0.0
        %2685 = vmatprep.subr.mxu0 0.0
        %2686 = vmatpush1.msra.mxu0 0.0
        %2687 = vmatprep.subr.mxu0 0.0
        %2688 = vmatpush1.msra.mxu0 0.0
        %2689 = vmatprep.subr.mxu0 0.0
        %2690 = vmatpush1.msra.mxu0 0.0
        %2691 = vmatprep.subr.mxu0 0.0
        %2692 = vmatpush1.msra.mxu0 0.0
        %2693 = vmatprep.subr.mxu0 0.0
        %2694 = vmatpush1.msra.mxu0 0.0
        %2695 = vmatprep.subr.mxu0 0.0
        %2696 = vmatpush1.msra.mxu0 0.0
        %2697 = vmatprep.subr.mxu0 0.0
        %2698 = vmatpush1.msra.mxu0 0.0
        %2699 = vmatprep.subr.mxu0 0.0
        %2700 = vmatpush1.msra.mxu0 0.0
        %2701 = vmatprep.subr.mxu0 0.0
        %2702 = vmatpush1.msra.mxu0 0.0
        %2703 = vmatprep.subr.mxu0 0.0
        %2704 = vmatpush1.msra.mxu0 0.0
        %2705 = vmatprep.subr.mxu0 0.0
        %2706 = vmatpush1.msra.mxu0 0.0
        %2707 = vmatprep.subr.mxu0 0.0
        %2708 = vmatpush1.msra.mxu0 0.0
        %2709 = vmatprep.subr.mxu0 0.0
        %2710 = vmatpush1.msra.mxu0 0.0
        %2711 = vmatprep.subr.mxu0 0.0
        %2712 = vmatpush1.msra.mxu0 0.0
        %2713 = vmatprep.subr.mxu0 0.0
        %2714 = vmatpush1.msra.mxu0 0.0
        %2715 = vmatprep.subr.mxu0 0.0
        %2716 = vmatpush1.msra.mxu0 0.0
        %2717 = vmatprep.subr.mxu0 0.0
        %2718 = vmatpush1.msra.mxu0 0.0
        %2719 = vmatprep.mubr.f32.mxu0 0.0
        %2720 = vmatmul.mubr.f32.gmra.mrb[0].mxu0 %v2653
        %v2721 = vpop.f32.mrb[0].mxu0
        %v2722 = vadd.f32 0.0, %v2721
        %v2723 = vpop.f32.mrb[0].mxu0
        %2724 = vdwg.mxu0
        %vm2725 = vcmask 982016
        %v2726 = vsel %vm2725, %v1627, 0.0
        %v2727 = vsel %vm2725, %v1700, 0.0
        %v2728 = vadd.f32 %v2726, %v2727
        %v2729 = vsel %vm2725, %v1773, 0.0
        %v2730 = vadd.f32 %v2728, %v2729
        %v2731 = vsel %vm2725, %v1846, 0.0
        %v2732 = vadd.f32 %v2730, %v2731
        %v2733 = vsel %vm2725, %v1919, 0.0
        %v2734 = vadd.f32 %v2732, %v2733
        %v2735 = vsel %vm2725, %v1992, 0.0
        %v2736 = vadd.f32 %v2734, %v2735
        %v2737 = vsel %vm2725, %v2065, 0.0
        %v2738 = vadd.f32 %v2736, %v2737
        %v2739 = vsel %vm2725, %v2138, 0.0
        %v2740 = vadd.f32 %v2738, %v2739
        %v2741 = vsel %vm2725, %v2211, 0.0
        %v2742 = vadd.f32 %v2740, %v2741
        %v2743 = vsel %vm2725, %v2284, 0.0
        %v2744 = vadd.f32 %v2742, %v2743
        %v2745 = vsel %vm2725, %v2357, 0.0
        %v2746 = vadd.f32 %v2744, %v2745
        %v2747 = vsel %vm2725, %v2430, 0.0
        %v2748 = vadd.f32 %v2746, %v2747
        %v2749 = vsel %vm2725, %v2503, 0.0
        %v2750 = vadd.f32 %v2748, %v2749
        %v2751 = vsel %vm2725, %v2576, 0.0
        %v2752 = vadd.f32 %v2750, %v2751
        %v2753 = vsel %vm2725, %v2649, 0.0
        %v2754 = vadd.f32 %v2752, %v2753
        %v2755 = vsel %vm2725, %v2722, 0.0
        %v2756 = vadd.f32 %v2754, %v2755
        %v2757 = vld [vmem:[%s4] sm:$0x1]
        %v2759 = vlaneseq
        %v2760 = vshrl.u32 %v2759, 7
        %v2761 = vsub.s32 0, %v2760
        %v2762 = vrot.slane %v2757, %v2761
        %v2764 = vadd.f32 %v2756, %v2762
        %v2765 = vmax.f32 %v2764, 0.0
        %v2766 = vld [vmem:[%s5] sm:$0xff]
        %v2767 = vld [vmem:[%s5 + $0x8] sm:$0xff]
        %v2768 = vld [vmem:[%s5 + $0x10] sm:$0xff]
        %v2769 = vld [vmem:[%s5 + $0x18] sm:$0xff]
        %v2770 = vld [vmem:[%s5 + $0x20] sm:$0xff]
        %v2771 = vld [vmem:[%s5 + $0x28] sm:$0xff]
        %v2772 = vld [vmem:[%s5 + $0x30] sm:$0xff]
        %v2773 = vld [vmem:[%s5 + $0x38] sm:$0xff]
        %v2774 = vld [vmem:[%s5 + $0x40] sm:$0xff]
        %v2775 = vld [vmem:[%s5 + $0x48] sm:$0xff]
        %v2776 = vld [vmem:[%s5 + $0x50] sm:$0xff]
        %v2777 = vld [vmem:[%s5 + $0x58] sm:$0xff]
        %v2778 = vld [vmem:[%s5 + $0x60] sm:$0xff]
        %v2779 = vld [vmem:[%s5 + $0x68] sm:$0xff]
        %v2780 = vld [vmem:[%s5 + $0x70] sm:$0xff]
        %v2781 = vld [vmem:[%s6] sm:$0x1]
        %v2783 = vlaneseq
        %v2784 = vshrl.u32 %v2783, 7
        %v2785 = vsub.s32 0, %v2784
        %v2786 = vrot.slane %v2781, %v2785
        %v2789 = vsel %vm2725, %v2765, 0
        %2791 = vmatprep.subr.mxu0 0.0
        %2792 = vmatpush1.msra.mxu0 %v2766
        %2793 = vmatprep.subr.mxu0 0.0
        %2794 = vmatpush1.msra.mxu0 %v2767
        %2795 = vmatprep.subr.mxu0 0.0
        %2796 = vmatpush1.msra.mxu0 %v2768
        %2797 = vmatprep.subr.mxu0 0.0
        %2798 = vmatpush1.msra.mxu0 %v2769
        %2799 = vmatprep.subr.mxu0 0.0
        %2800 = vmatpush1.msra.mxu0 %v2770
        %2801 = vmatprep.subr.mxu0 0.0
        %2802 = vmatpush1.msra.mxu0 %v2771
        %2803 = vmatprep.subr.mxu0 0.0
        %2804 = vmatpush1.msra.mxu0 %v2772
        %2805 = vmatprep.subr.mxu0 0.0
        %2806 = vmatpush1.msra.mxu0 %v2773
        %2807 = vmatprep.subr.mxu0 0.0
        %2808 = vmatpush1.msra.mxu0 %v2774
        %2809 = vmatprep.subr.mxu0 0.0
        %2810 = vmatpush1.msra.mxu0 %v2775
        %2811 = vmatprep.subr.mxu0 0.0
        %2812 = vmatpush1.msra.mxu0 %v2776
        %2813 = vmatprep.subr.mxu0 0.0
        %2814 = vmatpush1.msra.mxu0 %v2777
        %2815 = vmatprep.subr.mxu0 0.0
        %2816 = vmatpush1.msra.mxu0 %v2778
        %2817 = vmatprep.subr.mxu0 0.0
        %2818 = vmatpush1.msra.mxu0 %v2779
        %2819 = vmatprep.subr.mxu0 0.0
        %2820 = vmatpush1.msra.mxu0 %v2780
        %2821 = vmatprep.subr.mxu0 0.0
        %2822 = vmatpush1.msra.mxu0 0.0
        %2823 = vmatprep.subr.mxu0 0.0
        %2824 = vmatpush1.msra.mxu0 0.0
        %2825 = vmatprep.subr.mxu0 0.0
        %2826 = vmatpush1.msra.mxu0 0.0
        %2827 = vmatprep.subr.mxu0 0.0
        %2828 = vmatpush1.msra.mxu0 0.0
        %2829 = vmatprep.subr.mxu0 0.0
        %2830 = vmatpush1.msra.mxu0 0.0
        %2831 = vmatprep.subr.mxu0 0.0
        %2832 = vmatpush1.msra.mxu0 0.0
        %2833 = vmatprep.subr.mxu0 0.0
        %2834 = vmatpush1.msra.mxu0 0.0
        %2835 = vmatprep.subr.mxu0 0.0
        %2836 = vmatpush1.msra.mxu0 0.0
        %2837 = vmatprep.subr.mxu0 0.0
        %2838 = vmatpush1.msra.mxu0 0.0
        %2839 = vmatprep.subr.mxu0 0.0
        %2840 = vmatpush1.msra.mxu0 0.0
        %2841 = vmatprep.subr.mxu0 0.0
        %2842 = vmatpush1.msra.mxu0 0.0
        %2843 = vmatprep.subr.mxu0 0.0
        %2844 = vmatpush1.msra.mxu0 0.0
        %2845 = vmatprep.subr.mxu0 0.0
        %2846 = vmatpush1.msra.mxu0 0.0
        %2847 = vmatprep.subr.mxu0 0.0
        %2848 = vmatpush1.msra.mxu0 0.0
        %2849 = vmatprep.subr.mxu0 0.0
        %2850 = vmatpush1.msra.mxu0 0.0
        %2851 = vmatprep.subr.mxu0 0.0
        %2852 = vmatpush1.msra.mxu0 0.0
        %2853 = vmatprep.subr.mxu0 0.0
        %2854 = vmatpush1.msra.mxu0 0.0
        %2855 = vmatprep.mubr.f32.mxu0 0.0
        %2856 = vmatmul.mubr.f32.gmra.mrb[0].mxu0 %v2789
        %v2857 = vpop.f32.mrb[0].mxu0
        %v2858 = vadd.f32 %v2786, %v2857
        %v2859 = vpop.f32.mrb[0].mxu0
        %2860 = vdwg.mxu0
        %v2861 = vmax.f32 %v2858, 0.0
        %v2862 = vld [vmem:[%s7] sm:$0xff]
        %v2863 = vld [vmem:[%s7 + $0x8] sm:$0xff]
        %v2864 = vld [vmem:[%s7 + $0x10] sm:$0xff]
        %v2865 = vld [vmem:[%s7 + $0x18] sm:$0xff]
        %v2866 = vld [vmem:[%s7 + $0x20] sm:$0xff]
        %v2867 = vld [vmem:[%s7 + $0x28] sm:$0xff]
        %v2868 = vld [vmem:[%s7 + $0x30] sm:$0xff]
        %v2869 = vld [vmem:[%s7 + $0x38] sm:$0xff]
        %v2870 = vld [vmem:[%s7 + $0x40] sm:$0xff]
        %v2871 = vld [vmem:[%s7 + $0x48] sm:$0xff]
        %v2872 = vld [vmem:[%s7 + $0x50] sm:$0xf]
        %v2873 = vld [vmem:[%s8] sm:$0x1]
        %v2875 = vlaneseq
        %v2876 = vshrl.u32 %v2875, 7
        %v2877 = vsub.s32 0, %v2876
        %v2878 = vrot.slane %v2873, %v2877
        %vm2880 = vcmask 687104
        %v2882 = vsel %vm2880, %v2861, 0
        %vm2884 = vcmask 1043456
        %v2886 = vsel %vm2884, %v2872, 0
        %2888 = vmatprep.subr.mxu0 0.0
        %2889 = vmatpush1.msra.mxu0 %v2862
        %2890 = vmatprep.subr.mxu0 0.0
        %2891 = vmatpush1.msra.mxu0 %v2863
        %2892 = vmatprep.subr.mxu0 0.0
        %2893 = vmatpush1.msra.mxu0 %v2864
        %2894 = vmatprep.subr.mxu0 0.0
        %2895 = vmatpush1.msra.mxu0 %v2865
        %2896 = vmatprep.subr.mxu0 0.0
        %2897 = vmatpush1.msra.mxu0 %v2866
        %2898 = vmatprep.subr.mxu0 0.0
        %2899 = vmatpush1.msra.mxu0 %v2867
        %2900 = vmatprep.subr.mxu0 0.0
        %2901 = vmatpush1.msra.mxu0 %v2868
        %2902 = vmatprep.subr.mxu0 0.0
        %2903 = vmatpush1.msra.mxu0 %v2869
        %2904 = vmatprep.subr.mxu0 0.0
        %2905 = vmatpush1.msra.mxu0 %v2870
        %2906 = vmatprep.subr.mxu0 0.0
        %2907 = vmatpush1.msra.mxu0 %v2871
        %2908 = vmatprep.subr.mxu0 0.0
        %2909 = vmatpush1.msra.mxu0 %v2886
        %2910 = vmatprep.subr.mxu0 0.0
        %2911 = vmatpush1.msra.mxu0 0.0
        %2912 = vmatprep.subr.mxu0 0.0
        %2913 = vmatpush1.msra.mxu0 0.0
        %2914 = vmatprep.subr.mxu0 0.0
        %2915 = vmatpush1.msra.mxu0 0.0
        %2916 = vmatprep.subr.mxu0 0.0
        %2917 = vmatpush1.msra.mxu0 0.0
        %2918 = vmatprep.subr.mxu0 0.0
        %2919 = vmatpush1.msra.mxu0 0.0
        %2920 = vmatprep.subr.mxu0 0.0
        %2921 = vmatpush1.msra.mxu0 0.0
        %2922 = vmatprep.subr.mxu0 0.0
        %2923 = vmatpush1.msra.mxu0 0.0
        %2924 = vmatprep.subr.mxu0 0.0
        %2925 = vmatpush1.msra.mxu0 0.0
        %2926 = vmatprep.subr.mxu0 0.0
        %2927 = vmatpush1.msra.mxu0 0.0
        %2928 = vmatprep.subr.mxu0 0.0
        %2929 = vmatpush1.msra.mxu0 0.0
        %2930 = vmatprep.subr.mxu0 0.0
        %2931 = vmatpush1.msra.mxu0 0.0
        %2932 = vmatprep.subr.mxu0 0.0
        %2933 = vmatpush1.msra.mxu0 0.0
        %2934 = vmatprep.subr.mxu0 0.0
        %2935 = vmatpush1.msra.mxu0 0.0
        %2936 = vmatprep.subr.mxu0 0.0
        %2937 = vmatpush1.msra.mxu0 0.0
        %2938 = vmatprep.subr.mxu0 0.0
        %2939 = vmatpush1.msra.mxu0 0.0
        %2940 = vmatprep.subr.mxu0 0.0
        %2941 = vmatpush1.msra.mxu0 0.0
        %2942 = vmatprep.subr.mxu0 0.0
        %2943 = vmatpush1.msra.mxu0 0.0
        %2944 = vmatprep.subr.mxu0 0.0
        %2945 = vmatpush1.msra.mxu0 0.0
        %2946 = vmatprep.subr.mxu0 0.0
        %2947 = vmatpush1.msra.mxu0 0.0
        %2948 = vmatprep.subr.mxu0 0.0
        %2949 = vmatpush1.msra.mxu0 0.0
        %2950 = vmatprep.subr.mxu0 0.0
        %2951 = vmatpush1.msra.mxu0 0.0
        %2952 = vmatprep.mubr.f32.mxu0 0.0
        %2953 = vmatmul.mubr.f32.gmra.mrb[0].mxu0 %v2882
        %v2954 = vpop.f32.mrb[0].mxu0
        %v2955 = vadd.f32 %v2878, %v2954
        %v2956 = vpop.f32.mrb[0].mxu0
        %2957 = vdwg.mxu0
        %vm2958 = vcmask 80896
        %2959 = vst.msk [vmem:[%s617] sm:$0xff] %vm2958, %v2955
        %p2960 = scmp.lt.s32.totalorder %s20, 1
        %s2961 = scalar_select %p2960, %s20, 1
        %s2962 = smul.addr %s2961, 8
        %s2963 = scalar_lea.vmem %s9, %s2962
        // Predicated region
        $region95: #{lenet5_forward.3} parent=89 // pred_check
          %p2964 = pneg %p232
        $region96: #{lenet5_forward.3} parent=89 // pred_check_branch
          %2966 = sbr.rel (%p2964) target = $region98
        $region97: #{lenet5_forward.3} parent=89 // pred_region
          _
        $region98: #{lenet5_forward.3} parent=89 // pred_fallthru
          _
      $region90: #{lenet5_forward.3} parent=5 // pred_fallthru
        _
      %p2967 = scmp.le.s32.totalorder 2, %s15
      // Predicated region
      $region99: #{lenet5_forward.3} parent=5 // pred_check
        %p2968 = pneg %p2967
      $region100: #{lenet5_forward.3} parent=5 // pred_check_branch
        %2970 = sbr.rel (%p2968) target = $region102
      $region101: #{lenet5_forward.3} parent=5 // pred_region
        %s2971 = ssub.s32 %s15, 2
        // Predicated region
        $region103: #{lenet5_forward.3} parent=101 // pred_check
          %p2972 = pneg %p238
        $region104: #{lenet5_forward.3} parent=101 // pred_check_branch
          %2974 = sbr.rel (%p2972) target = $region106
        $region105: #{lenet5_forward.3} parent=101 // pred_region
          %p2975 = scmp.lt.s32.totalorder %s21, 1
          %s2976 = scalar_select %p2975, %s21, 1
          %s2977 = smul.addr %s2976, 8
          %s2978 = scalar_lea.vmem %s9, %s2977
        $region106: #{lenet5_forward.3} parent=101 // pred_fallthru
          _
      $region102: #{lenet5_forward.3} parent=5 // pred_fallthru
        _
    $region6: #{lenet5_forward.3} parent=1 // loop_footer
      %s19 = sadd.s32 1, %s15
    $region7: #{lenet5_forward.3} parent=1 // loop_footer_branch
      %14 = sbr.rel target = $region3
    $region8: #{lenet5_forward.3} parent=1 // loop_exit
      _

</llo_original>
